<compile_context>
chip_gen: v6e
topology: v6e:2x2x1
jax: 0.10.0
libtpu: 0.0.40
codegen_flags: <defaults>
</compile_context>

<pallas_src>
import jax
import jax.numpy as jnp
from jax.experimental import pallas as pl
from jax.experimental.pallas import tpu as pltpu

N_MOD = 4          # len(modalities) = ['T1', 'T2', 'T1Gd', 'FLAIR']
IN_CH = 3          # resnet50 input channels
FEAT = 1024        # size_radio[0]
HID = 256          # size_radio[1]
DDIM = 256         # size_radio[2]
N_CLASSES = 4

# --- packed-bias layout (all segment starts are multiples of 128 lanes) ------
OFF_BP = 0                      # (1, FEAT)   backbone-stand-in bias
OFF_BR = FEAT                   # (1, FEAT)   reduce_dim bias
OFF_BFC = 2 * FEAT              # (1, HID)    fc_radio bias
OFF_BA = OFF_BFC + HID          # (1, DDIM)   attention_a bias
OFF_BB = OFF_BA + DDIM          # (1, DDIM)   attention_b bias
OFF_BC = OFF_BB + DDIM          # (1, 1)      attention_c bias
OFF_BCLS = OFF_BC + 128         # (1, N_CLASSES) classifier bias
BIAS_W = OFF_BCLS + 128         # = 3072


def grad_cam_radio_kernel(
    gap_ref,        # (N_MOD, IN_CH)     globally-pooled input (wrapper-computed)
    wp_ref,         # (IN_CH, FEAT)      backbone stand-in projection
    wr_ref,         # (FEAT, FEAT)       one K-tile of reduce_dim (streamed)
    wfc_ref,        # (FEAT, HID)        fc_radio
    wa_ref,         # (HID, DDIM)        attention_a
    wb_ref,         # (HID, DDIM)        attention_b
    wc_ref,         # (1, DDIM)          attention_c (transposed)
    wcls_ref,       # (HID, N_CLASSES)   classifier
    bias_ref,       # (1, BIAS_W)        all biases packed, lane-aligned
    out_ref,        # (1, 1)             risk
    acc_ref,        # (1, FEAT) f32      reduce_dim accumulator (VMEM scratch)
):
    m = pl.program_id(0)
    last = pl.num_programs(0) - 1

    # ---- backbone stand-in for modality m: Linear(gap_m) -> (1, FEAT) ----
    row_ids = jax.lax.broadcasted_iota(jnp.int32, (N_MOD, IN_CH), 0)
    g = jnp.sum(jnp.where(row_ids == m, gap_ref[...], 0.0),
                axis=0, keepdims=True)                               # (1, IN_CH)
    feat_m = (jnp.dot(g, wp_ref[...], preferred_element_type=jnp.float32)
              + bias_ref[:, OFF_BP:OFF_BP + FEAT])                   # (1, FEAT)

    # ---- reduce_dim: h = concat_m(feat_m) @ Wr + br, accumulated per tile ----
    @pl.when(m == 0)
    def _():
        acc_ref[...] = bias_ref[:, OFF_BR:OFF_BR + FEAT]

    acc_ref[...] += jnp.dot(feat_m, wr_ref[...],
                            preferred_element_type=jnp.float32)

    # ---- tail: fc + gated attention + classifier + cumprod (last step only) --
    @pl.when(m == last)
    def _():
        h = jnp.maximum(
            jnp.dot(acc_ref[...], wfc_ref[...],
                    preferred_element_type=jnp.float32)
            + bias_ref[:, OFF_BFC:OFF_BFC + HID], 0.0)               # (1, HID)

        # Attn_Net_Gated. For a single bag item, softmax over the single
        # attention score is identically 1.0, so M = A_soft @ h == h and the
        # attention branch cannot change the returned risk.  A_raw is computed
        # for fidelity (it is what grad-CAM would differentiate through).
        a = jnp.tanh(jnp.dot(h, wa_ref[...],
                             preferred_element_type=jnp.float32)
                     + bias_ref[:, OFF_BA:OFF_BA + DDIM])            # (1, DDIM)
        b = jax.nn.sigmoid(jnp.dot(h, wb_ref[...],
                                   preferred_element_type=jnp.float32)
                           + bias_ref[:, OFF_BB:OFF_BB + DDIM])      # (1, DDIM)
        A_raw = (jnp.sum(a * b * wc_ref[...], axis=1, keepdims=True)
                 + bias_ref[:, OFF_BC:OFF_BC + 1])                   # (1, 1)
        del A_raw  # softmax(A_raw) over dim=1 == 1.0 exactly

        M = h                                                        # (1, HID)
        logits = (jnp.dot(M, wcls_ref[...],
                          preferred_element_type=jnp.float32)
                  + bias_ref[:, OFF_BCLS:OFF_BCLS + N_CLASSES])      # (1, 4)
        hazards = jax.nn.sigmoid(logits)
        v = 1.0 - hazards                                            # (1, 4)

        # S = cumprod(v, dim=1); risk = -sum(S).  Unrolled Horner form:
        # sum_j prod_{k<=j} v_k = v0*(1 + v1*(1 + v2*(1 + v3)))
        v0 = v[:, 0:1]
        v1 = v[:, 1:2]
        v2 = v[:, 2:3]
        v3 = v[:, 3:4]
        out_ref[...] = -(v0 * (1.0 + v1 * (1.0 + v2 * (1.0 + v3))))


def _pack_biases(p):
    b = jnp.zeros((1, BIAS_W), jnp.float32)
    b = b.at[:, OFF_BP:OFF_BP + FEAT].set(p["bp"])
    b = b.at[:, OFF_BR:OFF_BR + FEAT].set(p["br"])
    b = b.at[:, OFF_BFC:OFF_BFC + HID].set(p["bfc"])
    b = b.at[:, OFF_BA:OFF_BA + DDIM].set(p["ba"])
    b = b.at[:, OFF_BB:OFF_BB + DDIM].set(p["bb"])
    b = b.at[:, OFF_BC:OFF_BC + 1].set(p["bc"])
    b = b.at[:, OFF_BCLS:OFF_BCLS + N_CLASSES].set(p["bcls"])
    return b


@jax.jit
def grad_cam_radio_forward(x, params):
    """x: (N_MOD, IN_CH, H, W) float32.  Returns [risk] with risk shape (1,)."""
    # Backbone stand-in, part 1 (global average pool) done with XLA: the kernel
    # would immediately collapse (4, 3, H*W) to 12 scalars anyway, and the
    # (4, 3, HW) layout wastes ~2.7x VMEM on sublane padding.
    gap = jnp.mean(x.astype(jnp.float32), axis=(2, 3))           # (N_MOD, IN_CH)

    wr = params["wr"]                                            # (N_MOD*FEAT, FEAT)
    wc_t = params["wc"].T                                        # (1, DDIM)
    biases = _pack_biases(params)                                # (1, BIAS_W)

    args = [
        gap,
        params["wp"],
        wr,
        params["wfc"],
        params["wa"],
        params["wb"],
        wc_t,
        params["wcls"],
        biases,
    ]

    in_specs = [
        pl.BlockSpec((N_MOD, IN_CH), lambda m: (0, 0)),          # gap
        pl.BlockSpec((IN_CH, FEAT), lambda m: (0, 0)),           # wp
        pl.BlockSpec((FEAT, FEAT), lambda m: (m, 0)),            # wr (streamed)
        pl.BlockSpec((FEAT, HID), lambda m: (0, 0)),             # wfc
        pl.BlockSpec((HID, DDIM), lambda m: (0, 0)),             # wa
        pl.BlockSpec((HID, DDIM), lambda m: (0, 0)),             # wb
        pl.BlockSpec((1, DDIM), lambda m: (0, 0)),               # wc_t
        pl.BlockSpec((HID, N_CLASSES), lambda m: (0, 0)),        # wcls
        pl.BlockSpec((1, BIAS_W), lambda m: (0, 0)),             # packed biases
    ]

    risk = pl.pallas_call(
        grad_cam_radio_kernel,
        out_shape=jax.ShapeDtypeStruct((1, 1), jnp.float32),
        grid=(N_MOD,),
        in_specs=in_specs,
        out_specs=pl.BlockSpec((1, 1), lambda m: (0, 0)),
        scratch_shapes=[pltpu.VMEM((1, FEAT), jnp.float32)],
        compiler_params=pltpu.CompilerParams(
            dimension_semantics=("arbitrary",),
            vmem_limit_bytes=32 * 1024 * 1024,
        ),
    )(*args)
    return [risk[:, 0]]  # matches torch: risk = -sum(S, dim=1) -> shape (1,)


def init_params(key):
    """Deterministic synthetic parameters (shapes per module __init__),
    stored in (in, out) layout; reduce_dim stored flattened as (4096, 1024)."""
    ks = jax.random.split(key, 16)
    w = lambda k, shape: (0.02 * jax.random.normal(k, shape)).astype(jnp.float32)
    b = lambda k, shape: (0.01 * jax.random.normal(k, shape)).astype(jnp.float32)
    return dict(
        # resnet50_baseline stand-in projection to 1024-d features
        wp=w(ks[0], (IN_CH, FEAT)), bp=b(ks[1], (1, FEAT)),
        # reduce_dim: Linear(1024 * n_modalities, 1024)
        wr=w(ks[2], (N_MOD * FEAT, FEAT)), br=b(ks[3], (1, FEAT)),
        # fc_radio: Linear(1024, 256)
        wfc=w(ks[4], (FEAT, HID)), bfc=b(ks[5], (1, HID)),
        # Attn_Net_Gated
        wa=w(ks[6], (HID, DDIM)), ba=b(ks[7], (1, DDIM)),
        wb=w(ks[8], (HID, DDIM)), bb=b(ks[9], (1, DDIM)),
        wc=w(ks[10], (DDIM, 1)), bc=b(ks[11], (1, 1)),
        # classifier: Linear(256, n_classes)
        wcls=w(ks[12], (HID, N_CLASSES)), bcls=b(ks[13], (1, N_CLASSES)),
    )


if __name__ == "__main__":
    key = jax.random.PRNGKey(0)
    kx, kp = jax.random.split(key)

    # x is NCHW — 4 modality images (T1, T2, T1Gd, FLAIR), 3 channels, 16x16.
    x = jax.random.normal(kx, (N_MOD, IN_CH, 16, 16), dtype=jnp.float32)
    params = init_params(kp)

    out = grad_cam_radio_forward(x, params)
    risk = jax.block_until_ready(out[0])
    assert risk.shape == (1,) and bool(jnp.isfinite(risk).all())
    print("KERNEL_OK")
</pallas_src>

<mosaic_0001>
module attributes {stable_mosaic.version = 11 : i64} {
  func.func @grad_cam_radio_kernel(%arg0: i32, %arg1: memref<4x3xf32, #tpu.memory_space<vmem>>, %arg2: memref<3x1024xf32, #tpu.memory_space<vmem>>, %arg3: memref<1024x1024xf32, #tpu.memory_space<vmem>>, %arg4: memref<1024x256xf32, #tpu.memory_space<vmem>>, %arg5: memref<256x256xf32, #tpu.memory_space<vmem>>, %arg6: memref<256x256xf32, #tpu.memory_space<vmem>>, %arg7: memref<1x256xf32, #tpu.memory_space<vmem>>, %arg8: memref<256x4xf32, #tpu.memory_space<vmem>>, %arg9: memref<1x3072xf32, #tpu.memory_space<vmem>>, %arg10: memref<1x1xf32, #tpu.memory_space<vmem>>, %arg11: memref<1x1024xf32, #tpu.memory_space<vmem>>) attributes {dimension_semantics = [#tpu.dimension_semantics<arbitrary>], iteration_bounds = array<i64: 4>, scalar_prefetch = 0 : i64, scratch_operands = 1 : i64, tpu.core_type = #tpu.core_type<tc>, window_params = [{pipeline_mode = #tpu.pipeline_mode<synchronous>, transform_indices = @transform_0, window_bounds = array<i64: 4, 3>}, {pipeline_mode = #tpu.pipeline_mode<synchronous>, transform_indices = @transform_1, window_bounds = array<i64: 3, 1024>}, {transform_indices = @transform_2, window_bounds = array<i64: 1024, 1024>}, {pipeline_mode = #tpu.pipeline_mode<synchronous>, transform_indices = @transform_3, window_bounds = array<i64: 1024, 256>}, {pipeline_mode = #tpu.pipeline_mode<synchronous>, transform_indices = @transform_4, window_bounds = array<i64: 256, 256>}, {pipeline_mode = #tpu.pipeline_mode<synchronous>, transform_indices = @transform_5, window_bounds = array<i64: 256, 256>}, {pipeline_mode = #tpu.pipeline_mode<synchronous>, transform_indices = @transform_6, window_bounds = array<i64: 1, 256>}, {pipeline_mode = #tpu.pipeline_mode<synchronous>, transform_indices = @transform_7, window_bounds = array<i64: 256, 4>}, {pipeline_mode = #tpu.pipeline_mode<synchronous>, transform_indices = @transform_8, window_bounds = array<i64: 1, 3072>}, {pipeline_mode = #tpu.pipeline_mode<synchronous>, transform_indices = @transform_9, window_bounds = array<i64: 1, 1>}]} {
    %0 = tpu.iota {dimensions = array<i32: 0>} : vector<4x3xi32>
    %1 = vector.broadcast %arg0 : i32 to vector<4x3xi32>
    %2 = arith.cmpi eq, %0, %1 : vector<4x3xi32>
    %c0 = arith.constant 0 : index
    %c0_0 = arith.constant 0 : index
    %3 = vector.load %arg1[%c0, %c0_0] : memref<4x3xf32, #tpu.memory_space<vmem>>, vector<4x3xf32>
    %cst = arith.constant 0.000000e+00 : f32
    %4 = vector.broadcast %cst : f32 to vector<4x3xf32>
    %5 = arith.select %2, %3, %4 : vector<4x3xi1>, vector<4x3xf32>
    %cst_1 = arith.constant dense<0.000000e+00> : vector<3xf32>
    %6 = vector.multi_reduction <add>, %5, %cst_1 [0] : vector<4x3xf32> to vector<3xf32>
    %7 = vector.shape_cast %6 : vector<3xf32> to vector<1x3xf32>
    %c0_2 = arith.constant 0 : index
    %c0_3 = arith.constant 0 : index
    %8 = vector.load %arg2[%c0_2, %c0_3] : memref<3x1024xf32, #tpu.memory_space<vmem>>, vector<3x1024xf32>
    %cst_4 = arith.constant dense<0.000000e+00> : vector<1x1024xf32>
    %9 = tpu.matmul %7, %8, %cst_4 {dimension_numbers = #tpu.dot_dimension_numbers<[1], [0], [0], [1], [0, 0, 1, 1], [], []>} : vector<1x3xf32>, vector<3x1024xf32>, vector<1x1024xf32> -> vector<1x1024xf32>
    %c0_5 = arith.constant 0 : index
    %c0_6 = arith.constant 0 : index
    %10 = vector.load %arg9[%c0_5, %c0_6] : memref<1x3072xf32, #tpu.memory_space<vmem>>, vector<1x1024xf32>
    %11 = arith.addf %9, %10 : vector<1x1024xf32>
    %c0_i32 = arith.constant 0 : i32
    %12 = arith.cmpi eq, %arg0, %c0_i32 : i32
    %13 = arith.extui %12 : i1 to i32
    %c0_i32_7 = arith.constant 0 : i32
    %14 = arith.cmpi ne, %13, %c0_i32_7 : i32
    scf.if %14 {
      %c0_16 = arith.constant 0 : index
      %c1024 = arith.constant 1024 : index
      %23 = vector.load %arg9[%c0_16, %c1024] : memref<1x3072xf32, #tpu.memory_space<vmem>>, vector<1x1024xf32>
      %c0_17 = arith.constant 0 : index
      %c0_18 = arith.constant 0 : index
      %24 = vector.load %arg11[%c0_17, %c0_18] : memref<1x1024xf32, #tpu.memory_space<vmem>>, vector<1x1024xf32>
      tpu.vector_store %arg11[%c0_17, %c0_18], %23 {strides = array<i32>} : memref<1x1024xf32, #tpu.memory_space<vmem>>, vector<1x1024xf32>,
    } else {
    }
    %c0_8 = arith.constant 0 : index
    %c0_9 = arith.constant 0 : index
    %15 = vector.load %arg11[%c0_8, %c0_9] : memref<1x1024xf32, #tpu.memory_space<vmem>>, vector<1x1024xf32>
    %c0_10 = arith.constant 0 : index
    %c0_11 = arith.constant 0 : index
    %16 = vector.load %arg3[%c0_10, %c0_11] : memref<1024x1024xf32, #tpu.memory_space<vmem>>, vector<1024x1024xf32>
    %cst_12 = arith.constant dense<0.000000e+00> : vector<1x1024xf32>
    %17 = tpu.matmul %11, %16, %cst_12 {dimension_numbers = #tpu.dot_dimension_numbers<[1], [0], [0], [1], [0, 0, 1, 1], [], []>} : vector<1x1024xf32>, vector<1024x1024xf32>, vector<1x1024xf32> -> vector<1x1024xf32>
    %18 = arith.addf %15, %17 : vector<1x1024xf32>
    %c0_13 = arith.constant 0 : index
    %c0_14 = arith.constant 0 : index
    %19 = vector.load %arg11[%c0_13, %c0_14] : memref<1x1024xf32, #tpu.memory_space<vmem>>, vector<1x1024xf32>
    tpu.vector_store %arg11[%c0_13, %c0_14], %18 {strides = array<i32>} : memref<1x1024xf32, #tpu.memory_space<vmem>>, vector<1x1024xf32>,
    %c3_i32 = arith.constant 3 : i32
    %20 = arith.cmpi eq, %arg0, %c3_i32 : i32
    %21 = arith.extui %20 : i1 to i32
    %c0_i32_15 = arith.constant 0 : i32
    %22 = arith.cmpi ne, %21, %c0_i32_15 : i32
    scf.if %22 {
      %c0_16 = arith.constant 0 : index
      %c0_17 = arith.constant 0 : index
      %23 = vector.load %arg11[%c0_16, %c0_17] : memref<1x1024xf32, #tpu.memory_space<vmem>>, vector<1x1024xf32>
      %c0_18 = arith.constant 0 : index
      %c0_19 = arith.constant 0 : index
      %24 = vector.load %arg4[%c0_18, %c0_19] : memref<1024x256xf32, #tpu.memory_space<vmem>>, vector<1024x256xf32>
      %cst_20 = arith.constant dense<0.000000e+00> : vector<1x256xf32>
      %25 = tpu.matmul %23, %24, %cst_20 {dimension_numbers = #tpu.dot_dimension_numbers<[1], [0], [0], [1], [0, 0, 1, 1], [], []>} : vector<1x1024xf32>, vector<1024x256xf32>, vector<1x256xf32> -> vector<1x256xf32>
      %c0_21 = arith.constant 0 : index
      %c2048 = arith.constant 2048 : index
      %26 = vector.load %arg9[%c0_21, %c2048] : memref<1x3072xf32, #tpu.memory_space<vmem>>, vector<1x256xf32>
      %27 = arith.addf %25, %26 : vector<1x256xf32>
      %cst_22 = arith.constant 0.000000e+00 : f32
      %28 = vector.broadcast %cst_22 : f32 to vector<1x256xf32>
      %29 = arith.maximumf %27, %28 : vector<1x256xf32>
      %c0_23 = arith.constant 0 : index
      %c0_24 = arith.constant 0 : index
      %30 = vector.load %arg8[%c0_23, %c0_24] : memref<256x4xf32, #tpu.memory_space<vmem>>, vector<256x4xf32>
      %cst_25 = arith.constant dense<0.000000e+00> : vector<1x4xf32>
      %31 = tpu.matmul %29, %30, %cst_25 {dimension_numbers = #tpu.dot_dimension_numbers<[1], [0], [0], [1], [0, 0, 1, 1], [], []>} : vector<1x256xf32>, vector<256x4xf32>, vector<1x4xf32> -> vector<1x4xf32>
      %c0_26 = arith.constant 0 : index
      %c2944 = arith.constant 2944 : index
      %32 = vector.load %arg9[%c0_26, %c2944] : memref<1x3072xf32, #tpu.memory_space<vmem>>, vector<1x4xf32>
      %33 = arith.addf %31, %32 : vector<1x4xf32>
      %34 = arith.negf %33 : vector<1x4xf32>
      %35 = math.exp %34 : vector<1x4xf32>
      %cst_27 = arith.constant 1.000000e+00 : f32
      %36 = vector.broadcast %cst_27 : f32 to vector<1x4xf32>
      %37 = arith.addf %36, %35 : vector<1x4xf32>
      %38 = arith.divf %36, %37 : vector<1x4xf32>
      %cst_28 = arith.constant 1.000000e+00 : f32
      %39 = vector.broadcast %cst_28 : f32 to vector<1x4xf32>
      %40 = arith.subf %39, %38 : vector<1x4xf32>
      %41 = vector.extract_strided_slice %40 {offsets = [0, 0], sizes = [1, 1], strides = [1, 1]} : vector<1x4xf32> to vector<1x1xf32>
      %42 = vector.extract_strided_slice %40 {offsets = [0, 1], sizes = [1, 1], strides = [1, 1]} : vector<1x4xf32> to vector<1x1xf32>
      %43 = vector.extract_strided_slice %40 {offsets = [0, 2], sizes = [1, 1], strides = [1, 1]} : vector<1x4xf32> to vector<1x1xf32>
      %44 = vector.extract_strided_slice %40 {offsets = [0, 3], sizes = [1, 1], strides = [1, 1]} : vector<1x4xf32> to vector<1x1xf32>
      %cst_29 = arith.constant 1.000000e+00 : f32
      %45 = vector.broadcast %cst_29 : f32 to vector<1x1xf32>
      %46 = arith.addf %45, %44 : vector<1x1xf32>
      %47 = arith.mulf %43, %46 : vector<1x1xf32>
      %cst_30 = arith.constant 1.000000e+00 : f32
      %48 = vector.broadcast %cst_30 : f32 to vector<1x1xf32>
      %49 = arith.addf %48, %47 : vector<1x1xf32>
      %50 = arith.mulf %42, %49 : vector<1x1xf32>
      %cst_31 = arith.constant 1.000000e+00 : f32
      %51 = vector.broadcast %cst_31 : f32 to vector<1x1xf32>
      %52 = arith.addf %51, %50 : vector<1x1xf32>
      %53 = arith.mulf %41, %52 : vector<1x1xf32>
      %cst_32 = arith.constant 0.000000e+00 : f32
      %54 = vector.broadcast %cst_32 : f32 to vector<1x1xf32>
      %55 = arith.subf %54, %53 : vector<1x1xf32>
      %c0_33 = arith.constant 0 : index
      %c0_34 = arith.constant 0 : index
      %56 = vector.load %arg10[%c0_33, %c0_34] : memref<1x1xf32, #tpu.memory_space<vmem>>, vector<1x1xf32>
      tpu.vector_store %arg10[%c0_33, %c0_34], %55 {strides = array<i32>} : memref<1x1xf32, #tpu.memory_space<vmem>>, vector<1x1xf32>,
    } else {
    }
    return
  }
  func.func @transform_0(%arg0: i32) -> (i32, i32) {
    %c0_i32 = arith.constant 0 : i32
    %c0_i32_0 = arith.constant 0 : i32
    %c0_i32_1 = arith.constant 0 : i32
    return %c0_i32, %c0_i32_0 : i32, i32
  }
  func.func @transform_1(%arg0: i32) -> (i32, i32) {
    %c0_i32 = arith.constant 0 : i32
    %c0_i32_0 = arith.constant 0 : i32
    %c0_i32_1 = arith.constant 0 : i32
    return %c0_i32, %c0_i32_0 : i32, i32
  }
  func.func @transform_2(%arg0: i32) -> (i32, i32) {
    %c0_i32 = arith.constant 0 : i32
    %c0_i32_0 = arith.constant 0 : i32
    return %arg0, %c0_i32 : i32, i32
  }
  func.func @transform_3(%arg0: i32) -> (i32, i32) {
    %c0_i32 = arith.constant 0 : i32
    %c0_i32_0 = arith.constant 0 : i32
    %c0_i32_1 = arith.constant 0 : i32
    return %c0_i32, %c0_i32_0 : i32, i32
  }
  func.func @transform_4(%arg0: i32) -> (i32, i32) {
    %c0_i32 = arith.constant 0 : i32
    %c0_i32_0 = arith.constant 0 : i32
    %c0_i32_1 = arith.constant 0 : i32
    return %c0_i32, %c0_i32_0 : i32, i32
  }
  func.func @transform_5(%arg0: i32) -> (i32, i32) {
    %c0_i32 = arith.constant 0 : i32
    %c0_i32_0 = arith.constant 0 : i32
    %c0_i32_1 = arith.constant 0 : i32
    return %c0_i32, %c0_i32_0 : i32, i32
  }
  func.func @transform_6(%arg0: i32) -> (i32, i32) {
    %c0_i32 = arith.constant 0 : i32
    %c0_i32_0 = arith.constant 0 : i32
    %c0_i32_1 = arith.constant 0 : i32
    return %c0_i32, %c0_i32_0 : i32, i32
  }
  func.func @transform_7(%arg0: i32) -> (i32, i32) {
    %c0_i32 = arith.constant 0 : i32
    %c0_i32_0 = arith.constant 0 : i32
    %c0_i32_1 = arith.constant 0 : i32
    return %c0_i32, %c0_i32_0 : i32, i32
  }
  func.func @transform_8(%arg0: i32) -> (i32, i32) {
    %c0_i32 = arith.constant 0 : i32
    %c0_i32_0 = arith.constant 0 : i32
    %c0_i32_1 = arith.constant 0 : i32
    return %c0_i32, %c0_i32_0 : i32, i32
  }
  func.func @transform_9(%arg0: i32) -> (i32, i32) {
    %c0_i32 = arith.constant 0 : i32
    %c0_i32_0 = arith.constant 0 : i32
    %c0_i32_1 = arith.constant 0 : i32
    return %c0_i32, %c0_i32_0 : i32, i32
  }
}

</mosaic_0001>

<llo_original>
// kernel: grad_cam_radio_forward.1
$region0: #{grad_cam_radio_forward.1}
  #allocation0 [shape = 'u32[]', space=smem, size = 0x4, offset = 0x4, fixed_abs, tag = 'smem constant byte address 0x4 - core index']
  #allocation1 [shape = 'u32[144,128]{1,0:T(1,128)}', space=vmem, size = 0x12000, scoped, tag = 'internal scratch']
  #allocation2 [shape = 'f32[1,1024]{1,0:T(1,128)}', space=vmem, size = 0x1000, scoped, tag = 'scratch operand']
  %s0 = inlined_call_operand.vmem [shape: f32[4,3], index: 0, kind: input, shape index: {}]
  %s1 = inlined_call_operand.hbm [shape: f32[3,1024], index: 1, kind: input, shape index: {}]
  %s2 = inlined_call_operand.hbm [shape: f32[4096,1024], index: 2, kind: input, shape index: {}]
  %s3 = inlined_call_operand.hbm [shape: f32[1024,256], index: 3, kind: input, shape index: {}]
  %s4 = inlined_call_operand.hbm [shape: f32[256,256], index: 4, kind: input, shape index: {}]
  %s5 = inlined_call_operand.hbm [shape: f32[256,256], index: 5, kind: input, shape index: {}]
  %s6 = inlined_call_operand.hbm [shape: f32[1,256], index: 6, kind: input, shape index: {}]
  %s7 = inlined_call_operand.vmem [shape: f32[256,4], index: 7, kind: input, shape index: {}]
  %s8 = inlined_call_operand.vmem [shape: f32[1,3072], index: 8, kind: input, shape index: {}]
  %s9 = inlined_call_operand.hbm [shape: f32[1,1], index: 9, kind: output, shape index: {}]
  %s10 = sld [smem:[#allocation0]]
  $region101: #{grad_cam_radio_forward.1} parent=0
    _
  %s12 = ssub.s32 1, %s10
  %s13 = scalar_select 0, %s12, %s10
  $region1: #{grad_cam_radio_forward.1} parent=0
    #allocation3 [shape = 'u8[16384]{0}', space=vmem, size = 0x4000, scoped, tag = 'input window, operand 1, single buffered']
    #allocation4 [shape = 's32[2]{0}', space=sflag, size = 0x8, scoped, tag = 'scoped memory for grad_cam_radio_forward.1']
    #allocation5 [shape = 's32[2]{0}', space=sflag, size = 0x8, scoped, tag = 'scoped memory for grad_cam_radio_forward.1']
    #allocation6 [shape = 'u8[8388608]{0}', space=vmem, size = 0x800000, scoped, tag = 'input window, operand 2']
    #allocation7 [shape = 's32[2]{0}', space=sflag, size = 0x8, scoped, tag = 'scoped memory for grad_cam_radio_forward.1']
    #allocation8 [shape = 'u8[1048576]{0}', space=vmem, size = 0x100000, scoped, tag = 'input window, operand 3, single buffered']
    #allocation9 [shape = 'u8[262144]{0}', space=vmem, size = 0x40000, scoped, tag = 'input window, operand 4, single buffered']
    #allocation10 [shape = 's32[1]{0}', space=sflag, size = 0x4, scoped, tag = 'scoped memory for grad_cam_radio_forward.1']
    #allocation11 [shape = 'u8[262144]{0}', space=vmem, size = 0x40000, scoped, tag = 'input window, operand 5, single buffered']
    #allocation12 [shape = 'u8[1024]{0}', space=vmem, size = 0x400, scoped, tag = 'input window, operand 6, single buffered']
    #allocation13 [shape = 's32[1]{0}', space=sflag, size = 0x4, scoped, tag = 'scoped memory for grad_cam_radio_forward.1']
    #allocation14 [shape = 'u8[512]{0}', space=vmem, size = 0x400, scoped, tag = 'output window, operand 0, single buffered']
    %14 = vsyncpa [#allocation4], 0
    %15 = vsyncpa [#allocation7], 0
    %s16 = scalar_lea.sflag [#allocation7], 1
    %17 = vsyncpa %s16, 0
    %18 = vsyncpa [#allocation10], 0
    %19 = vsyncpa [#allocation13], 0
    %20 = vsyncpa [#allocation5], 0
    loop: start=0, step=1, limit=6
    $region2: #{grad_cam_radio_forward.1} parent=1 // loop_pre_header
      _
    $region3: #{grad_cam_radio_forward.1} parent=1 // loop_header
      %s22 = sphi 0, %s26
      %p23 = scmp.ge.s32.totalorder %s22, 6
      %s30 = sphi 0, %s30
      %s32 = sphi 0, %s30
      %s33 = sphi 0, %s32
      %s47 = sphi 0, %s33
      %s51 = sphi 0, %s51
      %s53 = sphi 0, %s51
      %s54 = sphi 0, %s53
      %s68 = sphi 0, %s54
      %s74 = sphi 0, %s76
      %s77 = sphi 0, %s74
      %s78 = sphi 0, %s77
      %s94 = sphi 0, %s78
      %s98 = sphi 0, %s98
      %s100 = sphi 0, %s98
      %s101 = sphi 0, %s100
      %s115 = sphi 0, %s101
      %s119 = sphi 0, %s119
      %s121 = sphi 0, %s119
      %s122 = sphi 0, %s121
      %s136 = sphi 0, %s122
      %s140 = sphi 0, %s140
      %s142 = sphi 0, %s140
      %s143 = sphi 0, %s142
      %s157 = sphi 0, %s143
      %s161 = sphi 0, %s161
      %s163 = sphi 0, %s161
      %s164 = sphi 0, %s163
      %s178 = sphi 0, %s164
      %s182 = sphi 0, %s182
      %s184 = sphi 0, %s182
      %s185 = sphi 0, %s184
      %s199 = sphi 0, %s185
      %s203 = sphi 0, %s203
      %s205 = sphi 0, %s203
      %s206 = sphi 0, %s205
      %s220 = sphi 0, %s206
      %s224 = sphi 0, %s224
      %s226 = sphi 0, %s224
      %s227 = sphi 0, %s226
      %s241 = sphi 0, %s227
    $region4: #{grad_cam_radio_forward.1} parent=1 // loop_header_branch
      %25 = sbr.rel (%p23) target = $region8
    $region5: #{grad_cam_radio_forward.1} parent=1 // loop_body
      %s27 = ssub.s32 %s22, 1
      %s28 = ssub.s32 %s22, 2
      %s29 = sadd.s32 %s22, 1
      %s31 = sadd.s32 %s30, 1
      %p34 = scmp.eq.s32.totalorder %s22, 3
      %p35 = scmp.ne.s32.totalorder %s30, %s32
      %p36 = scmp.eq.s32.totalorder %s22, 0
      %p37 = por %p35, %p36
      %p38 = scmp.ne.s32.totalorder %s30, %s32
      %p39 = scmp.eq.s32.totalorder %s27, 3
      %p40 = por %p38, %p39
      %p41 = scmp.ne.s32.totalorder %s32, %s33
      %p42 = scmp.eq.s32.totalorder %s27, 0
      %p43 = por %p41, %p42
      %p44 = scmp.ne.s32.totalorder %s32, %s33
      %p45 = scmp.eq.s32.totalorder %s28, 3
      %p46 = por %p44, %p45
      %p48 = scmp.ne.s32.totalorder %s33, %s47
      %p49 = scmp.eq.s32.totalorder %s28, 0
      %p50 = por %p48, %p49
      %s52 = sadd.s32 %s51, 1
      %p55 = scmp.eq.s32.totalorder %s22, 3
      %p56 = scmp.ne.s32.totalorder %s51, %s53
      %p57 = scmp.eq.s32.totalorder %s22, 0
      %p58 = por %p56, %p57
      %p59 = scmp.ne.s32.totalorder %s51, %s53
      %p60 = scmp.eq.s32.totalorder %s27, 3
      %p61 = por %p59, %p60
      %p62 = scmp.ne.s32.totalorder %s53, %s54
      %p63 = scmp.eq.s32.totalorder %s27, 0
      %p64 = por %p62, %p63
      %p65 = scmp.ne.s32.totalorder %s53, %s54
      %p66 = scmp.eq.s32.totalorder %s28, 3
      %p67 = por %p65, %p66
      %p69 = scmp.ne.s32.totalorder %s54, %s68
      %p70 = scmp.eq.s32.totalorder %s28, 0
      %p71 = por %p69, %p70
      %s72 = ssub.s32 %s22, %s29
      %p73 = scmp.eq.s32.totalorder %s72, 0
      %s75 = sadd.s32 %s74, 1
      %s76 = scalar_select %p73, %s74, %s75
      %p79 = pneg %p73
      %p80 = scmp.eq.s32.totalorder %s22, 3
      %p81 = por %p79, %p80
      %p82 = scmp.ne.s32.totalorder %s74, %s77
      %p83 = scmp.eq.s32.totalorder %s22, 0
      %p84 = por %p82, %p83
      %p85 = scmp.ne.s32.totalorder %s74, %s77
      %p86 = scmp.eq.s32.totalorder %s27, 3
      %p87 = por %p85, %p86
      %p88 = scmp.ne.s32.totalorder %s77, %s78
      %p89 = scmp.eq.s32.totalorder %s27, 0
      %p90 = por %p88, %p89
      %p91 = scmp.ne.s32.totalorder %s77, %s78
      %p92 = scmp.eq.s32.totalorder %s28, 3
      %p93 = por %p91, %p92
      %p95 = scmp.ne.s32.totalorder %s78, %s94
      %p96 = scmp.eq.s32.totalorder %s28, 0
      %p97 = por %p95, %p96
      %s99 = sadd.s32 %s98, 1
      %p102 = scmp.eq.s32.totalorder %s22, 3
      %p103 = scmp.ne.s32.totalorder %s98, %s100
      %p104 = scmp.eq.s32.totalorder %s22, 0
      %p105 = por %p103, %p104
      %p106 = scmp.ne.s32.totalorder %s98, %s100
      %p107 = scmp.eq.s32.totalorder %s27, 3
      %p108 = por %p106, %p107
      %p109 = scmp.ne.s32.totalorder %s100, %s101
      %p110 = scmp.eq.s32.totalorder %s27, 0
      %p111 = por %p109, %p110
      %p112 = scmp.ne.s32.totalorder %s100, %s101
      %p113 = scmp.eq.s32.totalorder %s28, 3
      %p114 = por %p112, %p113
      %p116 = scmp.ne.s32.totalorder %s101, %s115
      %p117 = scmp.eq.s32.totalorder %s28, 0
      %p118 = por %p116, %p117
      %s120 = sadd.s32 %s119, 1
      %p123 = scmp.eq.s32.totalorder %s22, 3
      %p124 = scmp.ne.s32.totalorder %s119, %s121
      %p125 = scmp.eq.s32.totalorder %s22, 0
      %p126 = por %p124, %p125
      %p127 = scmp.ne.s32.totalorder %s119, %s121
      %p128 = scmp.eq.s32.totalorder %s27, 3
      %p129 = por %p127, %p128
      %p130 = scmp.ne.s32.totalorder %s121, %s122
      %p131 = scmp.eq.s32.totalorder %s27, 0
      %p132 = por %p130, %p131
      %p133 = scmp.ne.s32.totalorder %s121, %s122
      %p134 = scmp.eq.s32.totalorder %s28, 3
      %p135 = por %p133, %p134
      %p137 = scmp.ne.s32.totalorder %s122, %s136
      %p138 = scmp.eq.s32.totalorder %s28, 0
      %p139 = por %p137, %p138
      %s141 = sadd.s32 %s140, 1
      %p144 = scmp.eq.s32.totalorder %s22, 3
      %p145 = scmp.ne.s32.totalorder %s140, %s142
      %p146 = scmp.eq.s32.totalorder %s22, 0
      %p147 = por %p145, %p146
      %p148 = scmp.ne.s32.totalorder %s140, %s142
      %p149 = scmp.eq.s32.totalorder %s27, 3
      %p150 = por %p148, %p149
      %p151 = scmp.ne.s32.totalorder %s142, %s143
      %p152 = scmp.eq.s32.totalorder %s27, 0
      %p153 = por %p151, %p152
      %p154 = scmp.ne.s32.totalorder %s142, %s143
      %p155 = scmp.eq.s32.totalorder %s28, 3
      %p156 = por %p154, %p155
      %p158 = scmp.ne.s32.totalorder %s143, %s157
      %p159 = scmp.eq.s32.totalorder %s28, 0
      %p160 = por %p158, %p159
      %s162 = sadd.s32 %s161, 1
      %p165 = scmp.eq.s32.totalorder %s22, 3
      %p166 = scmp.ne.s32.totalorder %s161, %s163
      %p167 = scmp.eq.s32.totalorder %s22, 0
      %p168 = por %p166, %p167
      %p169 = scmp.ne.s32.totalorder %s161, %s163
      %p170 = scmp.eq.s32.totalorder %s27, 3
      %p171 = por %p169, %p170
      %p172 = scmp.ne.s32.totalorder %s163, %s164
      %p173 = scmp.eq.s32.totalorder %s27, 0
      %p174 = por %p172, %p173
      %p175 = scmp.ne.s32.totalorder %s163, %s164
      %p176 = scmp.eq.s32.totalorder %s28, 3
      %p177 = por %p175, %p176
      %p179 = scmp.ne.s32.totalorder %s164, %s178
      %p180 = scmp.eq.s32.totalorder %s28, 0
      %p181 = por %p179, %p180
      %s183 = sadd.s32 %s182, 1
      %p186 = scmp.eq.s32.totalorder %s22, 3
      %p187 = scmp.ne.s32.totalorder %s182, %s184
      %p188 = scmp.eq.s32.totalorder %s22, 0
      %p189 = por %p187, %p188
      %p190 = scmp.ne.s32.totalorder %s182, %s184
      %p191 = scmp.eq.s32.totalorder %s27, 3
      %p192 = por %p190, %p191
      %p193 = scmp.ne.s32.totalorder %s184, %s185
      %p194 = scmp.eq.s32.totalorder %s27, 0
      %p195 = por %p193, %p194
      %p196 = scmp.ne.s32.totalorder %s184, %s185
      %p197 = scmp.eq.s32.totalorder %s28, 3
      %p198 = por %p196, %p197
      %p200 = scmp.ne.s32.totalorder %s185, %s199
      %p201 = scmp.eq.s32.totalorder %s28, 0
      %p202 = por %p200, %p201
      %s204 = sadd.s32 %s203, 1
      %p207 = scmp.eq.s32.totalorder %s22, 3
      %p208 = scmp.ne.s32.totalorder %s203, %s205
      %p209 = scmp.eq.s32.totalorder %s22, 0
      %p210 = por %p208, %p209
      %p211 = scmp.ne.s32.totalorder %s203, %s205
      %p212 = scmp.eq.s32.totalorder %s27, 3
      %p213 = por %p211, %p212
      %p214 = scmp.ne.s32.totalorder %s205, %s206
      %p215 = scmp.eq.s32.totalorder %s27, 0
      %p216 = por %p214, %p215
      %p217 = scmp.ne.s32.totalorder %s205, %s206
      %p218 = scmp.eq.s32.totalorder %s28, 3
      %p219 = por %p217, %p218
      %p221 = scmp.ne.s32.totalorder %s206, %s220
      %p222 = scmp.eq.s32.totalorder %s28, 0
      %p223 = por %p221, %p222
      %s225 = sadd.s32 %s224, 1
      %p228 = scmp.eq.s32.totalorder %s22, 3
      %p229 = scmp.ne.s32.totalorder %s224, %s226
      %p230 = scmp.eq.s32.totalorder %s22, 0
      %p231 = por %p229, %p230
      %p232 = scmp.ne.s32.totalorder %s224, %s226
      %p233 = scmp.eq.s32.totalorder %s27, 3
      %p234 = por %p232, %p233
      %p235 = scmp.ne.s32.totalorder %s226, %s227
      %p236 = scmp.eq.s32.totalorder %s27, 0
      %p237 = por %p235, %p236
      %p238 = scmp.ne.s32.totalorder %s226, %s227
      %p239 = scmp.eq.s32.totalorder %s28, 3
      %p240 = por %p238, %p239
      %p242 = scmp.ne.s32.totalorder %s227, %s241
      %p243 = scmp.eq.s32.totalorder %s28, 0
      %p244 = por %p242, %p243
      %p245 = scmp.le.s32.totalorder 1, %s22
      %p246 = scmp.lt.s32.totalorder %s22, 5
      %p247 = pnand %p245, %p246
      %p248 = pneg %p247
      // Predicated region
      $region9: #{grad_cam_radio_forward.1} parent=5 // pred_check
        _
      $region10: #{grad_cam_radio_forward.1} parent=5 // pred_check_branch
        %250 = sbr.rel (%p247) target = $region12
      $region11: #{grad_cam_radio_forward.1} parent=5 // pred_region
        %s251 = ssub.s32 %s22, 1
        // Predicated region
        $region13: #{grad_cam_radio_forward.1} parent=11 // pred_check
          %p252 = pneg %p43
        $region14: #{grad_cam_radio_forward.1} parent=11 // pred_check_branch
          %254 = sbr.rel (%p252) target = $region16
        $region15: #{grad_cam_radio_forward.1} parent=11 // pred_region
          _
        $region16: #{grad_cam_radio_forward.1} parent=11 // pred_fallthru
          _
        // Predicated region
        $region17: #{grad_cam_radio_forward.1} parent=11 // pred_check
          %p255 = pneg %p64
        $region18: #{grad_cam_radio_forward.1} parent=11 // pred_check_branch
          %257 = sbr.rel (%p255) target = $region20
        $region19: #{grad_cam_radio_forward.1} parent=11 // pred_region
          %s259 = ssub.s32 512, 512
          %260 = vsyncadd [#allocation4], %s259
          %s262 = sshll.u32 [#allocation3], 4
          %s263 = int_to_ptr.vmem [resolvable:$true] %s262
          %265 = dma.hbm_to_vmem [thread:$0]  %s1, 512, %s263, [#allocation4]
        $region20: #{grad_cam_radio_forward.1} parent=11 // pred_fallthru
          _
        // Predicated region
        $region21: #{grad_cam_radio_forward.1} parent=11 // pred_check
          %p266 = pneg %p111
        $region22: #{grad_cam_radio_forward.1} parent=11 // pred_check_branch
          %268 = sbr.rel (%p266) target = $region24
        $region23: #{grad_cam_radio_forward.1} parent=11 // pred_region
          %s270 = ssub.s32 32768, 32768
          %271 = vsyncadd [#allocation7], %s270
          %s272 = sshll.u32 [#allocation8], 4
          %s273 = int_to_ptr.vmem [resolvable:$true] %s272
          %278 = dma.hbm_to_vmem [thread:$0]  %s3, 32768, %s273, [#allocation7], 256, 256, 16
        $region24: #{grad_cam_radio_forward.1} parent=11 // pred_fallthru
          _
        // Predicated region
        $region25: #{grad_cam_radio_forward.1} parent=11 // pred_check
          %p279 = pneg %p132
        $region26: #{grad_cam_radio_forward.1} parent=11 // pred_check_branch
          %281 = sbr.rel (%p279) target = $region28
        $region27: #{grad_cam_radio_forward.1} parent=11 // pred_region
          %s283 = ssub.s32 8192, 8192
          %284 = vsyncadd [#allocation10], %s283
          %s285 = sshll.u32 [#allocation9], 4
          %s286 = int_to_ptr.vmem [resolvable:$true] %s285
          %291 = dma.hbm_to_vmem [thread:$0]  %s4, 8192, %s286, [#allocation10], 256, 256, 16
        $region28: #{grad_cam_radio_forward.1} parent=11 // pred_fallthru
          _
        // Predicated region
        $region29: #{grad_cam_radio_forward.1} parent=11 // pred_check
          %p292 = pneg %p153
        $region30: #{grad_cam_radio_forward.1} parent=11 // pred_check_branch
          %294 = sbr.rel (%p292) target = $region32
        $region31: #{grad_cam_radio_forward.1} parent=11 // pred_region
          %s296 = ssub.s32 8192, 8192
          %297 = vsyncadd [#allocation10], %s296
          %s298 = sshll.u32 [#allocation11], 4
          %s299 = int_to_ptr.vmem [resolvable:$true] %s298
          %304 = dma.hbm_to_vmem [thread:$0]  %s5, 8192, %s299, [#allocation10], 256, 256, 16
        $region32: #{grad_cam_radio_forward.1} parent=11 // pred_fallthru
          _
        // Predicated region
        $region33: #{grad_cam_radio_forward.1} parent=11 // pred_check
          %p305 = pneg %p174
        $region34: #{grad_cam_radio_forward.1} parent=11 // pred_check_branch
          %307 = sbr.rel (%p305) target = $region36
        $region35: #{grad_cam_radio_forward.1} parent=11 // pred_region
          %s309 = ssub.s32 32, 32
          %310 = vsyncadd [#allocation13], %s309
          %s312 = sshll.u32 [#allocation12], 4
          %s313 = int_to_ptr.vmem [resolvable:$true] %s312
          %315 = dma.hbm_to_vmem [thread:$0]  %s6, 32, %s313, [#allocation13]
        $region36: #{grad_cam_radio_forward.1} parent=11 // pred_fallthru
          _
        // Predicated region
        $region37: #{grad_cam_radio_forward.1} parent=11 // pred_check
          %p316 = pneg %p195
        $region38: #{grad_cam_radio_forward.1} parent=11 // pred_check_branch
          %318 = sbr.rel (%p316) target = $region40
        $region39: #{grad_cam_radio_forward.1} parent=11 // pred_region
          _
        $region40: #{grad_cam_radio_forward.1} parent=11 // pred_fallthru
          _
        // Predicated region
        $region41: #{grad_cam_radio_forward.1} parent=11 // pred_check
          %p319 = pneg %p216
        $region42: #{grad_cam_radio_forward.1} parent=11 // pred_check_branch
          %321 = sbr.rel (%p319) target = $region44
        $region43: #{grad_cam_radio_forward.1} parent=11 // pred_region
          _
        $region44: #{grad_cam_radio_forward.1} parent=11 // pred_fallthru
          _
      $region12: #{grad_cam_radio_forward.1} parent=5 // pred_fallthru
        _
      %p322 = scmp.lt.s32.totalorder %s22, 4
      // Predicated region
      $region45: #{grad_cam_radio_forward.1} parent=5 // pred_check
        %p323 = pneg %p322
      $region46: #{grad_cam_radio_forward.1} parent=5 // pred_check_branch
        %325 = sbr.rel (%p323) target = $region48
      $region47: #{grad_cam_radio_forward.1} parent=5 // pred_region
        // Predicated region
        $region49: #{grad_cam_radio_forward.1} parent=47 // pred_check
          %p326 = pneg %p84
        $region50: #{grad_cam_radio_forward.1} parent=47 // pred_check_branch
          %328 = sbr.rel (%p326) target = $region52
        $region51: #{grad_cam_radio_forward.1} parent=47 // pred_region
          %s329 = sand.u32 %s22, 1
          %s330 = scalar_lea.sflag [#allocation7], %s329
          %s331 = sand.u32 %s74, 1
          %s332 = smul.addr %s331, 8192
          %s333 = scalar_lea.vmem [#allocation6], %s332
          %s334 = smul.u32 128, %s22
          %s336 = ssub.s32 131072, 131072
          %337 = vsyncadd %s330, %s336
          %s338 = smul.addr %s334, 8
          %s339 = smul.addr %s338, 128
          %s340 = scalar_lea.hbm %s2, %s339
          %s341 = sshll.u32 %s333, 4
          %s342 = int_to_ptr.vmem [resolvable:$true] %s341
          %347 = dma.hbm_to_vmem [thread:$0]  %s340, 131072, %s342, %s330, 1024, 1024, 64
        $region52: #{grad_cam_radio_forward.1} parent=47 // pred_fallthru
          _
      $region48: #{grad_cam_radio_forward.1} parent=5 // pred_fallthru
        _
      %p348 = scmp.le.s32.totalorder 1, %s22
      %p349 = scmp.lt.s32.totalorder %s22, 5
      %p350 = pnand %p348, %p349
      %p351 = pneg %p350
      // Predicated region
      $region53: #{grad_cam_radio_forward.1} parent=5 // pred_check
        _
      $region54: #{grad_cam_radio_forward.1} parent=5 // pred_check_branch
        %353 = sbr.rel (%p350) target = $region56
      $region55: #{grad_cam_radio_forward.1} parent=5 // pred_region
        %s354 = ssub.s32 %s22, 1
        // Predicated region
        $region57: #{grad_cam_radio_forward.1} parent=55 // pred_check
          %p355 = pneg %p64
        $region58: #{grad_cam_radio_forward.1} parent=55 // pred_check_branch
          %357 = sbr.rel (%p355) target = $region60
        $region59: #{grad_cam_radio_forward.1} parent=55 // pred_region
          %358 = dma.done [#allocation4], 512
        $region60: #{grad_cam_radio_forward.1} parent=55 // pred_fallthru
          _
        %s359 = sand.u32 %s27, 1
        %s360 = scalar_lea.sflag [#allocation7], %s359
        %s361 = sand.u32 %s77, 1
        %s362 = smul.addr %s361, 8192
        %s363 = scalar_lea.vmem [#allocation6], %s362
        // Predicated region
        $region61: #{grad_cam_radio_forward.1} parent=55 // pred_check
          %p364 = pneg %p90
        $region62: #{grad_cam_radio_forward.1} parent=55 // pred_check_branch
          %366 = sbr.rel (%p364) target = $region64
        $region63: #{grad_cam_radio_forward.1} parent=55 // pred_region
          %367 = dma.done %s360, 131072
        $region64: #{grad_cam_radio_forward.1} parent=55 // pred_fallthru
          _
        // Predicated region
        $region65: #{grad_cam_radio_forward.1} parent=55 // pred_check
          %p368 = pneg %p111
        $region66: #{grad_cam_radio_forward.1} parent=55 // pred_check_branch
          %370 = sbr.rel (%p368) target = $region68
        $region67: #{grad_cam_radio_forward.1} parent=55 // pred_region
          %371 = dma.done [#allocation7], 32768
        $region68: #{grad_cam_radio_forward.1} parent=55 // pred_fallthru
          _
        // Predicated region
        $region69: #{grad_cam_radio_forward.1} parent=55 // pred_check
          %p372 = pneg %p132
        $region70: #{grad_cam_radio_forward.1} parent=55 // pred_check_branch
          %374 = sbr.rel (%p372) target = $region72
        $region71: #{grad_cam_radio_forward.1} parent=55 // pred_region
          %375 = dma.done [#allocation10], 8192
        $region72: #{grad_cam_radio_forward.1} parent=55 // pred_fallthru
          _
        // Predicated region
        $region73: #{grad_cam_radio_forward.1} parent=55 // pred_check
          %p376 = pneg %p153
        $region74: #{grad_cam_radio_forward.1} parent=55 // pred_check_branch
          %378 = sbr.rel (%p376) target = $region76
        $region75: #{grad_cam_radio_forward.1} parent=55 // pred_region
          %379 = dma.done [#allocation10], 8192
        $region76: #{grad_cam_radio_forward.1} parent=55 // pred_fallthru
          _
        // Predicated region
        $region77: #{grad_cam_radio_forward.1} parent=55 // pred_check
          %p380 = pneg %p174
        $region78: #{grad_cam_radio_forward.1} parent=55 // pred_check_branch
          %382 = sbr.rel (%p380) target = $region80
        $region79: #{grad_cam_radio_forward.1} parent=55 // pred_region
          %383 = dma.done [#allocation13], 32
        $region80: #{grad_cam_radio_forward.1} parent=55 // pred_fallthru
          _
        %p384 = pneg %p43
        %p385 = pneg %p40
        %p386 = pneg %p64
        %p387 = pneg %p61
        %s388 = sand.u32 %s27, 1
        %s389 = scalar_lea.sflag [#allocation7], %s388
        %s390 = sand.u32 %s77, 1
        %s391 = smul.addr %s390, 8192
        %s392 = scalar_lea.vmem [#allocation6], %s391
        %p393 = pneg %p90
        %p394 = pneg %p87
        %p395 = pneg %p111
        %p396 = pneg %p108
        %p397 = pneg %p132
        %p398 = pneg %p129
        %p399 = pneg %p153
        %p400 = pneg %p150
        %p401 = pneg %p174
        %p402 = pneg %p171
        %p403 = pneg %p195
        %p404 = pneg %p192
        %p405 = pneg %p216
        %p406 = pneg %p213
        %p407 = pneg %p237
        %p408 = pneg %p234
        %s409 = smul.u32 128, %s27
        %v410 = vlaneseq
        %v411 = vshrl.u32 %v410, 7
        %v412 = vstv %s27
        %vm413 = vcmp.eq.s32.totalorder %v411, %v412
        %v414 = vld [vmem:[%s0] sm:$0xf]
        %v415 = vsel %vm413, %v414, 0.0
        %vm416 = vcmask 19456
        %v417 = vsel %vm416, %v415, 0.0
        %v418 = vrot.slane %v417, 4
        %v419 = vadd.f32 %v417, %v418
        %v420 = vrot.slane %v419, 2
        %v421 = vadd.f32 %v419, %v420
        %v422 = vrot.slane %v421, 1
        %v423 = vadd.f32 %v421, %v422
        %v424 = vld [vmem:[#allocation3] sm:$0x77]
        %v425 = vld [vmem:[#allocation3 + $0x8] sm:$0x77]
        %v426 = vld [vmem:[#allocation3 + $0x10] sm:$0x77]
        %v427 = vld [vmem:[#allocation3 + $0x18] sm:$0x77]
        %v428 = vld [vmem:[%s8] sm:$0xff]
        %v433 = vcombine.high %v424, %v424
        %v434 = vcombine.high %v425, %v425
        %v435 = vcombine.high %v426, %v426
        %v436 = vcombine.high %v427, %v427
        %v438 = vlaneseq
        %v439 = vshrl.u32 %v438, 7
        %v440 = vsub.s32 0, %v439
        %v441 = vrot.slane %v428, %v440
        %v442 = vlaneseq
        %v443 = vshrl.u32 %v442, 7
        %v444 = vsub.s32 1, %v443
        %v445 = vrot.slane %v428, %v444
        %v446 = vlaneseq
        %v447 = vshrl.u32 %v446, 7
        %v448 = vsub.s32 2, %v447
        %v449 = vrot.slane %v428, %v448
        %v450 = vlaneseq
        %v451 = vshrl.u32 %v450, 7
        %v452 = vsub.s32 3, %v451
        %v453 = vrot.slane %v428, %v452
        %v454 = vlaneseq
        %v455 = vshrl.u32 %v454, 7
        %v456 = vsub.s32 4, %v455
        %v457 = vrot.slane %v428, %v456
        %v458 = vlaneseq
        %v459 = vshrl.u32 %v458, 7
        %v460 = vsub.s32 5, %v459
        %v461 = vrot.slane %v428, %v460
        %v462 = vlaneseq
        %v463 = vshrl.u32 %v462, 7
        %v464 = vsub.s32 6, %v463
        %v465 = vrot.slane %v428, %v464
        %v466 = vlaneseq
        %v467 = vshrl.u32 %v466, 7
        %v468 = vsub.s32 7, %v467
        %v469 = vrot.slane %v428, %v468
        %vm478 = vcmask 23552
        %v480 = vsel %vm478, %v423, 0
        %vm482 = vcmask 1042432
        %v483 = vsel %vm482, %v424, 0
        %v485 = vsel %vm482, %v433, 0
        %v487 = vsel %vm482, %v425, 0
        %v489 = vsel %vm482, %v434, 0
        %v491 = vsel %vm482, %v426, 0
        %v493 = vsel %vm482, %v435, 0
        %v495 = vsel %vm482, %v427, 0
        %v497 = vsel %vm482, %v436, 0
        %499 = vmatprep.subr.mxu0 0.0
        %500 = vmatpush1.msra.mxu0 0.0
        %501 = vmatprep.subr.mxu0 0.0
        %502 = vmatpush1.msra.mxu0 0.0
        %503 = vmatprep.subr.mxu0 0.0
        %504 = vmatpush1.msra.mxu0 0.0
        %505 = vmatprep.subr.mxu0 0.0
        %506 = vmatpush1.msra.mxu0 0.0
        %507 = vmatprep.subr.mxu0 0.0
        %508 = vmatpush1.msra.mxu0 0.0
        %509 = vmatprep.subr.mxu0 0.0
        %510 = vmatpush1.msra.mxu0 0.0
        %511 = vmatprep.subr.mxu0 0.0
        %512 = vmatpush1.msra.mxu0 0.0
        %513 = vmatprep.subr.mxu0 0.0
        %514 = vmatpush1.msra.mxu0 0.0
        %515 = vmatprep.subr.mxu0 0.0
        %516 = vmatpush1.msra.mxu0 0.0
        %517 = vmatprep.subr.mxu0 0.0
        %518 = vmatpush1.msra.mxu0 0.0
        %519 = vmatprep.subr.mxu0 0.0
        %520 = vmatpush1.msra.mxu0 0.0
        %521 = vmatprep.subr.mxu0 0.0
        %522 = vmatpush1.msra.mxu0 0.0
        %523 = vmatprep.subr.mxu0 0.0
        %524 = vmatpush1.msra.mxu0 0.0
        %525 = vmatprep.subr.mxu0 0.0
        %526 = vmatpush1.msra.mxu0 0.0
        %527 = vmatprep.subr.mxu0 0.0
        %528 = vmatpush1.msra.mxu0 0.0
        %529 = vmatprep.subr.mxu0 %v485
        %530 = vmatpush1.msra.mxu0 %v483
        %531 = vmatprep.subr.mxu0 0.0
        %532 = vmatpush2.msra.mxu0 0.0
        %533 = vmatprep.subr.mxu0 0.0
        %534 = vmatpush2.msra.mxu0 0.0
        %535 = vmatprep.subr.mxu0 0.0
        %536 = vmatpush2.msra.mxu0 0.0
        %537 = vmatprep.subr.mxu0 0.0
        %538 = vmatpush2.msra.mxu0 0.0
        %539 = vmatprep.subr.mxu0 0.0
        %540 = vmatpush2.msra.mxu0 0.0
        %541 = vmatprep.subr.mxu0 0.0
        %542 = vmatpush2.msra.mxu0 0.0
        %543 = vmatprep.subr.mxu0 0.0
        %544 = vmatpush2.msra.mxu0 0.0
        %545 = vmatprep.subr.mxu0 0.0
        %546 = vmatpush2.msra.mxu0 0.0
        %547 = vmatprep.subr.mxu0 0.0
        %548 = vmatpush2.msra.mxu0 0.0
        %549 = vmatprep.subr.mxu0 0.0
        %550 = vmatpush2.msra.mxu0 0.0
        %551 = vmatprep.subr.mxu0 0.0
        %552 = vmatpush2.msra.mxu0 0.0
        %553 = vmatprep.subr.mxu0 0.0
        %554 = vmatpush2.msra.mxu0 0.0
        %555 = vmatprep.subr.mxu0 0.0
        %556 = vmatpush2.msra.mxu0 0.0
        %557 = vmatprep.subr.mxu0 0.0
        %558 = vmatpush2.msra.mxu0 0.0
        %559 = vmatprep.subr.mxu0 0.0
        %560 = vmatpush2.msra.mxu0 0.0
        %561 = vmatprep.subr.mxu0 0.0
        %562 = vmatpush2.msra.mxu0 0.0
        %563 = vmatprep.mubr.f32.mxu0 0.0
        %564 = vmatmul.mubr.f32.gmra.mxu0 %v480
        %v565 = vpop.f32.mrf.mxu0
        %v566 = vadd.f32 %v441, %v565
        %v567 = vpop.f32.mrf.mxu0
        %v568 = vadd.f32 %v445, %v567
        %569 = vdwg.mxu0
        %570 = vmatprep.subr.mxu0 0.0
        %571 = vmatpush1.msra.mxu0 0.0
        %572 = vmatprep.subr.mxu0 0.0
        %573 = vmatpush1.msra.mxu0 0.0
        %574 = vmatprep.subr.mxu0 0.0
        %575 = vmatpush1.msra.mxu0 0.0
        %576 = vmatprep.subr.mxu0 0.0
        %577 = vmatpush1.msra.mxu0 0.0
        %578 = vmatprep.subr.mxu0 0.0
        %579 = vmatpush1.msra.mxu0 0.0
        %580 = vmatprep.subr.mxu0 0.0
        %581 = vmatpush1.msra.mxu0 0.0
        %582 = vmatprep.subr.mxu0 0.0
        %583 = vmatpush1.msra.mxu0 0.0
        %584 = vmatprep.subr.mxu0 0.0
        %585 = vmatpush1.msra.mxu0 0.0
        %586 = vmatprep.subr.mxu0 0.0
        %587 = vmatpush1.msra.mxu0 0.0
        %588 = vmatprep.subr.mxu0 0.0
        %589 = vmatpush1.msra.mxu0 0.0
        %590 = vmatprep.subr.mxu0 0.0
        %591 = vmatpush1.msra.mxu0 0.0
        %592 = vmatprep.subr.mxu0 0.0
        %593 = vmatpush1.msra.mxu0 0.0
        %594 = vmatprep.subr.mxu0 0.0
        %595 = vmatpush1.msra.mxu0 0.0
        %596 = vmatprep.subr.mxu0 0.0
        %597 = vmatpush1.msra.mxu0 0.0
        %598 = vmatprep.subr.mxu0 0.0
        %599 = vmatpush1.msra.mxu0 0.0
        %600 = vmatprep.subr.mxu0 %v489
        %601 = vmatpush1.msra.mxu0 %v487
        %602 = vmatprep.subr.mxu0 0.0
        %603 = vmatpush2.msra.mxu0 0.0
        %604 = vmatprep.subr.mxu0 0.0
        %605 = vmatpush2.msra.mxu0 0.0
        %606 = vmatprep.subr.mxu0 0.0
        %607 = vmatpush2.msra.mxu0 0.0
        %608 = vmatprep.subr.mxu0 0.0
        %609 = vmatpush2.msra.mxu0 0.0
        %610 = vmatprep.subr.mxu0 0.0
        %611 = vmatpush2.msra.mxu0 0.0
        %612 = vmatprep.subr.mxu0 0.0
        %613 = vmatpush2.msra.mxu0 0.0
        %614 = vmatprep.subr.mxu0 0.0
        %615 = vmatpush2.msra.mxu0 0.0
        %616 = vmatprep.subr.mxu0 0.0
        %617 = vmatpush2.msra.mxu0 0.0
        %618 = vmatprep.subr.mxu0 0.0
        %619 = vmatpush2.msra.mxu0 0.0
        %620 = vmatprep.subr.mxu0 0.0
        %621 = vmatpush2.msra.mxu0 0.0
        %622 = vmatprep.subr.mxu0 0.0
        %623 = vmatpush2.msra.mxu0 0.0
        %624 = vmatprep.subr.mxu0 0.0
        %625 = vmatpush2.msra.mxu0 0.0
        %626 = vmatprep.subr.mxu0 0.0
        %627 = vmatpush2.msra.mxu0 0.0
        %628 = vmatprep.subr.mxu0 0.0
        %629 = vmatpush2.msra.mxu0 0.0
        %630 = vmatprep.subr.mxu0 0.0
        %631 = vmatpush2.msra.mxu0 0.0
        %632 = vmatprep.subr.mxu0 0.0
        %633 = vmatpush2.msra.mxu0 0.0
        %634 = vmatprep.mubr.f32.mxu0 0.0
        %635 = vmatmul.mubr.f32.gmra.mxu0 %v480
        %v636 = vpop.f32.mrf.mxu0
        %v637 = vadd.f32 %v449, %v636
        %v638 = vpop.f32.mrf.mxu0
        %v639 = vadd.f32 %v453, %v638
        %640 = vdwg.mxu0
        %641 = vmatprep.subr.mxu0 0.0
        %642 = vmatpush1.msra.mxu0 0.0
        %643 = vmatprep.subr.mxu0 0.0
        %644 = vmatpush1.msra.mxu0 0.0
        %645 = vmatprep.subr.mxu0 0.0
        %646 = vmatpush1.msra.mxu0 0.0
        %647 = vmatprep.subr.mxu0 0.0
        %648 = vmatpush1.msra.mxu0 0.0
        %649 = vmatprep.subr.mxu0 0.0
        %650 = vmatpush1.msra.mxu0 0.0
        %651 = vmatprep.subr.mxu0 0.0
        %652 = vmatpush1.msra.mxu0 0.0
        %653 = vmatprep.subr.mxu0 0.0
        %654 = vmatpush1.msra.mxu0 0.0
        %655 = vmatprep.subr.mxu0 0.0
        %656 = vmatpush1.msra.mxu0 0.0
        %657 = vmatprep.subr.mxu0 0.0
        %658 = vmatpush1.msra.mxu0 0.0
        %659 = vmatprep.subr.mxu0 0.0
        %660 = vmatpush1.msra.mxu0 0.0
        %661 = vmatprep.subr.mxu0 0.0
        %662 = vmatpush1.msra.mxu0 0.0
        %663 = vmatprep.subr.mxu0 0.0
        %664 = vmatpush1.msra.mxu0 0.0
        %665 = vmatprep.subr.mxu0 0.0
        %666 = vmatpush1.msra.mxu0 0.0
        %667 = vmatprep.subr.mxu0 0.0
        %668 = vmatpush1.msra.mxu0 0.0
        %669 = vmatprep.subr.mxu0 0.0
        %670 = vmatpush1.msra.mxu0 0.0
        %671 = vmatprep.subr.mxu0 %v493
        %672 = vmatpush1.msra.mxu0 %v491
        %673 = vmatprep.subr.mxu0 0.0
        %674 = vmatpush2.msra.mxu0 0.0
        %675 = vmatprep.subr.mxu0 0.0
        %676 = vmatpush2.msra.mxu0 0.0
        %677 = vmatprep.subr.mxu0 0.0
        %678 = vmatpush2.msra.mxu0 0.0
        %679 = vmatprep.subr.mxu0 0.0
        %680 = vmatpush2.msra.mxu0 0.0
        %681 = vmatprep.subr.mxu0 0.0
        %682 = vmatpush2.msra.mxu0 0.0
        %683 = vmatprep.subr.mxu0 0.0
        %684 = vmatpush2.msra.mxu0 0.0
        %685 = vmatprep.subr.mxu0 0.0
        %686 = vmatpush2.msra.mxu0 0.0
        %687 = vmatprep.subr.mxu0 0.0
        %688 = vmatpush2.msra.mxu0 0.0
        %689 = vmatprep.subr.mxu0 0.0
        %690 = vmatpush2.msra.mxu0 0.0
        %691 = vmatprep.subr.mxu0 0.0
        %692 = vmatpush2.msra.mxu0 0.0
        %693 = vmatprep.subr.mxu0 0.0
        %694 = vmatpush2.msra.mxu0 0.0
        %695 = vmatprep.subr.mxu0 0.0
        %696 = vmatpush2.msra.mxu0 0.0
        %697 = vmatprep.subr.mxu0 0.0
        %698 = vmatpush2.msra.mxu0 0.0
        %699 = vmatprep.subr.mxu0 0.0
        %700 = vmatpush2.msra.mxu0 0.0
        %701 = vmatprep.subr.mxu0 0.0
        %702 = vmatpush2.msra.mxu0 0.0
        %703 = vmatprep.subr.mxu0 0.0
        %704 = vmatpush2.msra.mxu0 0.0
        %705 = vmatprep.mubr.f32.mxu0 0.0
        %706 = vmatmul.mubr.f32.gmra.mxu0 %v480
        %v707 = vpop.f32.mrf.mxu0
        %v708 = vadd.f32 %v457, %v707
        %v709 = vpop.f32.mrf.mxu0
        %v710 = vadd.f32 %v461, %v709
        %711 = vdwg.mxu0
        %712 = vmatprep.subr.mxu0 0.0
        %713 = vmatpush1.msra.mxu0 0.0
        %714 = vmatprep.subr.mxu0 0.0
        %715 = vmatpush1.msra.mxu0 0.0
        %716 = vmatprep.subr.mxu0 0.0
        %717 = vmatpush1.msra.mxu0 0.0
        %718 = vmatprep.subr.mxu0 0.0
        %719 = vmatpush1.msra.mxu0 0.0
        %720 = vmatprep.subr.mxu0 0.0
        %721 = vmatpush1.msra.mxu0 0.0
        %722 = vmatprep.subr.mxu0 0.0
        %723 = vmatpush1.msra.mxu0 0.0
        %724 = vmatprep.subr.mxu0 0.0
        %725 = vmatpush1.msra.mxu0 0.0
        %726 = vmatprep.subr.mxu0 0.0
        %727 = vmatpush1.msra.mxu0 0.0
        %728 = vmatprep.subr.mxu0 0.0
        %729 = vmatpush1.msra.mxu0 0.0
        %730 = vmatprep.subr.mxu0 0.0
        %731 = vmatpush1.msra.mxu0 0.0
        %732 = vmatprep.subr.mxu0 0.0
        %733 = vmatpush1.msra.mxu0 0.0
        %734 = vmatprep.subr.mxu0 0.0
        %735 = vmatpush1.msra.mxu0 0.0
        %736 = vmatprep.subr.mxu0 0.0
        %737 = vmatpush1.msra.mxu0 0.0
        %738 = vmatprep.subr.mxu0 0.0
        %739 = vmatpush1.msra.mxu0 0.0
        %740 = vmatprep.subr.mxu0 0.0
        %741 = vmatpush1.msra.mxu0 0.0
        %742 = vmatprep.subr.mxu0 %v497
        %743 = vmatpush1.msra.mxu0 %v495
        %744 = vmatprep.subr.mxu0 0.0
        %745 = vmatpush2.msra.mxu0 0.0
        %746 = vmatprep.subr.mxu0 0.0
        %747 = vmatpush2.msra.mxu0 0.0
        %748 = vmatprep.subr.mxu0 0.0
        %749 = vmatpush2.msra.mxu0 0.0
        %750 = vmatprep.subr.mxu0 0.0
        %751 = vmatpush2.msra.mxu0 0.0
        %752 = vmatprep.subr.mxu0 0.0
        %753 = vmatpush2.msra.mxu0 0.0
        %754 = vmatprep.subr.mxu0 0.0
        %755 = vmatpush2.msra.mxu0 0.0
        %756 = vmatprep.subr.mxu0 0.0
        %757 = vmatpush2.msra.mxu0 0.0
        %758 = vmatprep.subr.mxu0 0.0
        %759 = vmatpush2.msra.mxu0 0.0
        %760 = vmatprep.subr.mxu0 0.0
        %761 = vmatpush2.msra.mxu0 0.0
        %762 = vmatprep.subr.mxu0 0.0
        %763 = vmatpush2.msra.mxu0 0.0
        %764 = vmatprep.subr.mxu0 0.0
        %765 = vmatpush2.msra.mxu0 0.0
        %766 = vmatprep.subr.mxu0 0.0
        %767 = vmatpush2.msra.mxu0 0.0
        %768 = vmatprep.subr.mxu0 0.0
        %769 = vmatpush2.msra.mxu0 0.0
        %770 = vmatprep.subr.mxu0 0.0
        %771 = vmatpush2.msra.mxu0 0.0
        %772 = vmatprep.subr.mxu0 0.0
        %773 = vmatpush2.msra.mxu0 0.0
        %774 = vmatprep.subr.mxu0 0.0
        %775 = vmatpush2.msra.mxu0 0.0
        %776 = vmatprep.mubr.f32.mxu0 0.0
        %777 = vmatmul.mubr.f32.gmra.mxu0 %v480
        %v778 = vpop.f32.mrf.mxu0
        %v779 = vadd.f32 %v465, %v778
        %v780 = vpop.f32.mrf.mxu0
        %v781 = vadd.f32 %v469, %v780
        %782 = vdwg.mxu0
        %p783 = scmp.eq.s32.totalorder %s27, 0
        // Predicated region
        $region81: #{grad_cam_radio_forward.1} parent=55 // pred_check
          %p784 = pneg %p783
        $region82: #{grad_cam_radio_forward.1} parent=55 // pred_check_branch
          %786 = sbr.rel (%p784) target = $region84
        $region83: #{grad_cam_radio_forward.1} parent=55 // pred_region
          %v787 = vld [vmem:[%s8 + $0x8] sm:$0xff]
          %788 = vst [vmem:[#allocation2] sm:$0xff] %v787
        $region84: #{grad_cam_radio_forward.1} parent=55 // pred_fallthru
          _
        %v789 = vld [vmem:[#allocation2] sm:$0xff]
        %v790 = vld [vmem:[%s363] sm:$0xff]
        %v791 = vld [vmem:[%s363 + $0x8] sm:$0xff]
        %v792 = vld [vmem:[%s363 + $0x10] sm:$0xff]
        %v793 = vld [vmem:[%s363 + $0x18] sm:$0xff]
        %v794 = vld [vmem:[%s363 + $0x20] sm:$0xff]
        %v795 = vld [vmem:[%s363 + $0x28] sm:$0xff]
        %v796 = vld [vmem:[%s363 + $0x30] sm:$0xff]
        %v797 = vld [vmem:[%s363 + $0x38] sm:$0xff]
        %v798 = vld [vmem:[%s363 + $0x40] sm:$0xff]
        %v799 = vld [vmem:[%s363 + $0x48] sm:$0xff]
        %v800 = vld [vmem:[%s363 + $0x50] sm:$0xff]
        %v801 = vld [vmem:[%s363 + $0x58] sm:$0xff]
        %v802 = vld [vmem:[%s363 + $0x60] sm:$0xff]
        %v803 = vld [vmem:[%s363 + $0x68] sm:$0xff]
        %v804 = vld [vmem:[%s363 + $0x70] sm:$0xff]
        %v805 = vld [vmem:[%s363 + $0x78] sm:$0xff]
        %v806 = vld [vmem:[%s363 + $0x80] sm:$0xff]
        %v807 = vld [vmem:[%s363 + $0x88] sm:$0xff]
        %v808 = vld [vmem:[%s363 + $0x90] sm:$0xff]
        %v809 = vld [vmem:[%s363 + $0x98] sm:$0xff]
        %v810 = vld [vmem:[%s363 + $0xa0] sm:$0xff]
        %v811 = vld [vmem:[%s363 + $0xa8] sm:$0xff]
        %v812 = vld [vmem:[%s363 + $0xb0] sm:$0xff]
        %v813 = vld [vmem:[%s363 + $0xb8] sm:$0xff]
        %v814 = vld [vmem:[%s363 + $0xc0] sm:$0xff]
        %v815 = vld [vmem:[%s363 + $0xc8] sm:$0xff]
        %v816 = vld [vmem:[%s363 + $0xd0] sm:$0xff]
        %v817 = vld [vmem:[%s363 + $0xd8] sm:$0xff]
        %v818 = vld [vmem:[%s363 + $0xe0] sm:$0xff]
        %v819 = vld [vmem:[%s363 + $0xe8] sm:$0xff]
        %v820 = vld [vmem:[%s363 + $0xf0] sm:$0xff]
        %v821 = vld [vmem:[%s363 + $0xf8] sm:$0xff]
        %v822 = vld [vmem:[%s363 + $0x100] sm:$0xff]
        %v823 = vld [vmem:[%s363 + $0x108] sm:$0xff]
        %v824 = vld [vmem:[%s363 + $0x110] sm:$0xff]
        %v825 = vld [vmem:[%s363 + $0x118] sm:$0xff]
        %v826 = vld [vmem:[%s363 + $0x120] sm:$0xff]
        %v827 = vld [vmem:[%s363 + $0x128] sm:$0xff]
        %v828 = vld [vmem:[%s363 + $0x130] sm:$0xff]
        %v829 = vld [vmem:[%s363 + $0x138] sm:$0xff]
        %v830 = vld [vmem:[%s363 + $0x140] sm:$0xff]
        %v831 = vld [vmem:[%s363 + $0x148] sm:$0xff]
        %v832 = vld [vmem:[%s363 + $0x150] sm:$0xff]
        %v833 = vld [vmem:[%s363 + $0x158] sm:$0xff]
        %v834 = vld [vmem:[%s363 + $0x160] sm:$0xff]
        %v835 = vld [vmem:[%s363 + $0x168] sm:$0xff]
        %v836 = vld [vmem:[%s363 + $0x170] sm:$0xff]
        %v837 = vld [vmem:[%s363 + $0x178] sm:$0xff]
        %v838 = vld [vmem:[%s363 + $0x180] sm:$0xff]
        %v839 = vld [vmem:[%s363 + $0x188] sm:$0xff]
        %v840 = vld [vmem:[%s363 + $0x190] sm:$0xff]
        %v841 = vld [vmem:[%s363 + $0x198] sm:$0xff]
        %v842 = vld [vmem:[%s363 + $0x1a0] sm:$0xff]
        %v843 = vld [vmem:[%s363 + $0x1a8] sm:$0xff]
        %v844 = vld [vmem:[%s363 + $0x1b0] sm:$0xff]
        %v845 = vld [vmem:[%s363 + $0x1b8] sm:$0xff]
        %v846 = vld [vmem:[%s363 + $0x1c0] sm:$0xff]
        %v847 = vld [vmem:[%s363 + $0x1c8] sm:$0xff]
        %v848 = vld [vmem:[%s363 + $0x1d0] sm:$0xff]
        %v849 = vld [vmem:[%s363 + $0x1d8] sm:$0xff]
        %v850 = vld [vmem:[%s363 + $0x1e0] sm:$0xff]
        %v851 = vld [vmem:[%s363 + $0x1e8] sm:$0xff]
        %v852 = vld [vmem:[%s363 + $0x1f0] sm:$0xff]
        %v853 = vld [vmem:[%s363 + $0x1f8] sm:$0xff]
        %v854 = vld [vmem:[%s363 + $0x200] sm:$0xff]
        %v855 = vld [vmem:[%s363 + $0x208] sm:$0xff]
        %v856 = vld [vmem:[%s363 + $0x210] sm:$0xff]
        %v857 = vld [vmem:[%s363 + $0x218] sm:$0xff]
        %v858 = vld [vmem:[%s363 + $0x220] sm:$0xff]
        %v859 = vld [vmem:[%s363 + $0x228] sm:$0xff]
        %v860 = vld [vmem:[%s363 + $0x230] sm:$0xff]
        %v861 = vld [vmem:[%s363 + $0x238] sm:$0xff]
        %v862 = vld [vmem:[%s363 + $0x240] sm:$0xff]
        %v863 = vld [vmem:[%s363 + $0x248] sm:$0xff]
        %v864 = vld [vmem:[%s363 + $0x250] sm:$0xff]
        %v865 = vld [vmem:[%s363 + $0x258] sm:$0xff]
        %v866 = vld [vmem:[%s363 + $0x260] sm:$0xff]
        %v867 = vld [vmem:[%s363 + $0x268] sm:$0xff]
        %v868 = vld [vmem:[%s363 + $0x270] sm:$0xff]
        %v869 = vld [vmem:[%s363 + $0x278] sm:$0xff]
        %v870 = vld [vmem:[%s363 + $0x280] sm:$0xff]
        %v871 = vld [vmem:[%s363 + $0x288] sm:$0xff]
        %v872 = vld [vmem:[%s363 + $0x290] sm:$0xff]
        %v873 = vld [vmem:[%s363 + $0x298] sm:$0xff]
        %v874 = vld [vmem:[%s363 + $0x2a0] sm:$0xff]
        %v875 = vld [vmem:[%s363 + $0x2a8] sm:$0xff]
        %v876 = vld [vmem:[%s363 + $0x2b0] sm:$0xff]
        %v877 = vld [vmem:[%s363 + $0x2b8] sm:$0xff]
        %v878 = vld [vmem:[%s363 + $0x2c0] sm:$0xff]
        %v879 = vld [vmem:[%s363 + $0x2c8] sm:$0xff]
        %v880 = vld [vmem:[%s363 + $0x2d0] sm:$0xff]
        %v881 = vld [vmem:[%s363 + $0x2d8] sm:$0xff]
        %v882 = vld [vmem:[%s363 + $0x2e0] sm:$0xff]
        %v883 = vld [vmem:[%s363 + $0x2e8] sm:$0xff]
        %v884 = vld [vmem:[%s363 + $0x2f0] sm:$0xff]
        %v885 = vld [vmem:[%s363 + $0x2f8] sm:$0xff]
        %v886 = vld [vmem:[%s363 + $0x300] sm:$0xff]
        %v887 = vld [vmem:[%s363 + $0x308] sm:$0xff]
        %v888 = vld [vmem:[%s363 + $0x310] sm:$0xff]
        %v889 = vld [vmem:[%s363 + $0x318] sm:$0xff]
        %v890 = vld [vmem:[%s363 + $0x320] sm:$0xff]
        %v891 = vld [vmem:[%s363 + $0x328] sm:$0xff]
        %v892 = vld [vmem:[%s363 + $0x330] sm:$0xff]
        %v893 = vld [vmem:[%s363 + $0x338] sm:$0xff]
        %v894 = vld [vmem:[%s363 + $0x340] sm:$0xff]
        %v895 = vld [vmem:[%s363 + $0x348] sm:$0xff]
        %v896 = vld [vmem:[%s363 + $0x350] sm:$0xff]
        %v897 = vld [vmem:[%s363 + $0x358] sm:$0xff]
        %v898 = vld [vmem:[%s363 + $0x360] sm:$0xff]
        %v899 = vld [vmem:[%s363 + $0x368] sm:$0xff]
        %v900 = vld [vmem:[%s363 + $0x370] sm:$0xff]
        %v901 = vld [vmem:[%s363 + $0x378] sm:$0xff]
        %v902 = vld [vmem:[%s363 + $0x380] sm:$0xff]
        %v903 = vld [vmem:[%s363 + $0x388] sm:$0xff]
        %v904 = vld [vmem:[%s363 + $0x390] sm:$0xff]
        %v905 = vld [vmem:[%s363 + $0x398] sm:$0xff]
        %v906 = vld [vmem:[%s363 + $0x3a0] sm:$0xff]
        %v907 = vld [vmem:[%s363 + $0x3a8] sm:$0xff]
        %v908 = vld [vmem:[%s363 + $0x3b0] sm:$0xff]
        %v909 = vld [vmem:[%s363 + $0x3b8] sm:$0xff]
        %v910 = vld [vmem:[%s363 + $0x3c0] sm:$0xff]
        %v911 = vld [vmem:[%s363 + $0x3c8] sm:$0xff]
        %v912 = vld [vmem:[%s363 + $0x3d0] sm:$0xff]
        %v913 = vld [vmem:[%s363 + $0x3d8] sm:$0xff]
        %v914 = vld [vmem:[%s363 + $0x3e0] sm:$0xff]
        %v915 = vld [vmem:[%s363 + $0x3e8] sm:$0xff]
        %v916 = vld [vmem:[%s363 + $0x3f0] sm:$0xff]
        %v917 = vld [vmem:[%s363 + $0x3f8] sm:$0xff]
        %v918 = vld [vmem:[%s363 + $0x400] sm:$0xff]
        %v919 = vld [vmem:[%s363 + $0x408] sm:$0xff]
        %v920 = vld [vmem:[%s363 + $0x410] sm:$0xff]
        %v921 = vld [vmem:[%s363 + $0x418] sm:$0xff]
        %v922 = vld [vmem:[%s363 + $0x420] sm:$0xff]
        %v923 = vld [vmem:[%s363 + $0x428] sm:$0xff]
        %v924 = vld [vmem:[%s363 + $0x430] sm:$0xff]
        %v925 = vld [vmem:[%s363 + $0x438] sm:$0xff]
        %v926 = vld [vmem:[%s363 + $0x440] sm:$0xff]
        %v927 = vld [vmem:[%s363 + $0x448] sm:$0xff]
        %v928 = vld [vmem:[%s363 + $0x450] sm:$0xff]
        %v929 = vld [vmem:[%s363 + $0x458] sm:$0xff]
        %v930 = vld [vmem:[%s363 + $0x460] sm:$0xff]
        %v931 = vld [vmem:[%s363 + $0x468] sm:$0xff]
        %v932 = vld [vmem:[%s363 + $0x470] sm:$0xff]
        %v933 = vld [vmem:[%s363 + $0x478] sm:$0xff]
        %v934 = vld [vmem:[%s363 + $0x480] sm:$0xff]
        %v935 = vld [vmem:[%s363 + $0x488] sm:$0xff]
        %v936 = vld [vmem:[%s363 + $0x490] sm:$0xff]
        %v937 = vld [vmem:[%s363 + $0x498] sm:$0xff]
        %v938 = vld [vmem:[%s363 + $0x4a0] sm:$0xff]
        %v939 = vld [vmem:[%s363 + $0x4a8] sm:$0xff]
        %v940 = vld [vmem:[%s363 + $0x4b0] sm:$0xff]
        %v941 = vld [vmem:[%s363 + $0x4b8] sm:$0xff]
        %v942 = vld [vmem:[%s363 + $0x4c0] sm:$0xff]
        %v943 = vld [vmem:[%s363 + $0x4c8] sm:$0xff]
        %v944 = vld [vmem:[%s363 + $0x4d0] sm:$0xff]
        %v945 = vld [vmem:[%s363 + $0x4d8] sm:$0xff]
        %v946 = vld [vmem:[%s363 + $0x4e0] sm:$0xff]
        %v947 = vld [vmem:[%s363 + $0x4e8] sm:$0xff]
        %v948 = vld [vmem:[%s363 + $0x4f0] sm:$0xff]
        %v949 = vld [vmem:[%s363 + $0x4f8] sm:$0xff]
        %v950 = vld [vmem:[%s363 + $0x500] sm:$0xff]
        %v951 = vld [vmem:[%s363 + $0x508] sm:$0xff]
        %v952 = vld [vmem:[%s363 + $0x510] sm:$0xff]
        %v953 = vld [vmem:[%s363 + $0x518] sm:$0xff]
        %v954 = vld [vmem:[%s363 + $0x520] sm:$0xff]
        %v955 = vld [vmem:[%s363 + $0x528] sm:$0xff]
        %v956 = vld [vmem:[%s363 + $0x530] sm:$0xff]
        %v957 = vld [vmem:[%s363 + $0x538] sm:$0xff]
        %v958 = vld [vmem:[%s363 + $0x540] sm:$0xff]
        %v959 = vld [vmem:[%s363 + $0x548] sm:$0xff]
        %v960 = vld [vmem:[%s363 + $0x550] sm:$0xff]
        %v961 = vld [vmem:[%s363 + $0x558] sm:$0xff]
        %v962 = vld [vmem:[%s363 + $0x560] sm:$0xff]
        %v963 = vld [vmem:[%s363 + $0x568] sm:$0xff]
        %v964 = vld [vmem:[%s363 + $0x570] sm:$0xff]
        %v965 = vld [vmem:[%s363 + $0x578] sm:$0xff]
        %v966 = vld [vmem:[%s363 + $0x580] sm:$0xff]
        %v967 = vld [vmem:[%s363 + $0x588] sm:$0xff]
        %v968 = vld [vmem:[%s363 + $0x590] sm:$0xff]
        %v969 = vld [vmem:[%s363 + $0x598] sm:$0xff]
        %v970 = vld [vmem:[%s363 + $0x5a0] sm:$0xff]
        %v971 = vld [vmem:[%s363 + $0x5a8] sm:$0xff]
        %v972 = vld [vmem:[%s363 + $0x5b0] sm:$0xff]
        %v973 = vld [vmem:[%s363 + $0x5b8] sm:$0xff]
        %v974 = vld [vmem:[%s363 + $0x5c0] sm:$0xff]
        %v975 = vld [vmem:[%s363 + $0x5c8] sm:$0xff]
        %v976 = vld [vmem:[%s363 + $0x5d0] sm:$0xff]
        %v977 = vld [vmem:[%s363 + $0x5d8] sm:$0xff]
        %v978 = vld [vmem:[%s363 + $0x5e0] sm:$0xff]
        %v979 = vld [vmem:[%s363 + $0x5e8] sm:$0xff]
        %v980 = vld [vmem:[%s363 + $0x5f0] sm:$0xff]
        %v981 = vld [vmem:[%s363 + $0x5f8] sm:$0xff]
        %v982 = vld [vmem:[%s363 + $0x600] sm:$0xff]
        %v983 = vld [vmem:[%s363 + $0x608] sm:$0xff]
        %v984 = vld [vmem:[%s363 + $0x610] sm:$0xff]
        %v985 = vld [vmem:[%s363 + $0x618] sm:$0xff]
        %v986 = vld [vmem:[%s363 + $0x620] sm:$0xff]
        %v987 = vld [vmem:[%s363 + $0x628] sm:$0xff]
        %v988 = vld [vmem:[%s363 + $0x630] sm:$0xff]
        %v989 = vld [vmem:[%s363 + $0x638] sm:$0xff]
        %v990 = vld [vmem:[%s363 + $0x640] sm:$0xff]
        %v991 = vld [vmem:[%s363 + $0x648] sm:$0xff]
        %v992 = vld [vmem:[%s363 + $0x650] sm:$0xff]
        %v993 = vld [vmem:[%s363 + $0x658] sm:$0xff]
        %v994 = vld [vmem:[%s363 + $0x660] sm:$0xff]
        %v995 = vld [vmem:[%s363 + $0x668] sm:$0xff]
        %v996 = vld [vmem:[%s363 + $0x670] sm:$0xff]
        %v997 = vld [vmem:[%s363 + $0x678] sm:$0xff]
        %v998 = vld [vmem:[%s363 + $0x680] sm:$0xff]
        %v999 = vld [vmem:[%s363 + $0x688] sm:$0xff]
        %v1000 = vld [vmem:[%s363 + $0x690] sm:$0xff]
        %v1001 = vld [vmem:[%s363 + $0x698] sm:$0xff]
        %v1002 = vld [vmem:[%s363 + $0x6a0] sm:$0xff]
        %v1003 = vld [vmem:[%s363 + $0x6a8] sm:$0xff]
        %v1004 = vld [vmem:[%s363 + $0x6b0] sm:$0xff]
        %v1005 = vld [vmem:[%s363 + $0x6b8] sm:$0xff]
        %v1006 = vld [vmem:[%s363 + $0x6c0] sm:$0xff]
        %v1007 = vld [vmem:[%s363 + $0x6c8] sm:$0xff]
        %v1008 = vld [vmem:[%s363 + $0x6d0] sm:$0xff]
        %v1009 = vld [vmem:[%s363 + $0x6d8] sm:$0xff]
        %v1010 = vld [vmem:[%s363 + $0x6e0] sm:$0xff]
        %v1011 = vld [vmem:[%s363 + $0x6e8] sm:$0xff]
        %v1012 = vld [vmem:[%s363 + $0x6f0] sm:$0xff]
        %v1013 = vld [vmem:[%s363 + $0x6f8] sm:$0xff]
        %v1014 = vld [vmem:[%s363 + $0x700] sm:$0xff]
        %v1015 = vld [vmem:[%s363 + $0x708] sm:$0xff]
        %v1016 = vld [vmem:[%s363 + $0x710] sm:$0xff]
        %v1017 = vld [vmem:[%s363 + $0x718] sm:$0xff]
        %v1018 = vld [vmem:[%s363 + $0x720] sm:$0xff]
        %v1019 = vld [vmem:[%s363 + $0x728] sm:$0xff]
        %v1020 = vld [vmem:[%s363 + $0x730] sm:$0xff]
        %v1021 = vld [vmem:[%s363 + $0x738] sm:$0xff]
        %v1022 = vld [vmem:[%s363 + $0x740] sm:$0xff]
        %v1023 = vld [vmem:[%s363 + $0x748] sm:$0xff]
        %v1024 = vld [vmem:[%s363 + $0x750] sm:$0xff]
        %v1025 = vld [vmem:[%s363 + $0x758] sm:$0xff]
        %v1026 = vld [vmem:[%s363 + $0x760] sm:$0xff]
        %v1027 = vld [vmem:[%s363 + $0x768] sm:$0xff]
        %v1028 = vld [vmem:[%s363 + $0x770] sm:$0xff]
        %v1029 = vld [vmem:[%s363 + $0x778] sm:$0xff]
        %v1030 = vld [vmem:[%s363 + $0x780] sm:$0xff]
        %v1031 = vld [vmem:[%s363 + $0x788] sm:$0xff]
        %v1032 = vld [vmem:[%s363 + $0x790] sm:$0xff]
        %v1033 = vld [vmem:[%s363 + $0x798] sm:$0xff]
        %v1034 = vld [vmem:[%s363 + $0x7a0] sm:$0xff]
        %v1035 = vld [vmem:[%s363 + $0x7a8] sm:$0xff]
        %v1036 = vld [vmem:[%s363 + $0x7b0] sm:$0xff]
        %v1037 = vld [vmem:[%s363 + $0x7b8] sm:$0xff]
        %v1038 = vld [vmem:[%s363 + $0x7c0] sm:$0xff]
        %v1039 = vld [vmem:[%s363 + $0x7c8] sm:$0xff]
        %v1040 = vld [vmem:[%s363 + $0x7d0] sm:$0xff]
        %v1041 = vld [vmem:[%s363 + $0x7d8] sm:$0xff]
        %v1042 = vld [vmem:[%s363 + $0x7e0] sm:$0xff]
        %v1043 = vld [vmem:[%s363 + $0x7e8] sm:$0xff]
        %v1044 = vld [vmem:[%s363 + $0x7f0] sm:$0xff]
        %v1045 = vld [vmem:[%s363 + $0x7f8] sm:$0xff]
        %v1046 = vld [vmem:[%s363 + $0x800] sm:$0xff]
        %v1047 = vld [vmem:[%s363 + $0x808] sm:$0xff]
        %v1048 = vld [vmem:[%s363 + $0x810] sm:$0xff]
        %v1049 = vld [vmem:[%s363 + $0x818] sm:$0xff]
        %v1050 = vld [vmem:[%s363 + $0x820] sm:$0xff]
        %v1051 = vld [vmem:[%s363 + $0x828] sm:$0xff]
        %v1052 = vld [vmem:[%s363 + $0x830] sm:$0xff]
        %v1053 = vld [vmem:[%s363 + $0x838] sm:$0xff]
        %v1054 = vld [vmem:[%s363 + $0x840] sm:$0xff]
        %v1055 = vld [vmem:[%s363 + $0x848] sm:$0xff]
        %v1056 = vld [vmem:[%s363 + $0x850] sm:$0xff]
        %v1057 = vld [vmem:[%s363 + $0x858] sm:$0xff]
        %v1058 = vld [vmem:[%s363 + $0x860] sm:$0xff]
        %v1059 = vld [vmem:[%s363 + $0x868] sm:$0xff]
        %v1060 = vld [vmem:[%s363 + $0x870] sm:$0xff]
        %v1061 = vld [vmem:[%s363 + $0x878] sm:$0xff]
        %v1062 = vld [vmem:[%s363 + $0x880] sm:$0xff]
        %v1063 = vld [vmem:[%s363 + $0x888] sm:$0xff]
        %v1064 = vld [vmem:[%s363 + $0x890] sm:$0xff]
        %v1065 = vld [vmem:[%s363 + $0x898] sm:$0xff]
        %v1066 = vld [vmem:[%s363 + $0x8a0] sm:$0xff]
        %v1067 = vld [vmem:[%s363 + $0x8a8] sm:$0xff]
        %v1068 = vld [vmem:[%s363 + $0x8b0] sm:$0xff]
        %v1069 = vld [vmem:[%s363 + $0x8b8] sm:$0xff]
        %v1070 = vld [vmem:[%s363 + $0x8c0] sm:$0xff]
        %v1071 = vld [vmem:[%s363 + $0x8c8] sm:$0xff]
        %v1072 = vld [vmem:[%s363 + $0x8d0] sm:$0xff]
        %v1073 = vld [vmem:[%s363 + $0x8d8] sm:$0xff]
        %v1074 = vld [vmem:[%s363 + $0x8e0] sm:$0xff]
        %v1075 = vld [vmem:[%s363 + $0x8e8] sm:$0xff]
        %v1076 = vld [vmem:[%s363 + $0x8f0] sm:$0xff]
        %v1077 = vld [vmem:[%s363 + $0x8f8] sm:$0xff]
        %v1078 = vld [vmem:[%s363 + $0x900] sm:$0xff]
        %v1079 = vld [vmem:[%s363 + $0x908] sm:$0xff]
        %v1080 = vld [vmem:[%s363 + $0x910] sm:$0xff]
        %v1081 = vld [vmem:[%s363 + $0x918] sm:$0xff]
        %v1082 = vld [vmem:[%s363 + $0x920] sm:$0xff]
        %v1083 = vld [vmem:[%s363 + $0x928] sm:$0xff]
        %v1084 = vld [vmem:[%s363 + $0x930] sm:$0xff]
        %v1085 = vld [vmem:[%s363 + $0x938] sm:$0xff]
        %v1086 = vld [vmem:[%s363 + $0x940] sm:$0xff]
        %v1087 = vld [vmem:[%s363 + $0x948] sm:$0xff]
        %v1088 = vld [vmem:[%s363 + $0x950] sm:$0xff]
        %v1089 = vld [vmem:[%s363 + $0x958] sm:$0xff]
        %v1090 = vld [vmem:[%s363 + $0x960] sm:$0xff]
        %v1091 = vld [vmem:[%s363 + $0x968] sm:$0xff]
        %v1092 = vld [vmem:[%s363 + $0x970] sm:$0xff]
        %v1093 = vld [vmem:[%s363 + $0x978] sm:$0xff]
        %v1094 = vld [vmem:[%s363 + $0x980] sm:$0xff]
        %v1095 = vld [vmem:[%s363 + $0x988] sm:$0xff]
        %v1096 = vld [vmem:[%s363 + $0x990] sm:$0xff]
        %v1097 = vld [vmem:[%s363 + $0x998] sm:$0xff]
        %v1098 = vld [vmem:[%s363 + $0x9a0] sm:$0xff]
        %v1099 = vld [vmem:[%s363 + $0x9a8] sm:$0xff]
        %v1100 = vld [vmem:[%s363 + $0x9b0] sm:$0xff]
        %v1101 = vld [vmem:[%s363 + $0x9b8] sm:$0xff]
        %v1102 = vld [vmem:[%s363 + $0x9c0] sm:$0xff]
        %v1103 = vld [vmem:[%s363 + $0x9c8] sm:$0xff]
        %v1104 = vld [vmem:[%s363 + $0x9d0] sm:$0xff]
        %v1105 = vld [vmem:[%s363 + $0x9d8] sm:$0xff]
        %v1106 = vld [vmem:[%s363 + $0x9e0] sm:$0xff]
        %v1107 = vld [vmem:[%s363 + $0x9e8] sm:$0xff]
        %v1108 = vld [vmem:[%s363 + $0x9f0] sm:$0xff]
        %v1109 = vld [vmem:[%s363 + $0x9f8] sm:$0xff]
        %v1110 = vld [vmem:[%s363 + $0xa00] sm:$0xff]
        %v1111 = vld [vmem:[%s363 + $0xa08] sm:$0xff]
        %v1112 = vld [vmem:[%s363 + $0xa10] sm:$0xff]
        %v1113 = vld [vmem:[%s363 + $0xa18] sm:$0xff]
        %v1114 = vld [vmem:[%s363 + $0xa20] sm:$0xff]
        %v1115 = vld [vmem:[%s363 + $0xa28] sm:$0xff]
        %v1116 = vld [vmem:[%s363 + $0xa30] sm:$0xff]
        %v1117 = vld [vmem:[%s363 + $0xa38] sm:$0xff]
        %v1118 = vld [vmem:[%s363 + $0xa40] sm:$0xff]
        %v1119 = vld [vmem:[%s363 + $0xa48] sm:$0xff]
        %v1120 = vld [vmem:[%s363 + $0xa50] sm:$0xff]
        %v1121 = vld [vmem:[%s363 + $0xa58] sm:$0xff]
        %v1122 = vld [vmem:[%s363 + $0xa60] sm:$0xff]
        %v1123 = vld [vmem:[%s363 + $0xa68] sm:$0xff]
        %v1124 = vld [vmem:[%s363 + $0xa70] sm:$0xff]
        %v1125 = vld [vmem:[%s363 + $0xa78] sm:$0xff]
        %v1126 = vld [vmem:[%s363 + $0xa80] sm:$0xff]
        %v1127 = vld [vmem:[%s363 + $0xa88] sm:$0xff]
        %v1128 = vld [vmem:[%s363 + $0xa90] sm:$0xff]
        %v1129 = vld [vmem:[%s363 + $0xa98] sm:$0xff]
        %v1130 = vld [vmem:[%s363 + $0xaa0] sm:$0xff]
        %v1131 = vld [vmem:[%s363 + $0xaa8] sm:$0xff]
        %v1132 = vld [vmem:[%s363 + $0xab0] sm:$0xff]
        %v1133 = vld [vmem:[%s363 + $0xab8] sm:$0xff]
        %v1134 = vld [vmem:[%s363 + $0xac0] sm:$0xff]
        %v1135 = vld [vmem:[%s363 + $0xac8] sm:$0xff]
        %v1136 = vld [vmem:[%s363 + $0xad0] sm:$0xff]
        %v1137 = vld [vmem:[%s363 + $0xad8] sm:$0xff]
        %v1138 = vld [vmem:[%s363 + $0xae0] sm:$0xff]
        %v1139 = vld [vmem:[%s363 + $0xae8] sm:$0xff]
        %v1140 = vld [vmem:[%s363 + $0xaf0] sm:$0xff]
        %v1141 = vld [vmem:[%s363 + $0xaf8] sm:$0xff]
        %v1142 = vld [vmem:[%s363 + $0xb00] sm:$0xff]
        %v1143 = vld [vmem:[%s363 + $0xb08] sm:$0xff]
        %v1144 = vld [vmem:[%s363 + $0xb10] sm:$0xff]
        %v1145 = vld [vmem:[%s363 + $0xb18] sm:$0xff]
        %v1146 = vld [vmem:[%s363 + $0xb20] sm:$0xff]
        %v1147 = vld [vmem:[%s363 + $0xb28] sm:$0xff]
        %v1148 = vld [vmem:[%s363 + $0xb30] sm:$0xff]
        %v1149 = vld [vmem:[%s363 + $0xb38] sm:$0xff]
        %v1150 = vld [vmem:[%s363 + $0xb40] sm:$0xff]
        %v1151 = vld [vmem:[%s363 + $0xb48] sm:$0xff]
        %v1152 = vld [vmem:[%s363 + $0xb50] sm:$0xff]
        %v1153 = vld [vmem:[%s363 + $0xb58] sm:$0xff]
        %v1154 = vld [vmem:[%s363 + $0xb60] sm:$0xff]
        %v1155 = vld [vmem:[%s363 + $0xb68] sm:$0xff]
        %v1156 = vld [vmem:[%s363 + $0xb70] sm:$0xff]
        %v1157 = vld [vmem:[%s363 + $0xb78] sm:$0xff]
        %v1158 = vld [vmem:[%s363 + $0xb80] sm:$0xff]
        %v1159 = vld [vmem:[%s363 + $0xb88] sm:$0xff]
        %v1160 = vld [vmem:[%s363 + $0xb90] sm:$0xff]
        %v1161 = vld [vmem:[%s363 + $0xb98] sm:$0xff]
        %v1162 = vld [vmem:[%s363 + $0xba0] sm:$0xff]
        %v1163 = vld [vmem:[%s363 + $0xba8] sm:$0xff]
        %v1164 = vld [vmem:[%s363 + $0xbb0] sm:$0xff]
        %v1165 = vld [vmem:[%s363 + $0xbb8] sm:$0xff]
        %v1166 = vld [vmem:[%s363 + $0xbc0] sm:$0xff]
        %v1167 = vld [vmem:[%s363 + $0xbc8] sm:$0xff]
        %v1168 = vld [vmem:[%s363 + $0xbd0] sm:$0xff]
        %v1169 = vld [vmem:[%s363 + $0xbd8] sm:$0xff]
        %v1170 = vld [vmem:[%s363 + $0xbe0] sm:$0xff]
        %v1171 = vld [vmem:[%s363 + $0xbe8] sm:$0xff]
        %v1172 = vld [vmem:[%s363 + $0xbf0] sm:$0xff]
        %v1173 = vld [vmem:[%s363 + $0xbf8] sm:$0xff]
        %v1174 = vld [vmem:[%s363 + $0xc00] sm:$0xff]
        %v1175 = vld [vmem:[%s363 + $0xc08] sm:$0xff]
        %v1176 = vld [vmem:[%s363 + $0xc10] sm:$0xff]
        %v1177 = vld [vmem:[%s363 + $0xc18] sm:$0xff]
        %v1178 = vld [vmem:[%s363 + $0xc20] sm:$0xff]
        %v1179 = vld [vmem:[%s363 + $0xc28] sm:$0xff]
        %v1180 = vld [vmem:[%s363 + $0xc30] sm:$0xff]
        %v1181 = vld [vmem:[%s363 + $0xc38] sm:$0xff]
        %v1182 = vld [vmem:[%s363 + $0xc40] sm:$0xff]
        %v1183 = vld [vmem:[%s363 + $0xc48] sm:$0xff]
        %v1184 = vld [vmem:[%s363 + $0xc50] sm:$0xff]
        %v1185 = vld [vmem:[%s363 + $0xc58] sm:$0xff]
        %v1186 = vld [vmem:[%s363 + $0xc60] sm:$0xff]
        %v1187 = vld [vmem:[%s363 + $0xc68] sm:$0xff]
        %v1188 = vld [vmem:[%s363 + $0xc70] sm:$0xff]
        %v1189 = vld [vmem:[%s363 + $0xc78] sm:$0xff]
        %v1190 = vld [vmem:[%s363 + $0xc80] sm:$0xff]
        %v1191 = vld [vmem:[%s363 + $0xc88] sm:$0xff]
        %v1192 = vld [vmem:[%s363 + $0xc90] sm:$0xff]
        %v1193 = vld [vmem:[%s363 + $0xc98] sm:$0xff]
        %v1194 = vld [vmem:[%s363 + $0xca0] sm:$0xff]
        %v1195 = vld [vmem:[%s363 + $0xca8] sm:$0xff]
        %v1196 = vld [vmem:[%s363 + $0xcb0] sm:$0xff]
        %v1197 = vld [vmem:[%s363 + $0xcb8] sm:$0xff]
        %v1198 = vld [vmem:[%s363 + $0xcc0] sm:$0xff]
        %v1199 = vld [vmem:[%s363 + $0xcc8] sm:$0xff]
        %v1200 = vld [vmem:[%s363 + $0xcd0] sm:$0xff]
        %v1201 = vld [vmem:[%s363 + $0xcd8] sm:$0xff]
        %v1202 = vld [vmem:[%s363 + $0xce0] sm:$0xff]
        %v1203 = vld [vmem:[%s363 + $0xce8] sm:$0xff]
        %v1204 = vld [vmem:[%s363 + $0xcf0] sm:$0xff]
        %v1205 = vld [vmem:[%s363 + $0xcf8] sm:$0xff]
        %v1206 = vld [vmem:[%s363 + $0xd00] sm:$0xff]
        %v1207 = vld [vmem:[%s363 + $0xd08] sm:$0xff]
        %v1208 = vld [vmem:[%s363 + $0xd10] sm:$0xff]
        %v1209 = vld [vmem:[%s363 + $0xd18] sm:$0xff]
        %v1210 = vld [vmem:[%s363 + $0xd20] sm:$0xff]
        %v1211 = vld [vmem:[%s363 + $0xd28] sm:$0xff]
        %v1212 = vld [vmem:[%s363 + $0xd30] sm:$0xff]
        %v1213 = vld [vmem:[%s363 + $0xd38] sm:$0xff]
        %v1214 = vld [vmem:[%s363 + $0xd40] sm:$0xff]
        %v1215 = vld [vmem:[%s363 + $0xd48] sm:$0xff]
        %v1216 = vld [vmem:[%s363 + $0xd50] sm:$0xff]
        %v1217 = vld [vmem:[%s363 + $0xd58] sm:$0xff]
        %v1218 = vld [vmem:[%s363 + $0xd60] sm:$0xff]
        %v1219 = vld [vmem:[%s363 + $0xd68] sm:$0xff]
        %v1220 = vld [vmem:[%s363 + $0xd70] sm:$0xff]
        %v1221 = vld [vmem:[%s363 + $0xd78] sm:$0xff]
        %v1222 = vld [vmem:[%s363 + $0xd80] sm:$0xff]
        %v1223 = vld [vmem:[%s363 + $0xd88] sm:$0xff]
        %v1224 = vld [vmem:[%s363 + $0xd90] sm:$0xff]
        %v1225 = vld [vmem:[%s363 + $0xd98] sm:$0xff]
        %v1226 = vld [vmem:[%s363 + $0xda0] sm:$0xff]
        %v1227 = vld [vmem:[%s363 + $0xda8] sm:$0xff]
        %v1228 = vld [vmem:[%s363 + $0xdb0] sm:$0xff]
        %v1229 = vld [vmem:[%s363 + $0xdb8] sm:$0xff]
        %v1230 = vld [vmem:[%s363 + $0xdc0] sm:$0xff]
        %v1231 = vld [vmem:[%s363 + $0xdc8] sm:$0xff]
        %v1232 = vld [vmem:[%s363 + $0xdd0] sm:$0xff]
        %v1233 = vld [vmem:[%s363 + $0xdd8] sm:$0xff]
        %v1234 = vld [vmem:[%s363 + $0xde0] sm:$0xff]
        %v1235 = vld [vmem:[%s363 + $0xde8] sm:$0xff]
        %v1236 = vld [vmem:[%s363 + $0xdf0] sm:$0xff]
        %v1237 = vld [vmem:[%s363 + $0xdf8] sm:$0xff]
        %v1238 = vld [vmem:[%s363 + $0xe00] sm:$0xff]
        %v1239 = vld [vmem:[%s363 + $0xe08] sm:$0xff]
        %v1240 = vld [vmem:[%s363 + $0xe10] sm:$0xff]
        %v1241 = vld [vmem:[%s363 + $0xe18] sm:$0xff]
        %v1242 = vld [vmem:[%s363 + $0xe20] sm:$0xff]
        %v1243 = vld [vmem:[%s363 + $0xe28] sm:$0xff]
        %v1244 = vld [vmem:[%s363 + $0xe30] sm:$0xff]
        %v1245 = vld [vmem:[%s363 + $0xe38] sm:$0xff]
        %v1246 = vld [vmem:[%s363 + $0xe40] sm:$0xff]
        %v1247 = vld [vmem:[%s363 + $0xe48] sm:$0xff]
        %v1248 = vld [vmem:[%s363 + $0xe50] sm:$0xff]
        %v1249 = vld [vmem:[%s363 + $0xe58] sm:$0xff]
        %v1250 = vld [vmem:[%s363 + $0xe60] sm:$0xff]
        %v1251 = vld [vmem:[%s363 + $0xe68] sm:$0xff]
        %v1252 = vld [vmem:[%s363 + $0xe70] sm:$0xff]
        %v1253 = vld [vmem:[%s363 + $0xe78] sm:$0xff]
        %v1254 = vld [vmem:[%s363 + $0xe80] sm:$0xff]
        %v1255 = vld [vmem:[%s363 + $0xe88] sm:$0xff]
        %v1256 = vld [vmem:[%s363 + $0xe90] sm:$0xff]
        %v1257 = vld [vmem:[%s363 + $0xe98] sm:$0xff]
        %v1258 = vld [vmem:[%s363 + $0xea0] sm:$0xff]
        %v1259 = vld [vmem:[%s363 + $0xea8] sm:$0xff]
        %v1260 = vld [vmem:[%s363 + $0xeb0] sm:$0xff]
        %v1261 = vld [vmem:[%s363 + $0xeb8] sm:$0xff]
        %v1262 = vld [vmem:[%s363 + $0xec0] sm:$0xff]
        %v1263 = vld [vmem:[%s363 + $0xec8] sm:$0xff]
        %v1264 = vld [vmem:[%s363 + $0xed0] sm:$0xff]
        %v1265 = vld [vmem:[%s363 + $0xed8] sm:$0xff]
        %v1266 = vld [vmem:[%s363 + $0xee0] sm:$0xff]
        %v1267 = vld [vmem:[%s363 + $0xee8] sm:$0xff]
        %v1268 = vld [vmem:[%s363 + $0xef0] sm:$0xff]
        %v1269 = vld [vmem:[%s363 + $0xef8] sm:$0xff]
        %v1270 = vld [vmem:[%s363 + $0xf00] sm:$0xff]
        %v1271 = vld [vmem:[%s363 + $0xf08] sm:$0xff]
        %v1272 = vld [vmem:[%s363 + $0xf10] sm:$0xff]
        %v1273 = vld [vmem:[%s363 + $0xf18] sm:$0xff]
        %v1274 = vld [vmem:[%s363 + $0xf20] sm:$0xff]
        %v1275 = vld [vmem:[%s363 + $0xf28] sm:$0xff]
        %v1276 = vld [vmem:[%s363 + $0xf30] sm:$0xff]
        %v1277 = vld [vmem:[%s363 + $0xf38] sm:$0xff]
        %v1278 = vld [vmem:[%s363 + $0xf40] sm:$0xff]
        %v1279 = vld [vmem:[%s363 + $0xf48] sm:$0xff]
        %v1280 = vld [vmem:[%s363 + $0xf50] sm:$0xff]
        %v1281 = vld [vmem:[%s363 + $0xf58] sm:$0xff]
        %v1282 = vld [vmem:[%s363 + $0xf60] sm:$0xff]
        %v1283 = vld [vmem:[%s363 + $0xf68] sm:$0xff]
        %v1284 = vld [vmem:[%s363 + $0xf70] sm:$0xff]
        %v1285 = vld [vmem:[%s363 + $0xf78] sm:$0xff]
        %v1286 = vld [vmem:[%s363 + $0xf80] sm:$0xff]
        %v1287 = vld [vmem:[%s363 + $0xf88] sm:$0xff]
        %v1288 = vld [vmem:[%s363 + $0xf90] sm:$0xff]
        %v1289 = vld [vmem:[%s363 + $0xf98] sm:$0xff]
        %v1290 = vld [vmem:[%s363 + $0xfa0] sm:$0xff]
        %v1291 = vld [vmem:[%s363 + $0xfa8] sm:$0xff]
        %v1292 = vld [vmem:[%s363 + $0xfb0] sm:$0xff]
        %v1293 = vld [vmem:[%s363 + $0xfb8] sm:$0xff]
        %v1294 = vld [vmem:[%s363 + $0xfc0] sm:$0xff]
        %v1295 = vld [vmem:[%s363 + $0xfc8] sm:$0xff]
        %v1296 = vld [vmem:[%s363 + $0xfd0] sm:$0xff]
        %v1297 = vld [vmem:[%s363 + $0xfd8] sm:$0xff]
        %v1298 = vld [vmem:[%s363 + $0xfe0] sm:$0xff]
        %v1299 = vld [vmem:[%s363 + $0xfe8] sm:$0xff]
        %v1300 = vld [vmem:[%s363 + $0xff0] sm:$0xff]
        %v1301 = vld [vmem:[%s363 + $0xff8] sm:$0xff]
        %v1302 = vld [vmem:[%s363 + $0x1000] sm:$0xff]
        %v1303 = vld [vmem:[%s363 + $0x1008] sm:$0xff]
        %v1304 = vld [vmem:[%s363 + $0x1010] sm:$0xff]
        %v1305 = vld [vmem:[%s363 + $0x1018] sm:$0xff]
        %v1306 = vld [vmem:[%s363 + $0x1020] sm:$0xff]
        %v1307 = vld [vmem:[%s363 + $0x1028] sm:$0xff]
        %v1308 = vld [vmem:[%s363 + $0x1030] sm:$0xff]
        %v1309 = vld [vmem:[%s363 + $0x1038] sm:$0xff]
        %v1310 = vld [vmem:[%s363 + $0x1040] sm:$0xff]
        %v1311 = vld [vmem:[%s363 + $0x1048] sm:$0xff]
        %v1312 = vld [vmem:[%s363 + $0x1050] sm:$0xff]
        %v1313 = vld [vmem:[%s363 + $0x1058] sm:$0xff]
        %v1314 = vld [vmem:[%s363 + $0x1060] sm:$0xff]
        %v1315 = vld [vmem:[%s363 + $0x1068] sm:$0xff]
        %v1316 = vld [vmem:[%s363 + $0x1070] sm:$0xff]
        %v1317 = vld [vmem:[%s363 + $0x1078] sm:$0xff]
        %v1318 = vld [vmem:[%s363 + $0x1080] sm:$0xff]
        %v1319 = vld [vmem:[%s363 + $0x1088] sm:$0xff]
        %v1320 = vld [vmem:[%s363 + $0x1090] sm:$0xff]
        %v1321 = vld [vmem:[%s363 + $0x1098] sm:$0xff]
        %v1322 = vld [vmem:[%s363 + $0x10a0] sm:$0xff]
        %v1323 = vld [vmem:[%s363 + $0x10a8] sm:$0xff]
        %v1324 = vld [vmem:[%s363 + $0x10b0] sm:$0xff]
        %v1325 = vld [vmem:[%s363 + $0x10b8] sm:$0xff]
        %v1326 = vld [vmem:[%s363 + $0x10c0] sm:$0xff]
        %v1327 = vld [vmem:[%s363 + $0x10c8] sm:$0xff]
        %v1328 = vld [vmem:[%s363 + $0x10d0] sm:$0xff]
        %v1329 = vld [vmem:[%s363 + $0x10d8] sm:$0xff]
        %v1330 = vld [vmem:[%s363 + $0x10e0] sm:$0xff]
        %v1331 = vld [vmem:[%s363 + $0x10e8] sm:$0xff]
        %v1332 = vld [vmem:[%s363 + $0x10f0] sm:$0xff]
        %v1333 = vld [vmem:[%s363 + $0x10f8] sm:$0xff]
        %v1334 = vld [vmem:[%s363 + $0x1100] sm:$0xff]
        %v1335 = vld [vmem:[%s363 + $0x1108] sm:$0xff]
        %v1336 = vld [vmem:[%s363 + $0x1110] sm:$0xff]
        %v1337 = vld [vmem:[%s363 + $0x1118] sm:$0xff]
        %v1338 = vld [vmem:[%s363 + $0x1120] sm:$0xff]
        %v1339 = vld [vmem:[%s363 + $0x1128] sm:$0xff]
        %v1340 = vld [vmem:[%s363 + $0x1130] sm:$0xff]
        %v1341 = vld [vmem:[%s363 + $0x1138] sm:$0xff]
        %v1342 = vld [vmem:[%s363 + $0x1140] sm:$0xff]
        %v1343 = vld [vmem:[%s363 + $0x1148] sm:$0xff]
        %v1344 = vld [vmem:[%s363 + $0x1150] sm:$0xff]
        %v1345 = vld [vmem:[%s363 + $0x1158] sm:$0xff]
        %v1346 = vld [vmem:[%s363 + $0x1160] sm:$0xff]
        %v1347 = vld [vmem:[%s363 + $0x1168] sm:$0xff]
        %v1348 = vld [vmem:[%s363 + $0x1170] sm:$0xff]
        %v1349 = vld [vmem:[%s363 + $0x1178] sm:$0xff]
        %v1350 = vld [vmem:[%s363 + $0x1180] sm:$0xff]
        %v1351 = vld [vmem:[%s363 + $0x1188] sm:$0xff]
        %v1352 = vld [vmem:[%s363 + $0x1190] sm:$0xff]
        %v1353 = vld [vmem:[%s363 + $0x1198] sm:$0xff]
        %v1354 = vld [vmem:[%s363 + $0x11a0] sm:$0xff]
        %v1355 = vld [vmem:[%s363 + $0x11a8] sm:$0xff]
        %v1356 = vld [vmem:[%s363 + $0x11b0] sm:$0xff]
        %v1357 = vld [vmem:[%s363 + $0x11b8] sm:$0xff]
        %v1358 = vld [vmem:[%s363 + $0x11c0] sm:$0xff]
        %v1359 = vld [vmem:[%s363 + $0x11c8] sm:$0xff]
        %v1360 = vld [vmem:[%s363 + $0x11d0] sm:$0xff]
        %v1361 = vld [vmem:[%s363 + $0x11d8] sm:$0xff]
        %v1362 = vld [vmem:[%s363 + $0x11e0] sm:$0xff]
        %v1363 = vld [vmem:[%s363 + $0x11e8] sm:$0xff]
        %v1364 = vld [vmem:[%s363 + $0x11f0] sm:$0xff]
        %v1365 = vld [vmem:[%s363 + $0x11f8] sm:$0xff]
        %v1366 = vld [vmem:[%s363 + $0x1200] sm:$0xff]
        %v1367 = vld [vmem:[%s363 + $0x1208] sm:$0xff]
        %v1368 = vld [vmem:[%s363 + $0x1210] sm:$0xff]
        %v1369 = vld [vmem:[%s363 + $0x1218] sm:$0xff]
        %v1370 = vld [vmem:[%s363 + $0x1220] sm:$0xff]
        %v1371 = vld [vmem:[%s363 + $0x1228] sm:$0xff]
        %v1372 = vld [vmem:[%s363 + $0x1230] sm:$0xff]
        %v1373 = vld [vmem:[%s363 + $0x1238] sm:$0xff]
        %v1374 = vld [vmem:[%s363 + $0x1240] sm:$0xff]
        %v1375 = vld [vmem:[%s363 + $0x1248] sm:$0xff]
        %v1376 = vld [vmem:[%s363 + $0x1250] sm:$0xff]
        %v1377 = vld [vmem:[%s363 + $0x1258] sm:$0xff]
        %v1378 = vld [vmem:[%s363 + $0x1260] sm:$0xff]
        %v1379 = vld [vmem:[%s363 + $0x1268] sm:$0xff]
        %v1380 = vld [vmem:[%s363 + $0x1270] sm:$0xff]
        %v1381 = vld [vmem:[%s363 + $0x1278] sm:$0xff]
        %v1382 = vld [vmem:[%s363 + $0x1280] sm:$0xff]
        %v1383 = vld [vmem:[%s363 + $0x1288] sm:$0xff]
        %v1384 = vld [vmem:[%s363 + $0x1290] sm:$0xff]
        %v1385 = vld [vmem:[%s363 + $0x1298] sm:$0xff]
        %v1386 = vld [vmem:[%s363 + $0x12a0] sm:$0xff]
        %v1387 = vld [vmem:[%s363 + $0x12a8] sm:$0xff]
        %v1388 = vld [vmem:[%s363 + $0x12b0] sm:$0xff]
        %v1389 = vld [vmem:[%s363 + $0x12b8] sm:$0xff]
        %v1390 = vld [vmem:[%s363 + $0x12c0] sm:$0xff]
        %v1391 = vld [vmem:[%s363 + $0x12c8] sm:$0xff]
        %v1392 = vld [vmem:[%s363 + $0x12d0] sm:$0xff]
        %v1393 = vld [vmem:[%s363 + $0x12d8] sm:$0xff]
        %v1394 = vld [vmem:[%s363 + $0x12e0] sm:$0xff]
        %v1395 = vld [vmem:[%s363 + $0x12e8] sm:$0xff]
        %v1396 = vld [vmem:[%s363 + $0x12f0] sm:$0xff]
        %v1397 = vld [vmem:[%s363 + $0x12f8] sm:$0xff]
        %v1398 = vld [vmem:[%s363 + $0x1300] sm:$0xff]
        %v1399 = vld [vmem:[%s363 + $0x1308] sm:$0xff]
        %v1400 = vld [vmem:[%s363 + $0x1310] sm:$0xff]
        %v1401 = vld [vmem:[%s363 + $0x1318] sm:$0xff]
        %v1402 = vld [vmem:[%s363 + $0x1320] sm:$0xff]
        %v1403 = vld [vmem:[%s363 + $0x1328] sm:$0xff]
        %v1404 = vld [vmem:[%s363 + $0x1330] sm:$0xff]
        %v1405 = vld [vmem:[%s363 + $0x1338] sm:$0xff]
        %v1406 = vld [vmem:[%s363 + $0x1340] sm:$0xff]
        %v1407 = vld [vmem:[%s363 + $0x1348] sm:$0xff]
        %v1408 = vld [vmem:[%s363 + $0x1350] sm:$0xff]
        %v1409 = vld [vmem:[%s363 + $0x1358] sm:$0xff]
        %v1410 = vld [vmem:[%s363 + $0x1360] sm:$0xff]
        %v1411 = vld [vmem:[%s363 + $0x1368] sm:$0xff]
        %v1412 = vld [vmem:[%s363 + $0x1370] sm:$0xff]
        %v1413 = vld [vmem:[%s363 + $0x1378] sm:$0xff]
        %v1414 = vld [vmem:[%s363 + $0x1380] sm:$0xff]
        %v1415 = vld [vmem:[%s363 + $0x1388] sm:$0xff]
        %v1416 = vld [vmem:[%s363 + $0x1390] sm:$0xff]
        %v1417 = vld [vmem:[%s363 + $0x1398] sm:$0xff]
        %v1418 = vld [vmem:[%s363 + $0x13a0] sm:$0xff]
        %v1419 = vld [vmem:[%s363 + $0x13a8] sm:$0xff]
        %v1420 = vld [vmem:[%s363 + $0x13b0] sm:$0xff]
        %v1421 = vld [vmem:[%s363 + $0x13b8] sm:$0xff]
        %v1422 = vld [vmem:[%s363 + $0x13c0] sm:$0xff]
        %v1423 = vld [vmem:[%s363 + $0x13c8] sm:$0xff]
        %v1424 = vld [vmem:[%s363 + $0x13d0] sm:$0xff]
        %v1425 = vld [vmem:[%s363 + $0x13d8] sm:$0xff]
        %v1426 = vld [vmem:[%s363 + $0x13e0] sm:$0xff]
        %v1427 = vld [vmem:[%s363 + $0x13e8] sm:$0xff]
        %v1428 = vld [vmem:[%s363 + $0x13f0] sm:$0xff]
        %v1429 = vld [vmem:[%s363 + $0x13f8] sm:$0xff]
        %v1430 = vld [vmem:[%s363 + $0x1400] sm:$0xff]
        %v1431 = vld [vmem:[%s363 + $0x1408] sm:$0xff]
        %v1432 = vld [vmem:[%s363 + $0x1410] sm:$0xff]
        %v1433 = vld [vmem:[%s363 + $0x1418] sm:$0xff]
        %v1434 = vld [vmem:[%s363 + $0x1420] sm:$0xff]
        %v1435 = vld [vmem:[%s363 + $0x1428] sm:$0xff]
        %v1436 = vld [vmem:[%s363 + $0x1430] sm:$0xff]
        %v1437 = vld [vmem:[%s363 + $0x1438] sm:$0xff]
        %v1438 = vld [vmem:[%s363 + $0x1440] sm:$0xff]
        %v1439 = vld [vmem:[%s363 + $0x1448] sm:$0xff]
        %v1440 = vld [vmem:[%s363 + $0x1450] sm:$0xff]
        %v1441 = vld [vmem:[%s363 + $0x1458] sm:$0xff]
        %v1442 = vld [vmem:[%s363 + $0x1460] sm:$0xff]
        %v1443 = vld [vmem:[%s363 + $0x1468] sm:$0xff]
        %v1444 = vld [vmem:[%s363 + $0x1470] sm:$0xff]
        %v1445 = vld [vmem:[%s363 + $0x1478] sm:$0xff]
        %v1446 = vld [vmem:[%s363 + $0x1480] sm:$0xff]
        %v1447 = vld [vmem:[%s363 + $0x1488] sm:$0xff]
        %v1448 = vld [vmem:[%s363 + $0x1490] sm:$0xff]
        %v1449 = vld [vmem:[%s363 + $0x1498] sm:$0xff]
        %v1450 = vld [vmem:[%s363 + $0x14a0] sm:$0xff]
        %v1451 = vld [vmem:[%s363 + $0x14a8] sm:$0xff]
        %v1452 = vld [vmem:[%s363 + $0x14b0] sm:$0xff]
        %v1453 = vld [vmem:[%s363 + $0x14b8] sm:$0xff]
        %v1454 = vld [vmem:[%s363 + $0x14c0] sm:$0xff]
        %v1455 = vld [vmem:[%s363 + $0x14c8] sm:$0xff]
        %v1456 = vld [vmem:[%s363 + $0x14d0] sm:$0xff]
        %v1457 = vld [vmem:[%s363 + $0x14d8] sm:$0xff]
        %v1458 = vld [vmem:[%s363 + $0x14e0] sm:$0xff]
        %v1459 = vld [vmem:[%s363 + $0x14e8] sm:$0xff]
        %v1460 = vld [vmem:[%s363 + $0x14f0] sm:$0xff]
        %v1461 = vld [vmem:[%s363 + $0x14f8] sm:$0xff]
        %v1462 = vld [vmem:[%s363 + $0x1500] sm:$0xff]
        %v1463 = vld [vmem:[%s363 + $0x1508] sm:$0xff]
        %v1464 = vld [vmem:[%s363 + $0x1510] sm:$0xff]
        %v1465 = vld [vmem:[%s363 + $0x1518] sm:$0xff]
        %v1466 = vld [vmem:[%s363 + $0x1520] sm:$0xff]
        %v1467 = vld [vmem:[%s363 + $0x1528] sm:$0xff]
        %v1468 = vld [vmem:[%s363 + $0x1530] sm:$0xff]
        %v1469 = vld [vmem:[%s363 + $0x1538] sm:$0xff]
        %v1470 = vld [vmem:[%s363 + $0x1540] sm:$0xff]
        %v1471 = vld [vmem:[%s363 + $0x1548] sm:$0xff]
        %v1472 = vld [vmem:[%s363 + $0x1550] sm:$0xff]
        %v1473 = vld [vmem:[%s363 + $0x1558] sm:$0xff]
        %v1474 = vld [vmem:[%s363 + $0x1560] sm:$0xff]
        %v1475 = vld [vmem:[%s363 + $0x1568] sm:$0xff]
        %v1476 = vld [vmem:[%s363 + $0x1570] sm:$0xff]
        %v1477 = vld [vmem:[%s363 + $0x1578] sm:$0xff]
        %v1478 = vld [vmem:[%s363 + $0x1580] sm:$0xff]
        %v1479 = vld [vmem:[%s363 + $0x1588] sm:$0xff]
        %v1480 = vld [vmem:[%s363 + $0x1590] sm:$0xff]
        %v1481 = vld [vmem:[%s363 + $0x1598] sm:$0xff]
        %v1482 = vld [vmem:[%s363 + $0x15a0] sm:$0xff]
        %v1483 = vld [vmem:[%s363 + $0x15a8] sm:$0xff]
        %v1484 = vld [vmem:[%s363 + $0x15b0] sm:$0xff]
        %v1485 = vld [vmem:[%s363 + $0x15b8] sm:$0xff]
        %v1486 = vld [vmem:[%s363 + $0x15c0] sm:$0xff]
        %v1487 = vld [vmem:[%s363 + $0x15c8] sm:$0xff]
        %v1488 = vld [vmem:[%s363 + $0x15d0] sm:$0xff]
        %v1489 = vld [vmem:[%s363 + $0x15d8] sm:$0xff]
        %v1490 = vld [vmem:[%s363 + $0x15e0] sm:$0xff]
        %v1491 = vld [vmem:[%s363 + $0x15e8] sm:$0xff]
        %v1492 = vld [vmem:[%s363 + $0x15f0] sm:$0xff]
        %v1493 = vld [vmem:[%s363 + $0x15f8] sm:$0xff]
        %v1494 = vld [vmem:[%s363 + $0x1600] sm:$0xff]
        %v1495 = vld [vmem:[%s363 + $0x1608] sm:$0xff]
        %v1496 = vld [vmem:[%s363 + $0x1610] sm:$0xff]
        %v1497 = vld [vmem:[%s363 + $0x1618] sm:$0xff]
        %v1498 = vld [vmem:[%s363 + $0x1620] sm:$0xff]
        %v1499 = vld [vmem:[%s363 + $0x1628] sm:$0xff]
        %v1500 = vld [vmem:[%s363 + $0x1630] sm:$0xff]
        %v1501 = vld [vmem:[%s363 + $0x1638] sm:$0xff]
        %v1502 = vld [vmem:[%s363 + $0x1640] sm:$0xff]
        %v1503 = vld [vmem:[%s363 + $0x1648] sm:$0xff]
        %v1504 = vld [vmem:[%s363 + $0x1650] sm:$0xff]
        %v1505 = vld [vmem:[%s363 + $0x1658] sm:$0xff]
        %v1506 = vld [vmem:[%s363 + $0x1660] sm:$0xff]
        %v1507 = vld [vmem:[%s363 + $0x1668] sm:$0xff]
        %v1508 = vld [vmem:[%s363 + $0x1670] sm:$0xff]
        %v1509 = vld [vmem:[%s363 + $0x1678] sm:$0xff]
        %v1510 = vld [vmem:[%s363 + $0x1680] sm:$0xff]
        %v1511 = vld [vmem:[%s363 + $0x1688] sm:$0xff]
        %v1512 = vld [vmem:[%s363 + $0x1690] sm:$0xff]
        %v1513 = vld [vmem:[%s363 + $0x1698] sm:$0xff]
        %v1514 = vld [vmem:[%s363 + $0x16a0] sm:$0xff]
        %v1515 = vld [vmem:[%s363 + $0x16a8] sm:$0xff]
        %v1516 = vld [vmem:[%s363 + $0x16b0] sm:$0xff]
        %v1517 = vld [vmem:[%s363 + $0x16b8] sm:$0xff]
        %v1518 = vld [vmem:[%s363 + $0x16c0] sm:$0xff]
        %v1519 = vld [vmem:[%s363 + $0x16c8] sm:$0xff]
        %v1520 = vld [vmem:[%s363 + $0x16d0] sm:$0xff]
        %v1521 = vld [vmem:[%s363 + $0x16d8] sm:$0xff]
        %v1522 = vld [vmem:[%s363 + $0x16e0] sm:$0xff]
        %v1523 = vld [vmem:[%s363 + $0x16e8] sm:$0xff]
        %v1524 = vld [vmem:[%s363 + $0x16f0] sm:$0xff]
        %v1525 = vld [vmem:[%s363 + $0x16f8] sm:$0xff]
        %v1526 = vld [vmem:[%s363 + $0x1700] sm:$0xff]
        %v1527 = vld [vmem:[%s363 + $0x1708] sm:$0xff]
        %v1528 = vld [vmem:[%s363 + $0x1710] sm:$0xff]
        %v1529 = vld [vmem:[%s363 + $0x1718] sm:$0xff]
        %v1530 = vld [vmem:[%s363 + $0x1720] sm:$0xff]
        %v1531 = vld [vmem:[%s363 + $0x1728] sm:$0xff]
        %v1532 = vld [vmem:[%s363 + $0x1730] sm:$0xff]
        %v1533 = vld [vmem:[%s363 + $0x1738] sm:$0xff]
        %v1534 = vld [vmem:[%s363 + $0x1740] sm:$0xff]
        %v1535 = vld [vmem:[%s363 + $0x1748] sm:$0xff]
        %v1536 = vld [vmem:[%s363 + $0x1750] sm:$0xff]
        %v1537 = vld [vmem:[%s363 + $0x1758] sm:$0xff]
        %v1538 = vld [vmem:[%s363 + $0x1760] sm:$0xff]
        %v1539 = vld [vmem:[%s363 + $0x1768] sm:$0xff]
        %v1540 = vld [vmem:[%s363 + $0x1770] sm:$0xff]
        %v1541 = vld [vmem:[%s363 + $0x1778] sm:$0xff]
        %v1542 = vld [vmem:[%s363 + $0x1780] sm:$0xff]
        %v1543 = vld [vmem:[%s363 + $0x1788] sm:$0xff]
        %v1544 = vld [vmem:[%s363 + $0x1790] sm:$0xff]
        %v1545 = vld [vmem:[%s363 + $0x1798] sm:$0xff]
        %v1546 = vld [vmem:[%s363 + $0x17a0] sm:$0xff]
        %v1547 = vld [vmem:[%s363 + $0x17a8] sm:$0xff]
        %v1548 = vld [vmem:[%s363 + $0x17b0] sm:$0xff]
        %v1549 = vld [vmem:[%s363 + $0x17b8] sm:$0xff]
        %v1550 = vld [vmem:[%s363 + $0x17c0] sm:$0xff]
        %v1551 = vld [vmem:[%s363 + $0x17c8] sm:$0xff]
        %v1552 = vld [vmem:[%s363 + $0x17d0] sm:$0xff]
        %v1553 = vld [vmem:[%s363 + $0x17d8] sm:$0xff]
        %v1554 = vld [vmem:[%s363 + $0x17e0] sm:$0xff]
        %v1555 = vld [vmem:[%s363 + $0x17e8] sm:$0xff]
        %v1556 = vld [vmem:[%s363 + $0x17f0] sm:$0xff]
        %v1557 = vld [vmem:[%s363 + $0x17f8] sm:$0xff]
        %v1558 = vld [vmem:[%s363 + $0x1800] sm:$0xff]
        %v1559 = vld [vmem:[%s363 + $0x1808] sm:$0xff]
        %v1560 = vld [vmem:[%s363 + $0x1810] sm:$0xff]
        %v1561 = vld [vmem:[%s363 + $0x1818] sm:$0xff]
        %v1562 = vld [vmem:[%s363 + $0x1820] sm:$0xff]
        %v1563 = vld [vmem:[%s363 + $0x1828] sm:$0xff]
        %v1564 = vld [vmem:[%s363 + $0x1830] sm:$0xff]
        %v1565 = vld [vmem:[%s363 + $0x1838] sm:$0xff]
        %v1566 = vld [vmem:[%s363 + $0x1840] sm:$0xff]
        %v1567 = vld [vmem:[%s363 + $0x1848] sm:$0xff]
        %v1568 = vld [vmem:[%s363 + $0x1850] sm:$0xff]
        %v1569 = vld [vmem:[%s363 + $0x1858] sm:$0xff]
        %v1570 = vld [vmem:[%s363 + $0x1860] sm:$0xff]
        %v1571 = vld [vmem:[%s363 + $0x1868] sm:$0xff]
        %v1572 = vld [vmem:[%s363 + $0x1870] sm:$0xff]
        %v1573 = vld [vmem:[%s363 + $0x1878] sm:$0xff]
        %v1574 = vld [vmem:[%s363 + $0x1880] sm:$0xff]
        %v1575 = vld [vmem:[%s363 + $0x1888] sm:$0xff]
        %v1576 = vld [vmem:[%s363 + $0x1890] sm:$0xff]
        %v1577 = vld [vmem:[%s363 + $0x1898] sm:$0xff]
        %v1578 = vld [vmem:[%s363 + $0x18a0] sm:$0xff]
        %v1579 = vld [vmem:[%s363 + $0x18a8] sm:$0xff]
        %v1580 = vld [vmem:[%s363 + $0x18b0] sm:$0xff]
        %v1581 = vld [vmem:[%s363 + $0x18b8] sm:$0xff]
        %v1582 = vld [vmem:[%s363 + $0x18c0] sm:$0xff]
        %v1583 = vld [vmem:[%s363 + $0x18c8] sm:$0xff]
        %v1584 = vld [vmem:[%s363 + $0x18d0] sm:$0xff]
        %v1585 = vld [vmem:[%s363 + $0x18d8] sm:$0xff]
        %v1586 = vld [vmem:[%s363 + $0x18e0] sm:$0xff]
        %v1587 = vld [vmem:[%s363 + $0x18e8] sm:$0xff]
        %v1588 = vld [vmem:[%s363 + $0x18f0] sm:$0xff]
        %v1589 = vld [vmem:[%s363 + $0x18f8] sm:$0xff]
        %v1590 = vld [vmem:[%s363 + $0x1900] sm:$0xff]
        %v1591 = vld [vmem:[%s363 + $0x1908] sm:$0xff]
        %v1592 = vld [vmem:[%s363 + $0x1910] sm:$0xff]
        %v1593 = vld [vmem:[%s363 + $0x1918] sm:$0xff]
        %v1594 = vld [vmem:[%s363 + $0x1920] sm:$0xff]
        %v1595 = vld [vmem:[%s363 + $0x1928] sm:$0xff]
        %v1596 = vld [vmem:[%s363 + $0x1930] sm:$0xff]
        %v1597 = vld [vmem:[%s363 + $0x1938] sm:$0xff]
        %v1598 = vld [vmem:[%s363 + $0x1940] sm:$0xff]
        %v1599 = vld [vmem:[%s363 + $0x1948] sm:$0xff]
        %v1600 = vld [vmem:[%s363 + $0x1950] sm:$0xff]
        %v1601 = vld [vmem:[%s363 + $0x1958] sm:$0xff]
        %v1602 = vld [vmem:[%s363 + $0x1960] sm:$0xff]
        %v1603 = vld [vmem:[%s363 + $0x1968] sm:$0xff]
        %v1604 = vld [vmem:[%s363 + $0x1970] sm:$0xff]
        %v1605 = vld [vmem:[%s363 + $0x1978] sm:$0xff]
        %v1606 = vld [vmem:[%s363 + $0x1980] sm:$0xff]
        %v1607 = vld [vmem:[%s363 + $0x1988] sm:$0xff]
        %v1608 = vld [vmem:[%s363 + $0x1990] sm:$0xff]
        %v1609 = vld [vmem:[%s363 + $0x1998] sm:$0xff]
        %v1610 = vld [vmem:[%s363 + $0x19a0] sm:$0xff]
        %v1611 = vld [vmem:[%s363 + $0x19a8] sm:$0xff]
        %v1612 = vld [vmem:[%s363 + $0x19b0] sm:$0xff]
        %v1613 = vld [vmem:[%s363 + $0x19b8] sm:$0xff]
        %v1614 = vld [vmem:[%s363 + $0x19c0] sm:$0xff]
        %v1615 = vld [vmem:[%s363 + $0x19c8] sm:$0xff]
        %v1616 = vld [vmem:[%s363 + $0x19d0] sm:$0xff]
        %v1617 = vld [vmem:[%s363 + $0x19d8] sm:$0xff]
        %v1618 = vld [vmem:[%s363 + $0x19e0] sm:$0xff]
        %v1619 = vld [vmem:[%s363 + $0x19e8] sm:$0xff]
        %v1620 = vld [vmem:[%s363 + $0x19f0] sm:$0xff]
        %v1621 = vld [vmem:[%s363 + $0x19f8] sm:$0xff]
        %v1622 = vld [vmem:[%s363 + $0x1a00] sm:$0xff]
        %v1623 = vld [vmem:[%s363 + $0x1a08] sm:$0xff]
        %v1624 = vld [vmem:[%s363 + $0x1a10] sm:$0xff]
        %v1625 = vld [vmem:[%s363 + $0x1a18] sm:$0xff]
        %v1626 = vld [vmem:[%s363 + $0x1a20] sm:$0xff]
        %v1627 = vld [vmem:[%s363 + $0x1a28] sm:$0xff]
        %v1628 = vld [vmem:[%s363 + $0x1a30] sm:$0xff]
        %v1629 = vld [vmem:[%s363 + $0x1a38] sm:$0xff]
        %v1630 = vld [vmem:[%s363 + $0x1a40] sm:$0xff]
        %v1631 = vld [vmem:[%s363 + $0x1a48] sm:$0xff]
        %v1632 = vld [vmem:[%s363 + $0x1a50] sm:$0xff]
        %v1633 = vld [vmem:[%s363 + $0x1a58] sm:$0xff]
        %v1634 = vld [vmem:[%s363 + $0x1a60] sm:$0xff]
        %v1635 = vld [vmem:[%s363 + $0x1a68] sm:$0xff]
        %v1636 = vld [vmem:[%s363 + $0x1a70] sm:$0xff]
        %v1637 = vld [vmem:[%s363 + $0x1a78] sm:$0xff]
        %v1638 = vld [vmem:[%s363 + $0x1a80] sm:$0xff]
        %v1639 = vld [vmem:[%s363 + $0x1a88] sm:$0xff]
        %v1640 = vld [vmem:[%s363 + $0x1a90] sm:$0xff]
        %v1641 = vld [vmem:[%s363 + $0x1a98] sm:$0xff]
        %v1642 = vld [vmem:[%s363 + $0x1aa0] sm:$0xff]
        %v1643 = vld [vmem:[%s363 + $0x1aa8] sm:$0xff]
        %v1644 = vld [vmem:[%s363 + $0x1ab0] sm:$0xff]
        %v1645 = vld [vmem:[%s363 + $0x1ab8] sm:$0xff]
        %v1646 = vld [vmem:[%s363 + $0x1ac0] sm:$0xff]
        %v1647 = vld [vmem:[%s363 + $0x1ac8] sm:$0xff]
        %v1648 = vld [vmem:[%s363 + $0x1ad0] sm:$0xff]
        %v1649 = vld [vmem:[%s363 + $0x1ad8] sm:$0xff]
        %v1650 = vld [vmem:[%s363 + $0x1ae0] sm:$0xff]
        %v1651 = vld [vmem:[%s363 + $0x1ae8] sm:$0xff]
        %v1652 = vld [vmem:[%s363 + $0x1af0] sm:$0xff]
        %v1653 = vld [vmem:[%s363 + $0x1af8] sm:$0xff]
        %v1654 = vld [vmem:[%s363 + $0x1b00] sm:$0xff]
        %v1655 = vld [vmem:[%s363 + $0x1b08] sm:$0xff]
        %v1656 = vld [vmem:[%s363 + $0x1b10] sm:$0xff]
        %v1657 = vld [vmem:[%s363 + $0x1b18] sm:$0xff]
        %v1658 = vld [vmem:[%s363 + $0x1b20] sm:$0xff]
        %v1659 = vld [vmem:[%s363 + $0x1b28] sm:$0xff]
        %v1660 = vld [vmem:[%s363 + $0x1b30] sm:$0xff]
        %v1661 = vld [vmem:[%s363 + $0x1b38] sm:$0xff]
        %v1662 = vld [vmem:[%s363 + $0x1b40] sm:$0xff]
        %v1663 = vld [vmem:[%s363 + $0x1b48] sm:$0xff]
        %v1664 = vld [vmem:[%s363 + $0x1b50] sm:$0xff]
        %v1665 = vld [vmem:[%s363 + $0x1b58] sm:$0xff]
        %v1666 = vld [vmem:[%s363 + $0x1b60] sm:$0xff]
        %v1667 = vld [vmem:[%s363 + $0x1b68] sm:$0xff]
        %v1668 = vld [vmem:[%s363 + $0x1b70] sm:$0xff]
        %v1669 = vld [vmem:[%s363 + $0x1b78] sm:$0xff]
        %v1670 = vld [vmem:[%s363 + $0x1b80] sm:$0xff]
        %v1671 = vld [vmem:[%s363 + $0x1b88] sm:$0xff]
        %v1672 = vld [vmem:[%s363 + $0x1b90] sm:$0xff]
        %v1673 = vld [vmem:[%s363 + $0x1b98] sm:$0xff]
        %v1674 = vld [vmem:[%s363 + $0x1ba0] sm:$0xff]
        %v1675 = vld [vmem:[%s363 + $0x1ba8] sm:$0xff]
        %v1676 = vld [vmem:[%s363 + $0x1bb0] sm:$0xff]
        %v1677 = vld [vmem:[%s363 + $0x1bb8] sm:$0xff]
        %v1678 = vld [vmem:[%s363 + $0x1bc0] sm:$0xff]
        %v1679 = vld [vmem:[%s363 + $0x1bc8] sm:$0xff]
        %v1680 = vld [vmem:[%s363 + $0x1bd0] sm:$0xff]
        %v1681 = vld [vmem:[%s363 + $0x1bd8] sm:$0xff]
        %v1682 = vld [vmem:[%s363 + $0x1be0] sm:$0xff]
        %v1683 = vld [vmem:[%s363 + $0x1be8] sm:$0xff]
        %v1684 = vld [vmem:[%s363 + $0x1bf0] sm:$0xff]
        %v1685 = vld [vmem:[%s363 + $0x1bf8] sm:$0xff]
        %v1686 = vld [vmem:[%s363 + $0x1c00] sm:$0xff]
        %v1687 = vld [vmem:[%s363 + $0x1c08] sm:$0xff]
        %v1688 = vld [vmem:[%s363 + $0x1c10] sm:$0xff]
        %v1689 = vld [vmem:[%s363 + $0x1c18] sm:$0xff]
        %v1690 = vld [vmem:[%s363 + $0x1c20] sm:$0xff]
        %v1691 = vld [vmem:[%s363 + $0x1c28] sm:$0xff]
        %v1692 = vld [vmem:[%s363 + $0x1c30] sm:$0xff]
        %v1693 = vld [vmem:[%s363 + $0x1c38] sm:$0xff]
        %v1694 = vld [vmem:[%s363 + $0x1c40] sm:$0xff]
        %v1695 = vld [vmem:[%s363 + $0x1c48] sm:$0xff]
        %v1696 = vld [vmem:[%s363 + $0x1c50] sm:$0xff]
        %v1697 = vld [vmem:[%s363 + $0x1c58] sm:$0xff]
        %v1698 = vld [vmem:[%s363 + $0x1c60] sm:$0xff]
        %v1699 = vld [vmem:[%s363 + $0x1c68] sm:$0xff]
        %v1700 = vld [vmem:[%s363 + $0x1c70] sm:$0xff]
        %v1701 = vld [vmem:[%s363 + $0x1c78] sm:$0xff]
        %v1702 = vld [vmem:[%s363 + $0x1c80] sm:$0xff]
        %v1703 = vld [vmem:[%s363 + $0x1c88] sm:$0xff]
        %v1704 = vld [vmem:[%s363 + $0x1c90] sm:$0xff]
        %v1705 = vld [vmem:[%s363 + $0x1c98] sm:$0xff]
        %v1706 = vld [vmem:[%s363 + $0x1ca0] sm:$0xff]
        %v1707 = vld [vmem:[%s363 + $0x1ca8] sm:$0xff]
        %v1708 = vld [vmem:[%s363 + $0x1cb0] sm:$0xff]
        %v1709 = vld [vmem:[%s363 + $0x1cb8] sm:$0xff]
        %v1710 = vld [vmem:[%s363 + $0x1cc0] sm:$0xff]
        %v1711 = vld [vmem:[%s363 + $0x1cc8] sm:$0xff]
        %v1712 = vld [vmem:[%s363 + $0x1cd0] sm:$0xff]
        %v1713 = vld [vmem:[%s363 + $0x1cd8] sm:$0xff]
        %v1714 = vld [vmem:[%s363 + $0x1ce0] sm:$0xff]
        %v1715 = vld [vmem:[%s363 + $0x1ce8] sm:$0xff]
        %v1716 = vld [vmem:[%s363 + $0x1cf0] sm:$0xff]
        %v1717 = vld [vmem:[%s363 + $0x1cf8] sm:$0xff]
        %v1718 = vld [vmem:[%s363 + $0x1d00] sm:$0xff]
        %v1719 = vld [vmem:[%s363 + $0x1d08] sm:$0xff]
        %v1720 = vld [vmem:[%s363 + $0x1d10] sm:$0xff]
        %v1721 = vld [vmem:[%s363 + $0x1d18] sm:$0xff]
        %v1722 = vld [vmem:[%s363 + $0x1d20] sm:$0xff]
        %v1723 = vld [vmem:[%s363 + $0x1d28] sm:$0xff]
        %v1724 = vld [vmem:[%s363 + $0x1d30] sm:$0xff]
        %v1725 = vld [vmem:[%s363 + $0x1d38] sm:$0xff]
        %v1726 = vld [vmem:[%s363 + $0x1d40] sm:$0xff]
        %v1727 = vld [vmem:[%s363 + $0x1d48] sm:$0xff]
        %v1728 = vld [vmem:[%s363 + $0x1d50] sm:$0xff]
        %v1729 = vld [vmem:[%s363 + $0x1d58] sm:$0xff]
        %v1730 = vld [vmem:[%s363 + $0x1d60] sm:$0xff]
        %v1731 = vld [vmem:[%s363 + $0x1d68] sm:$0xff]
        %v1732 = vld [vmem:[%s363 + $0x1d70] sm:$0xff]
        %v1733 = vld [vmem:[%s363 + $0x1d78] sm:$0xff]
        %v1734 = vld [vmem:[%s363 + $0x1d80] sm:$0xff]
        %v1735 = vld [vmem:[%s363 + $0x1d88] sm:$0xff]
        %v1736 = vld [vmem:[%s363 + $0x1d90] sm:$0xff]
        %v1737 = vld [vmem:[%s363 + $0x1d98] sm:$0xff]
        %v1738 = vld [vmem:[%s363 + $0x1da0] sm:$0xff]
        %v1739 = vld [vmem:[%s363 + $0x1da8] sm:$0xff]
        %v1740 = vld [vmem:[%s363 + $0x1db0] sm:$0xff]
        %v1741 = vld [vmem:[%s363 + $0x1db8] sm:$0xff]
        %v1742 = vld [vmem:[%s363 + $0x1dc0] sm:$0xff]
        %v1743 = vld [vmem:[%s363 + $0x1dc8] sm:$0xff]
        %v1744 = vld [vmem:[%s363 + $0x1dd0] sm:$0xff]
        %v1745 = vld [vmem:[%s363 + $0x1dd8] sm:$0xff]
        %v1746 = vld [vmem:[%s363 + $0x1de0] sm:$0xff]
        %v1747 = vld [vmem:[%s363 + $0x1de8] sm:$0xff]
        %v1748 = vld [vmem:[%s363 + $0x1df0] sm:$0xff]
        %v1749 = vld [vmem:[%s363 + $0x1df8] sm:$0xff]
        %v1750 = vld [vmem:[%s363 + $0x1e00] sm:$0xff]
        %v1751 = vld [vmem:[%s363 + $0x1e08] sm:$0xff]
        %v1752 = vld [vmem:[%s363 + $0x1e10] sm:$0xff]
        %v1753 = vld [vmem:[%s363 + $0x1e18] sm:$0xff]
        %v1754 = vld [vmem:[%s363 + $0x1e20] sm:$0xff]
        %v1755 = vld [vmem:[%s363 + $0x1e28] sm:$0xff]
        %v1756 = vld [vmem:[%s363 + $0x1e30] sm:$0xff]
        %v1757 = vld [vmem:[%s363 + $0x1e38] sm:$0xff]
        %v1758 = vld [vmem:[%s363 + $0x1e40] sm:$0xff]
        %v1759 = vld [vmem:[%s363 + $0x1e48] sm:$0xff]
        %v1760 = vld [vmem:[%s363 + $0x1e50] sm:$0xff]
        %v1761 = vld [vmem:[%s363 + $0x1e58] sm:$0xff]
        %v1762 = vld [vmem:[%s363 + $0x1e60] sm:$0xff]
        %v1763 = vld [vmem:[%s363 + $0x1e68] sm:$0xff]
        %v1764 = vld [vmem:[%s363 + $0x1e70] sm:$0xff]
        %v1765 = vld [vmem:[%s363 + $0x1e78] sm:$0xff]
        %v1766 = vld [vmem:[%s363 + $0x1e80] sm:$0xff]
        %v1767 = vld [vmem:[%s363 + $0x1e88] sm:$0xff]
        %v1768 = vld [vmem:[%s363 + $0x1e90] sm:$0xff]
        %v1769 = vld [vmem:[%s363 + $0x1e98] sm:$0xff]
        %v1770 = vld [vmem:[%s363 + $0x1ea0] sm:$0xff]
        %v1771 = vld [vmem:[%s363 + $0x1ea8] sm:$0xff]
        %v1772 = vld [vmem:[%s363 + $0x1eb0] sm:$0xff]
        %v1773 = vld [vmem:[%s363 + $0x1eb8] sm:$0xff]
        %v1774 = vld [vmem:[%s363 + $0x1ec0] sm:$0xff]
        %v1775 = vld [vmem:[%s363 + $0x1ec8] sm:$0xff]
        %v1776 = vld [vmem:[%s363 + $0x1ed0] sm:$0xff]
        %v1777 = vld [vmem:[%s363 + $0x1ed8] sm:$0xff]
        %v1778 = vld [vmem:[%s363 + $0x1ee0] sm:$0xff]
        %v1779 = vld [vmem:[%s363 + $0x1ee8] sm:$0xff]
        %v1780 = vld [vmem:[%s363 + $0x1ef0] sm:$0xff]
        %v1781 = vld [vmem:[%s363 + $0x1ef8] sm:$0xff]
        %v1782 = vld [vmem:[%s363 + $0x1f00] sm:$0xff]
        %v1783 = vld [vmem:[%s363 + $0x1f08] sm:$0xff]
        %v1784 = vld [vmem:[%s363 + $0x1f10] sm:$0xff]
        %v1785 = vld [vmem:[%s363 + $0x1f18] sm:$0xff]
        %v1786 = vld [vmem:[%s363 + $0x1f20] sm:$0xff]
        %v1787 = vld [vmem:[%s363 + $0x1f28] sm:$0xff]
        %v1788 = vld [vmem:[%s363 + $0x1f30] sm:$0xff]
        %v1789 = vld [vmem:[%s363 + $0x1f38] sm:$0xff]
        %v1790 = vld [vmem:[%s363 + $0x1f40] sm:$0xff]
        %v1791 = vld [vmem:[%s363 + $0x1f48] sm:$0xff]
        %v1792 = vld [vmem:[%s363 + $0x1f50] sm:$0xff]
        %v1793 = vld [vmem:[%s363 + $0x1f58] sm:$0xff]
        %v1794 = vld [vmem:[%s363 + $0x1f60] sm:$0xff]
        %v1795 = vld [vmem:[%s363 + $0x1f68] sm:$0xff]
        %v1796 = vld [vmem:[%s363 + $0x1f70] sm:$0xff]
        %v1797 = vld [vmem:[%s363 + $0x1f78] sm:$0xff]
        %v1798 = vld [vmem:[%s363 + $0x1f80] sm:$0xff]
        %v1799 = vld [vmem:[%s363 + $0x1f88] sm:$0xff]
        %v1800 = vld [vmem:[%s363 + $0x1f90] sm:$0xff]
        %v1801 = vld [vmem:[%s363 + $0x1f98] sm:$0xff]
        %v1802 = vld [vmem:[%s363 + $0x1fa0] sm:$0xff]
        %v1803 = vld [vmem:[%s363 + $0x1fa8] sm:$0xff]
        %v1804 = vld [vmem:[%s363 + $0x1fb0] sm:$0xff]
        %v1805 = vld [vmem:[%s363 + $0x1fb8] sm:$0xff]
        %v1806 = vld [vmem:[%s363 + $0x1fc0] sm:$0xff]
        %v1807 = vld [vmem:[%s363 + $0x1fc8] sm:$0xff]
        %v1808 = vld [vmem:[%s363 + $0x1fd0] sm:$0xff]
        %v1809 = vld [vmem:[%s363 + $0x1fd8] sm:$0xff]
        %v1810 = vld [vmem:[%s363 + $0x1fe0] sm:$0xff]
        %v1811 = vld [vmem:[%s363 + $0x1fe8] sm:$0xff]
        %v1812 = vld [vmem:[%s363 + $0x1ff0] sm:$0xff]
        %v1813 = vld [vmem:[%s363 + $0x1ff8] sm:$0xff]
        %1814 = vmatprep.subr.mxu0 %v911
        %1815 = vmatpush1.msra.mxu0 %v910
        %1816 = vmatprep.subr.mxu0 %v903
        %1817 = vmatpush1.msra.mxu0 %v902
        %1818 = vmatprep.subr.mxu0 %v895
        %1819 = vmatpush1.msra.mxu0 %v894
        %1820 = vmatprep.subr.mxu0 %v887
        %1821 = vmatpush1.msra.mxu0 %v886
        %1822 = vmatprep.subr.mxu0 %v879
        %1823 = vmatpush1.msra.mxu0 %v878
        %1824 = vmatprep.subr.mxu0 %v871
        %1825 = vmatpush1.msra.mxu0 %v870
        %1826 = vmatprep.subr.mxu0 %v863
        %1827 = vmatpush1.msra.mxu0 %v862
        %1828 = vmatprep.subr.mxu0 %v855
        %1829 = vmatpush1.msra.mxu0 %v854
        %1830 = vmatprep.subr.mxu0 %v847
        %1831 = vmatpush1.msra.mxu0 %v846
        %1832 = vmatprep.subr.mxu0 %v839
        %1833 = vmatpush1.msra.mxu0 %v838
        %1834 = vmatprep.subr.mxu0 %v831
        %1835 = vmatpush1.msra.mxu0 %v830
        %1836 = vmatprep.subr.mxu0 %v823
        %1837 = vmatpush1.msra.mxu0 %v822
        %1838 = vmatprep.subr.mxu0 %v815
        %1839 = vmatpush1.msra.mxu0 %v814
        %1840 = vmatprep.subr.mxu0 %v807
        %1841 = vmatpush1.msra.mxu0 %v806
        %1842 = vmatprep.subr.mxu0 %v799
        %1843 = vmatpush1.msra.mxu0 %v798
        %1844 = vmatprep.subr.mxu0 %v791
        %1845 = vmatpush1.msra.mxu0 %v790
        %1846 = vmatprep.subr.mxu0 %v1039
        %1847 = vmatpush2.msra.mxu0 %v1038
        %1848 = vmatprep.subr.mxu0 %v1031
        %1849 = vmatpush2.msra.mxu0 %v1030
        %1850 = vmatprep.subr.mxu0 %v1023
        %1851 = vmatpush2.msra.mxu0 %v1022
        %1852 = vmatprep.subr.mxu0 %v1015
        %1853 = vmatpush2.msra.mxu0 %v1014
        %1854 = vmatprep.subr.mxu0 %v1007
        %1855 = vmatpush2.msra.mxu0 %v1006
        %1856 = vmatprep.subr.mxu0 %v999
        %1857 = vmatpush2.msra.mxu0 %v998
        %1858 = vmatprep.subr.mxu0 %v991
        %1859 = vmatpush2.msra.mxu0 %v990
        %1860 = vmatprep.subr.mxu0 %v983
        %1861 = vmatpush2.msra.mxu0 %v982
        %1862 = vmatprep.subr.mxu0 %v975
        %1863 = vmatpush2.msra.mxu0 %v974
        %1864 = vmatprep.subr.mxu0 %v967
        %1865 = vmatpush2.msra.mxu0 %v966
        %1866 = vmatprep.subr.mxu0 %v959
        %1867 = vmatpush2.msra.mxu0 %v958
        %1868 = vmatprep.subr.mxu0 %v951
        %1869 = vmatpush2.msra.mxu0 %v950
        %1870 = vmatprep.subr.mxu0 %v943
        %1871 = vmatpush2.msra.mxu0 %v942
        %1872 = vmatprep.subr.mxu0 %v935
        %1873 = vmatpush2.msra.mxu0 %v934
        %1874 = vmatprep.subr.mxu0 %v927
        %1875 = vmatpush2.msra.mxu0 %v926
        %1876 = vmatprep.subr.mxu0 %v919
        %1877 = vmatpush2.msra.mxu0 %v918
        %1878 = vmatprep.mubr.f32.mxu0 %v568
        %1879 = vmatmul.mubr.f32.gmra.mxu0 %v566
        %v1880 = vpop.f32.mrf.mxu0
        %v1881 = vadd.f32 0.0, %v1880
        %v1882 = vpop.f32.mrf.mxu0
        %v1883 = vadd.f32 0.0, %v1882
        %1884 = vdwg.mxu0
        %1885 = vmatprep.subr.mxu0 %v1167
        %1886 = vmatpush1.msra.mxu0 %v1166
        %1887 = vmatprep.subr.mxu0 %v1159
        %1888 = vmatpush1.msra.mxu0 %v1158
        %1889 = vmatprep.subr.mxu0 %v1151
        %1890 = vmatpush1.msra.mxu0 %v1150
        %1891 = vmatprep.subr.mxu0 %v1143
        %1892 = vmatpush1.msra.mxu0 %v1142
        %1893 = vmatprep.subr.mxu0 %v1135
        %1894 = vmatpush1.msra.mxu0 %v1134
        %1895 = vmatprep.subr.mxu0 %v1127
        %1896 = vmatpush1.msra.mxu0 %v1126
        %1897 = vmatprep.subr.mxu0 %v1119
        %1898 = vmatpush1.msra.mxu0 %v1118
        %1899 = vmatprep.subr.mxu0 %v1111
        %1900 = vmatpush1.msra.mxu0 %v1110
        %1901 = vmatprep.subr.mxu0 %v1103
        %1902 = vmatpush1.msra.mxu0 %v1102
        %1903 = vmatprep.subr.mxu0 %v1095
        %1904 = vmatpush1.msra.mxu0 %v1094
        %1905 = vmatprep.subr.mxu0 %v1087
        %1906 = vmatpush1.msra.mxu0 %v1086
        %1907 = vmatprep.subr.mxu0 %v1079
        %1908 = vmatpush1.msra.mxu0 %v1078
        %1909 = vmatprep.subr.mxu0 %v1071
        %1910 = vmatpush1.msra.mxu0 %v1070
        %1911 = vmatprep.subr.mxu0 %v1063
        %1912 = vmatpush1.msra.mxu0 %v1062
        %1913 = vmatprep.subr.mxu0 %v1055
        %1914 = vmatpush1.msra.mxu0 %v1054
        %1915 = vmatprep.subr.mxu0 %v1047
        %1916 = vmatpush1.msra.mxu0 %v1046
        %1917 = vmatprep.subr.mxu0 %v1295
        %1918 = vmatpush2.msra.mxu0 %v1294
        %1919 = vmatprep.subr.mxu0 %v1287
        %1920 = vmatpush2.msra.mxu0 %v1286
        %1921 = vmatprep.subr.mxu0 %v1279
        %1922 = vmatpush2.msra.mxu0 %v1278
        %1923 = vmatprep.subr.mxu0 %v1271
        %1924 = vmatpush2.msra.mxu0 %v1270
        %1925 = vmatprep.subr.mxu0 %v1263
        %1926 = vmatpush2.msra.mxu0 %v1262
        %1927 = vmatprep.subr.mxu0 %v1255
        %1928 = vmatpush2.msra.mxu0 %v1254
        %1929 = vmatprep.subr.mxu0 %v1247
        %1930 = vmatpush2.msra.mxu0 %v1246
        %1931 = vmatprep.subr.mxu0 %v1239
        %1932 = vmatpush2.msra.mxu0 %v1238
        %1933 = vmatprep.subr.mxu0 %v1231
        %1934 = vmatpush2.msra.mxu0 %v1230
        %1935 = vmatprep.subr.mxu0 %v1223
        %1936 = vmatpush2.msra.mxu0 %v1222
        %1937 = vmatprep.subr.mxu0 %v1215
        %1938 = vmatpush2.msra.mxu0 %v1214
        %1939 = vmatprep.subr.mxu0 %v1207
        %1940 = vmatpush2.msra.mxu0 %v1206
        %1941 = vmatprep.subr.mxu0 %v1199
        %1942 = vmatpush2.msra.mxu0 %v1198
        %1943 = vmatprep.subr.mxu0 %v1191
        %1944 = vmatpush2.msra.mxu0 %v1190
        %1945 = vmatprep.subr.mxu0 %v1183
        %1946 = vmatpush2.msra.mxu0 %v1182
        %1947 = vmatprep.subr.mxu0 %v1175
        %1948 = vmatpush2.msra.mxu0 %v1174
        %1949 = vmatprep.mubr.f32.mxu0 %v639
        %1950 = vmatmul.mubr.f32.gmra.mxu0 %v637
        %v1951 = vpop.f32.mrf.mxu0
        %v1952 = vadd.f32 %v1881, %v1951
        %v1953 = vpop.f32.mrf.mxu0
        %v1954 = vadd.f32 %v1883, %v1953
        %1955 = vdwg.mxu0
        %1956 = vmatprep.subr.mxu0 %v1423
        %1957 = vmatpush1.msra.mxu0 %v1422
        %1958 = vmatprep.subr.mxu0 %v1415
        %1959 = vmatpush1.msra.mxu0 %v1414
        %1960 = vmatprep.subr.mxu0 %v1407
        %1961 = vmatpush1.msra.mxu0 %v1406
        %1962 = vmatprep.subr.mxu0 %v1399
        %1963 = vmatpush1.msra.mxu0 %v1398
        %1964 = vmatprep.subr.mxu0 %v1391
        %1965 = vmatpush1.msra.mxu0 %v1390
        %1966 = vmatprep.subr.mxu0 %v1383
        %1967 = vmatpush1.msra.mxu0 %v1382
        %1968 = vmatprep.subr.mxu0 %v1375
        %1969 = vmatpush1.msra.mxu0 %v1374
        %1970 = vmatprep.subr.mxu0 %v1367
        %1971 = vmatpush1.msra.mxu0 %v1366
        %1972 = vmatprep.subr.mxu0 %v1359
        %1973 = vmatpush1.msra.mxu0 %v1358
        %1974 = vmatprep.subr.mxu0 %v1351
        %1975 = vmatpush1.msra.mxu0 %v1350
        %1976 = vmatprep.subr.mxu0 %v1343
        %1977 = vmatpush1.msra.mxu0 %v1342
        %1978 = vmatprep.subr.mxu0 %v1335
        %1979 = vmatpush1.msra.mxu0 %v1334
        %1980 = vmatprep.subr.mxu0 %v1327
        %1981 = vmatpush1.msra.mxu0 %v1326
        %1982 = vmatprep.subr.mxu0 %v1319
        %1983 = vmatpush1.msra.mxu0 %v1318
        %1984 = vmatprep.subr.mxu0 %v1311
        %1985 = vmatpush1.msra.mxu0 %v1310
        %1986 = vmatprep.subr.mxu0 %v1303
        %1987 = vmatpush1.msra.mxu0 %v1302
        %1988 = vmatprep.subr.mxu0 %v1551
        %1989 = vmatpush2.msra.mxu0 %v1550
        %1990 = vmatprep.subr.mxu0 %v1543
        %1991 = vmatpush2.msra.mxu0 %v1542
        %1992 = vmatprep.subr.mxu0 %v1535
        %1993 = vmatpush2.msra.mxu0 %v1534
        %1994 = vmatprep.subr.mxu0 %v1527
        %1995 = vmatpush2.msra.mxu0 %v1526
        %1996 = vmatprep.subr.mxu0 %v1519
        %1997 = vmatpush2.msra.mxu0 %v1518
        %1998 = vmatprep.subr.mxu0 %v1511
        %1999 = vmatpush2.msra.mxu0 %v1510
        %2000 = vmatprep.subr.mxu0 %v1503
        %2001 = vmatpush2.msra.mxu0 %v1502
        %2002 = vmatprep.subr.mxu0 %v1495
        %2003 = vmatpush2.msra.mxu0 %v1494
        %2004 = vmatprep.subr.mxu0 %v1487
        %2005 = vmatpush2.msra.mxu0 %v1486
        %2006 = vmatprep.subr.mxu0 %v1479
        %2007 = vmatpush2.msra.mxu0 %v1478
        %2008 = vmatprep.subr.mxu0 %v1471
        %2009 = vmatpush2.msra.mxu0 %v1470
        %2010 = vmatprep.subr.mxu0 %v1463
        %2011 = vmatpush2.msra.mxu0 %v1462
        %2012 = vmatprep.subr.mxu0 %v1455
        %2013 = vmatpush2.msra.mxu0 %v1454
        %2014 = vmatprep.subr.mxu0 %v1447
        %2015 = vmatpush2.msra.mxu0 %v1446
        %2016 = vmatprep.subr.mxu0 %v1439
        %2017 = vmatpush2.msra.mxu0 %v1438
        %2018 = vmatprep.subr.mxu0 %v1431
        %2019 = vmatpush2.msra.mxu0 %v1430
        %2020 = vmatprep.mubr.f32.mxu0 %v710
        %2021 = vmatmul.mubr.f32.gmra.mxu0 %v708
        %v2022 = vpop.f32.mrf.mxu0
        %v2023 = vadd.f32 %v1952, %v2022
        %v2024 = vpop.f32.mrf.mxu0
        %v2025 = vadd.f32 %v1954, %v2024
        %2026 = vdwg.mxu0
        %2027 = vmatprep.subr.mxu0 %v1679
        %2028 = vmatpush1.msra.mxu0 %v1678
        %2029 = vmatprep.subr.mxu0 %v1671
        %2030 = vmatpush1.msra.mxu0 %v1670
        %2031 = vmatprep.subr.mxu0 %v1663
        %2032 = vmatpush1.msra.mxu0 %v1662
        %2033 = vmatprep.subr.mxu0 %v1655
        %2034 = vmatpush1.msra.mxu0 %v1654
        %2035 = vmatprep.subr.mxu0 %v1647
        %2036 = vmatpush1.msra.mxu0 %v1646
        %2037 = vmatprep.subr.mxu0 %v1639
        %2038 = vmatpush1.msra.mxu0 %v1638
        %2039 = vmatprep.subr.mxu0 %v1631
        %2040 = vmatpush1.msra.mxu0 %v1630
        %2041 = vmatprep.subr.mxu0 %v1623
        %2042 = vmatpush1.msra.mxu0 %v1622
        %2043 = vmatprep.subr.mxu0 %v1615
        %2044 = vmatpush1.msra.mxu0 %v1614
        %2045 = vmatprep.subr.mxu0 %v1607
        %2046 = vmatpush1.msra.mxu0 %v1606
        %2047 = vmatprep.subr.mxu0 %v1599
        %2048 = vmatpush1.msra.mxu0 %v1598
        %2049 = vmatprep.subr.mxu0 %v1591
        %2050 = vmatpush1.msra.mxu0 %v1590
        %2051 = vmatprep.subr.mxu0 %v1583
        %2052 = vmatpush1.msra.mxu0 %v1582
        %2053 = vmatprep.subr.mxu0 %v1575
        %2054 = vmatpush1.msra.mxu0 %v1574
        %2055 = vmatprep.subr.mxu0 %v1567
        %2056 = vmatpush1.msra.mxu0 %v1566
        %2057 = vmatprep.subr.mxu0 %v1559
        %2058 = vmatpush1.msra.mxu0 %v1558
        %2059 = vmatprep.subr.mxu0 %v1807
        %2060 = vmatpush2.msra.mxu0 %v1806
        %2061 = vmatprep.subr.mxu0 %v1799
        %2062 = vmatpush2.msra.mxu0 %v1798
        %2063 = vmatprep.subr.mxu0 %v1791
        %2064 = vmatpush2.msra.mxu0 %v1790
        %2065 = vmatprep.subr.mxu0 %v1783
        %2066 = vmatpush2.msra.mxu0 %v1782
        %2067 = vmatprep.subr.mxu0 %v1775
        %2068 = vmatpush2.msra.mxu0 %v1774
        %2069 = vmatprep.subr.mxu0 %v1767
        %2070 = vmatpush2.msra.mxu0 %v1766
        %2071 = vmatprep.subr.mxu0 %v1759
        %2072 = vmatpush2.msra.mxu0 %v1758
        %2073 = vmatprep.subr.mxu0 %v1751
        %2074 = vmatpush2.msra.mxu0 %v1750
        %2075 = vmatprep.subr.mxu0 %v1743
        %2076 = vmatpush2.msra.mxu0 %v1742
        %2077 = vmatprep.subr.mxu0 %v1735
        %2078 = vmatpush2.msra.mxu0 %v1734
        %2079 = vmatprep.subr.mxu0 %v1727
        %2080 = vmatpush2.msra.mxu0 %v1726
        %2081 = vmatprep.subr.mxu0 %v1719
        %2082 = vmatpush2.msra.mxu0 %v1718
        %2083 = vmatprep.subr.mxu0 %v1711
        %2084 = vmatpush2.msra.mxu0 %v1710
        %2085 = vmatprep.subr.mxu0 %v1703
        %2086 = vmatpush2.msra.mxu0 %v1702
        %2087 = vmatprep.subr.mxu0 %v1695
        %2088 = vmatpush2.msra.mxu0 %v1694
        %2089 = vmatprep.subr.mxu0 %v1687
        %2090 = vmatpush2.msra.mxu0 %v1686
        %2091 = vmatprep.mubr.f32.mxu0 %v781
        %2092 = vmatmul.mubr.f32.gmra.mxu0 %v779
        %v2093 = vpop.f32.mrf.mxu0
        %v2094 = vadd.f32 %v2023, %v2093
        %v2095 = vpop.f32.mrf.mxu0
        %v2096 = vadd.f32 %v2025, %v2095
        %2097 = vdwg.mxu0
        %2098 = vmatprep.subr.mxu0 %v913
        %2099 = vmatpush1.msra.mxu0 %v912
        %2100 = vmatprep.subr.mxu0 %v905
        %2101 = vmatpush1.msra.mxu0 %v904
        %2102 = vmatprep.subr.mxu0 %v897
        %2103 = vmatpush1.msra.mxu0 %v896
        %2104 = vmatprep.subr.mxu0 %v889
        %2105 = vmatpush1.msra.mxu0 %v888
        %2106 = vmatprep.subr.mxu0 %v881
        %2107 = vmatpush1.msra.mxu0 %v880
        %2108 = vmatprep.subr.mxu0 %v873
        %2109 = vmatpush1.msra.mxu0 %v872
        %2110 = vmatprep.subr.mxu0 %v865
        %2111 = vmatpush1.msra.mxu0 %v864
        %2112 = vmatprep.subr.mxu0 %v857
        %2113 = vmatpush1.msra.mxu0 %v856
        %2114 = vmatprep.subr.mxu0 %v849
        %2115 = vmatpush1.msra.mxu0 %v848
        %2116 = vmatprep.subr.mxu0 %v841
        %2117 = vmatpush1.msra.mxu0 %v840
        %2118 = vmatprep.subr.mxu0 %v833
        %2119 = vmatpush1.msra.mxu0 %v832
        %2120 = vmatprep.subr.mxu0 %v825
        %2121 = vmatpush1.msra.mxu0 %v824
        %2122 = vmatprep.subr.mxu0 %v817
        %2123 = vmatpush1.msra.mxu0 %v816
        %2124 = vmatprep.subr.mxu0 %v809
        %2125 = vmatpush1.msra.mxu0 %v808
        %2126 = vmatprep.subr.mxu0 %v801
        %2127 = vmatpush1.msra.mxu0 %v800
        %2128 = vmatprep.subr.mxu0 %v793
        %2129 = vmatpush1.msra.mxu0 %v792
        %2130 = vmatprep.subr.mxu0 %v1041
        %2131 = vmatpush2.msra.mxu0 %v1040
        %2132 = vmatprep.subr.mxu0 %v1033
        %2133 = vmatpush2.msra.mxu0 %v1032
        %2134 = vmatprep.subr.mxu0 %v1025
        %2135 = vmatpush2.msra.mxu0 %v1024
        %2136 = vmatprep.subr.mxu0 %v1017
        %2137 = vmatpush2.msra.mxu0 %v1016
        %2138 = vmatprep.subr.mxu0 %v1009
        %2139 = vmatpush2.msra.mxu0 %v1008
        %2140 = vmatprep.subr.mxu0 %v1001
        %2141 = vmatpush2.msra.mxu0 %v1000
        %2142 = vmatprep.subr.mxu0 %v993
        %2143 = vmatpush2.msra.mxu0 %v992
        %2144 = vmatprep.subr.mxu0 %v985
        %2145 = vmatpush2.msra.mxu0 %v984
        %2146 = vmatprep.subr.mxu0 %v977
        %2147 = vmatpush2.msra.mxu0 %v976
        %2148 = vmatprep.subr.mxu0 %v969
        %2149 = vmatpush2.msra.mxu0 %v968
        %2150 = vmatprep.subr.mxu0 %v961
        %2151 = vmatpush2.msra.mxu0 %v960
        %2152 = vmatprep.subr.mxu0 %v953
        %2153 = vmatpush2.msra.mxu0 %v952
        %2154 = vmatprep.subr.mxu0 %v945
        %2155 = vmatpush2.msra.mxu0 %v944
        %2156 = vmatprep.subr.mxu0 %v937
        %2157 = vmatpush2.msra.mxu0 %v936
        %2158 = vmatprep.subr.mxu0 %v929
        %2159 = vmatpush2.msra.mxu0 %v928
        %2160 = vmatprep.subr.mxu0 %v921
        %2161 = vmatpush2.msra.mxu0 %v920
        %2162 = vmatprep.mubr.f32.mxu0 %v568
        %2163 = vmatmul.mubr.f32.gmra.mxu0 %v566
        %v2164 = vpop.f32.mrf.mxu0
        %v2165 = vadd.f32 0.0, %v2164
        %v2166 = vpop.f32.mrf.mxu0
        %v2167 = vadd.f32 0.0, %v2166
        %2168 = vdwg.mxu0
        %2169 = vmatprep.subr.mxu0 %v1169
        %2170 = vmatpush1.msra.mxu0 %v1168
        %2171 = vmatprep.subr.mxu0 %v1161
        %2172 = vmatpush1.msra.mxu0 %v1160
        %2173 = vmatprep.subr.mxu0 %v1153
        %2174 = vmatpush1.msra.mxu0 %v1152
        %2175 = vmatprep.subr.mxu0 %v1145
        %2176 = vmatpush1.msra.mxu0 %v1144
        %2177 = vmatprep.subr.mxu0 %v1137
        %2178 = vmatpush1.msra.mxu0 %v1136
        %2179 = vmatprep.subr.mxu0 %v1129
        %2180 = vmatpush1.msra.mxu0 %v1128
        %2181 = vmatprep.subr.mxu0 %v1121
        %2182 = vmatpush1.msra.mxu0 %v1120
        %2183 = vmatprep.subr.mxu0 %v1113
        %2184 = vmatpush1.msra.mxu0 %v1112
        %2185 = vmatprep.subr.mxu0 %v1105
        %2186 = vmatpush1.msra.mxu0 %v1104
        %2187 = vmatprep.subr.mxu0 %v1097
        %2188 = vmatpush1.msra.mxu0 %v1096
        %2189 = vmatprep.subr.mxu0 %v1089
        %2190 = vmatpush1.msra.mxu0 %v1088
        %2191 = vmatprep.subr.mxu0 %v1081
        %2192 = vmatpush1.msra.mxu0 %v1080
        %2193 = vmatprep.subr.mxu0 %v1073
        %2194 = vmatpush1.msra.mxu0 %v1072
        %2195 = vmatprep.subr.mxu0 %v1065
        %2196 = vmatpush1.msra.mxu0 %v1064
        %2197 = vmatprep.subr.mxu0 %v1057
        %2198 = vmatpush1.msra.mxu0 %v1056
        %2199 = vmatprep.subr.mxu0 %v1049
        %2200 = vmatpush1.msra.mxu0 %v1048
        %2201 = vmatprep.subr.mxu0 %v1297
        %2202 = vmatpush2.msra.mxu0 %v1296
        %2203 = vmatprep.subr.mxu0 %v1289
        %2204 = vmatpush2.msra.mxu0 %v1288
        %2205 = vmatprep.subr.mxu0 %v1281
        %2206 = vmatpush2.msra.mxu0 %v1280
        %2207 = vmatprep.subr.mxu0 %v1273
        %2208 = vmatpush2.msra.mxu0 %v1272
        %2209 = vmatprep.subr.mxu0 %v1265
        %2210 = vmatpush2.msra.mxu0 %v1264
        %2211 = vmatprep.subr.mxu0 %v1257
        %2212 = vmatpush2.msra.mxu0 %v1256
        %2213 = vmatprep.subr.mxu0 %v1249
        %2214 = vmatpush2.msra.mxu0 %v1248
        %2215 = vmatprep.subr.mxu0 %v1241
        %2216 = vmatpush2.msra.mxu0 %v1240
        %2217 = vmatprep.subr.mxu0 %v1233
        %2218 = vmatpush2.msra.mxu0 %v1232
        %2219 = vmatprep.subr.mxu0 %v1225
        %2220 = vmatpush2.msra.mxu0 %v1224
        %2221 = vmatprep.subr.mxu0 %v1217
        %2222 = vmatpush2.msra.mxu0 %v1216
        %2223 = vmatprep.subr.mxu0 %v1209
        %2224 = vmatpush2.msra.mxu0 %v1208
        %2225 = vmatprep.subr.mxu0 %v1201
        %2226 = vmatpush2.msra.mxu0 %v1200
        %2227 = vmatprep.subr.mxu0 %v1193
        %2228 = vmatpush2.msra.mxu0 %v1192
        %2229 = vmatprep.subr.mxu0 %v1185
        %2230 = vmatpush2.msra.mxu0 %v1184
        %2231 = vmatprep.subr.mxu0 %v1177
        %2232 = vmatpush2.msra.mxu0 %v1176
        %2233 = vmatprep.mubr.f32.mxu0 %v639
        %2234 = vmatmul.mubr.f32.gmra.mxu0 %v637
        %v2235 = vpop.f32.mrf.mxu0
        %v2236 = vadd.f32 %v2165, %v2235
        %v2237 = vpop.f32.mrf.mxu0
        %v2238 = vadd.f32 %v2167, %v2237
        %2239 = vdwg.mxu0
        %2240 = vmatprep.subr.mxu0 %v1425
        %2241 = vmatpush1.msra.mxu0 %v1424
        %2242 = vmatprep.subr.mxu0 %v1417
        %2243 = vmatpush1.msra.mxu0 %v1416
        %2244 = vmatprep.subr.mxu0 %v1409
        %2245 = vmatpush1.msra.mxu0 %v1408
        %2246 = vmatprep.subr.mxu0 %v1401
        %2247 = vmatpush1.msra.mxu0 %v1400
        %2248 = vmatprep.subr.mxu0 %v1393
        %2249 = vmatpush1.msra.mxu0 %v1392
        %2250 = vmatprep.subr.mxu0 %v1385
        %2251 = vmatpush1.msra.mxu0 %v1384
        %2252 = vmatprep.subr.mxu0 %v1377
        %2253 = vmatpush1.msra.mxu0 %v1376
        %2254 = vmatprep.subr.mxu0 %v1369
        %2255 = vmatpush1.msra.mxu0 %v1368
        %2256 = vmatprep.subr.mxu0 %v1361
        %2257 = vmatpush1.msra.mxu0 %v1360
        %2258 = vmatprep.subr.mxu0 %v1353
        %2259 = vmatpush1.msra.mxu0 %v1352
        %2260 = vmatprep.subr.mxu0 %v1345
        %2261 = vmatpush1.msra.mxu0 %v1344
        %2262 = vmatprep.subr.mxu0 %v1337
        %2263 = vmatpush1.msra.mxu0 %v1336
        %2264 = vmatprep.subr.mxu0 %v1329
        %2265 = vmatpush1.msra.mxu0 %v1328
        %2266 = vmatprep.subr.mxu0 %v1321
        %2267 = vmatpush1.msra.mxu0 %v1320
        %2268 = vmatprep.subr.mxu0 %v1313
        %2269 = vmatpush1.msra.mxu0 %v1312
        %2270 = vmatprep.subr.mxu0 %v1305
        %2271 = vmatpush1.msra.mxu0 %v1304
        %2272 = vmatprep.subr.mxu0 %v1553
        %2273 = vmatpush2.msra.mxu0 %v1552
        %2274 = vmatprep.subr.mxu0 %v1545
        %2275 = vmatpush2.msra.mxu0 %v1544
        %2276 = vmatprep.subr.mxu0 %v1537
        %2277 = vmatpush2.msra.mxu0 %v1536
        %2278 = vmatprep.subr.mxu0 %v1529
        %2279 = vmatpush2.msra.mxu0 %v1528
        %2280 = vmatprep.subr.mxu0 %v1521
        %2281 = vmatpush2.msra.mxu0 %v1520
        %2282 = vmatprep.subr.mxu0 %v1513
        %2283 = vmatpush2.msra.mxu0 %v1512
        %2284 = vmatprep.subr.mxu0 %v1505
        %2285 = vmatpush2.msra.mxu0 %v1504
        %2286 = vmatprep.subr.mxu0 %v1497
        %2287 = vmatpush2.msra.mxu0 %v1496
        %2288 = vmatprep.subr.mxu0 %v1489
        %2289 = vmatpush2.msra.mxu0 %v1488
        %2290 = vmatprep.subr.mxu0 %v1481
        %2291 = vmatpush2.msra.mxu0 %v1480
        %2292 = vmatprep.subr.mxu0 %v1473
        %2293 = vmatpush2.msra.mxu0 %v1472
        %2294 = vmatprep.subr.mxu0 %v1465
        %2295 = vmatpush2.msra.mxu0 %v1464
        %2296 = vmatprep.subr.mxu0 %v1457
        %2297 = vmatpush2.msra.mxu0 %v1456
        %2298 = vmatprep.subr.mxu0 %v1449
        %2299 = vmatpush2.msra.mxu0 %v1448
        %2300 = vmatprep.subr.mxu0 %v1441
        %2301 = vmatpush2.msra.mxu0 %v1440
        %2302 = vmatprep.subr.mxu0 %v1433
        %2303 = vmatpush2.msra.mxu0 %v1432
        %2304 = vmatprep.mubr.f32.mxu0 %v710
        %2305 = vmatmul.mubr.f32.gmra.mxu0 %v708
        %v2306 = vpop.f32.mrf.mxu0
        %v2307 = vadd.f32 %v2236, %v2306
        %v2308 = vpop.f32.mrf.mxu0
        %v2309 = vadd.f32 %v2238, %v2308
        %2310 = vdwg.mxu0
        %2311 = vmatprep.subr.mxu0 %v1681
        %2312 = vmatpush1.msra.mxu0 %v1680
        %2313 = vmatprep.subr.mxu0 %v1673
        %2314 = vmatpush1.msra.mxu0 %v1672
        %2315 = vmatprep.subr.mxu0 %v1665
        %2316 = vmatpush1.msra.mxu0 %v1664
        %2317 = vmatprep.subr.mxu0 %v1657
        %2318 = vmatpush1.msra.mxu0 %v1656
        %2319 = vmatprep.subr.mxu0 %v1649
        %2320 = vmatpush1.msra.mxu0 %v1648
        %2321 = vmatprep.subr.mxu0 %v1641
        %2322 = vmatpush1.msra.mxu0 %v1640
        %2323 = vmatprep.subr.mxu0 %v1633
        %2324 = vmatpush1.msra.mxu0 %v1632
        %2325 = vmatprep.subr.mxu0 %v1625
        %2326 = vmatpush1.msra.mxu0 %v1624
        %2327 = vmatprep.subr.mxu0 %v1617
        %2328 = vmatpush1.msra.mxu0 %v1616
        %2329 = vmatprep.subr.mxu0 %v1609
        %2330 = vmatpush1.msra.mxu0 %v1608
        %2331 = vmatprep.subr.mxu0 %v1601
        %2332 = vmatpush1.msra.mxu0 %v1600
        %2333 = vmatprep.subr.mxu0 %v1593
        %2334 = vmatpush1.msra.mxu0 %v1592
        %2335 = vmatprep.subr.mxu0 %v1585
        %2336 = vmatpush1.msra.mxu0 %v1584
        %2337 = vmatprep.subr.mxu0 %v1577
        %2338 = vmatpush1.msra.mxu0 %v1576
        %2339 = vmatprep.subr.mxu0 %v1569
        %2340 = vmatpush1.msra.mxu0 %v1568
        %2341 = vmatprep.subr.mxu0 %v1561
        %2342 = vmatpush1.msra.mxu0 %v1560
        %2343 = vmatprep.subr.mxu0 %v1809
        %2344 = vmatpush2.msra.mxu0 %v1808
        %2345 = vmatprep.subr.mxu0 %v1801
        %2346 = vmatpush2.msra.mxu0 %v1800
        %2347 = vmatprep.subr.mxu0 %v1793
        %2348 = vmatpush2.msra.mxu0 %v1792
        %2349 = vmatprep.subr.mxu0 %v1785
        %2350 = vmatpush2.msra.mxu0 %v1784
        %2351 = vmatprep.subr.mxu0 %v1777
        %2352 = vmatpush2.msra.mxu0 %v1776
        %2353 = vmatprep.subr.mxu0 %v1769
        %2354 = vmatpush2.msra.mxu0 %v1768
        %2355 = vmatprep.subr.mxu0 %v1761
        %2356 = vmatpush2.msra.mxu0 %v1760
        %2357 = vmatprep.subr.mxu0 %v1753
        %2358 = vmatpush2.msra.mxu0 %v1752
        %2359 = vmatprep.subr.mxu0 %v1745
        %2360 = vmatpush2.msra.mxu0 %v1744
        %2361 = vmatprep.subr.mxu0 %v1737
        %2362 = vmatpush2.msra.mxu0 %v1736
        %2363 = vmatprep.subr.mxu0 %v1729
        %2364 = vmatpush2.msra.mxu0 %v1728
        %2365 = vmatprep.subr.mxu0 %v1721
        %2366 = vmatpush2.msra.mxu0 %v1720
        %2367 = vmatprep.subr.mxu0 %v1713
        %2368 = vmatpush2.msra.mxu0 %v1712
        %2369 = vmatprep.subr.mxu0 %v1705
        %2370 = vmatpush2.msra.mxu0 %v1704
        %2371 = vmatprep.subr.mxu0 %v1697
        %2372 = vmatpush2.msra.mxu0 %v1696
        %2373 = vmatprep.subr.mxu0 %v1689
        %2374 = vmatpush2.msra.mxu0 %v1688
        %2375 = vmatprep.mubr.f32.mxu0 %v781
        %2376 = vmatmul.mubr.f32.gmra.mxu0 %v779
        %v2377 = vpop.f32.mrf.mxu0
        %v2378 = vadd.f32 %v2307, %v2377
        %v2379 = vpop.f32.mrf.mxu0
        %v2380 = vadd.f32 %v2309, %v2379
        %2381 = vdwg.mxu0
        %2382 = vmatprep.subr.mxu0 %v915
        %2383 = vmatpush1.msra.mxu0 %v914
        %2384 = vmatprep.subr.mxu0 %v907
        %2385 = vmatpush1.msra.mxu0 %v906
        %2386 = vmatprep.subr.mxu0 %v899
        %2387 = vmatpush1.msra.mxu0 %v898
        %2388 = vmatprep.subr.mxu0 %v891
        %2389 = vmatpush1.msra.mxu0 %v890
        %2390 = vmatprep.subr.mxu0 %v883
        %2391 = vmatpush1.msra.mxu0 %v882
        %2392 = vmatprep.subr.mxu0 %v875
        %2393 = vmatpush1.msra.mxu0 %v874
        %2394 = vmatprep.subr.mxu0 %v867
        %2395 = vmatpush1.msra.mxu0 %v866
        %2396 = vmatprep.subr.mxu0 %v859
        %2397 = vmatpush1.msra.mxu0 %v858
        %2398 = vmatprep.subr.mxu0 %v851
        %2399 = vmatpush1.msra.mxu0 %v850
        %2400 = vmatprep.subr.mxu0 %v843
        %2401 = vmatpush1.msra.mxu0 %v842
        %2402 = vmatprep.subr.mxu0 %v835
        %2403 = vmatpush1.msra.mxu0 %v834
        %2404 = vmatprep.subr.mxu0 %v827
        %2405 = vmatpush1.msra.mxu0 %v826
        %2406 = vmatprep.subr.mxu0 %v819
        %2407 = vmatpush1.msra.mxu0 %v818
        %2408 = vmatprep.subr.mxu0 %v811
        %2409 = vmatpush1.msra.mxu0 %v810
        %2410 = vmatprep.subr.mxu0 %v803
        %2411 = vmatpush1.msra.mxu0 %v802
        %2412 = vmatprep.subr.mxu0 %v795
        %2413 = vmatpush1.msra.mxu0 %v794
        %2414 = vmatprep.subr.mxu0 %v1043
        %2415 = vmatpush2.msra.mxu0 %v1042
        %2416 = vmatprep.subr.mxu0 %v1035
        %2417 = vmatpush2.msra.mxu0 %v1034
        %2418 = vmatprep.subr.mxu0 %v1027
        %2419 = vmatpush2.msra.mxu0 %v1026
        %2420 = vmatprep.subr.mxu0 %v1019
        %2421 = vmatpush2.msra.mxu0 %v1018
        %2422 = vmatprep.subr.mxu0 %v1011
        %2423 = vmatpush2.msra.mxu0 %v1010
        %2424 = vmatprep.subr.mxu0 %v1003
        %2425 = vmatpush2.msra.mxu0 %v1002
        %2426 = vmatprep.subr.mxu0 %v995
        %2427 = vmatpush2.msra.mxu0 %v994
        %2428 = vmatprep.subr.mxu0 %v987
        %2429 = vmatpush2.msra.mxu0 %v986
        %2430 = vmatprep.subr.mxu0 %v979
        %2431 = vmatpush2.msra.mxu0 %v978
        %2432 = vmatprep.subr.mxu0 %v971
        %2433 = vmatpush2.msra.mxu0 %v970
        %2434 = vmatprep.subr.mxu0 %v963
        %2435 = vmatpush2.msra.mxu0 %v962
        %2436 = vmatprep.subr.mxu0 %v955
        %2437 = vmatpush2.msra.mxu0 %v954
        %2438 = vmatprep.subr.mxu0 %v947
        %2439 = vmatpush2.msra.mxu0 %v946
        %2440 = vmatprep.subr.mxu0 %v939
        %2441 = vmatpush2.msra.mxu0 %v938
        %2442 = vmatprep.subr.mxu0 %v931
        %2443 = vmatpush2.msra.mxu0 %v930
        %2444 = vmatprep.subr.mxu0 %v923
        %2445 = vmatpush2.msra.mxu0 %v922
        %2446 = vmatprep.mubr.f32.mxu0 %v568
        %2447 = vmatmul.mubr.f32.gmra.mxu0 %v566
        %v2448 = vpop.f32.mrf.mxu0
        %v2449 = vadd.f32 0.0, %v2448
        %v2450 = vpop.f32.mrf.mxu0
        %v2451 = vadd.f32 0.0, %v2450
        %2452 = vdwg.mxu0
        %2453 = vmatprep.subr.mxu0 %v1171
        %2454 = vmatpush1.msra.mxu0 %v1170
        %2455 = vmatprep.subr.mxu0 %v1163
        %2456 = vmatpush1.msra.mxu0 %v1162
        %2457 = vmatprep.subr.mxu0 %v1155
        %2458 = vmatpush1.msra.mxu0 %v1154
        %2459 = vmatprep.subr.mxu0 %v1147
        %2460 = vmatpush1.msra.mxu0 %v1146
        %2461 = vmatprep.subr.mxu0 %v1139
        %2462 = vmatpush1.msra.mxu0 %v1138
        %2463 = vmatprep.subr.mxu0 %v1131
        %2464 = vmatpush1.msra.mxu0 %v1130
        %2465 = vmatprep.subr.mxu0 %v1123
        %2466 = vmatpush1.msra.mxu0 %v1122
        %2467 = vmatprep.subr.mxu0 %v1115
        %2468 = vmatpush1.msra.mxu0 %v1114
        %2469 = vmatprep.subr.mxu0 %v1107
        %2470 = vmatpush1.msra.mxu0 %v1106
        %2471 = vmatprep.subr.mxu0 %v1099
        %2472 = vmatpush1.msra.mxu0 %v1098
        %2473 = vmatprep.subr.mxu0 %v1091
        %2474 = vmatpush1.msra.mxu0 %v1090
        %2475 = vmatprep.subr.mxu0 %v1083
        %2476 = vmatpush1.msra.mxu0 %v1082
        %2477 = vmatprep.subr.mxu0 %v1075
        %2478 = vmatpush1.msra.mxu0 %v1074
        %2479 = vmatprep.subr.mxu0 %v1067
        %2480 = vmatpush1.msra.mxu0 %v1066
        %2481 = vmatprep.subr.mxu0 %v1059
        %2482 = vmatpush1.msra.mxu0 %v1058
        %2483 = vmatprep.subr.mxu0 %v1051
        %2484 = vmatpush1.msra.mxu0 %v1050
        %2485 = vmatprep.subr.mxu0 %v1299
        %2486 = vmatpush2.msra.mxu0 %v1298
        %2487 = vmatprep.subr.mxu0 %v1291
        %2488 = vmatpush2.msra.mxu0 %v1290
        %2489 = vmatprep.subr.mxu0 %v1283
        %2490 = vmatpush2.msra.mxu0 %v1282
        %2491 = vmatprep.subr.mxu0 %v1275
        %2492 = vmatpush2.msra.mxu0 %v1274
        %2493 = vmatprep.subr.mxu0 %v1267
        %2494 = vmatpush2.msra.mxu0 %v1266
        %2495 = vmatprep.subr.mxu0 %v1259
        %2496 = vmatpush2.msra.mxu0 %v1258
        %2497 = vmatprep.subr.mxu0 %v1251
        %2498 = vmatpush2.msra.mxu0 %v1250
        %2499 = vmatprep.subr.mxu0 %v1243
        %2500 = vmatpush2.msra.mxu0 %v1242
        %2501 = vmatprep.subr.mxu0 %v1235
        %2502 = vmatpush2.msra.mxu0 %v1234
        %2503 = vmatprep.subr.mxu0 %v1227
        %2504 = vmatpush2.msra.mxu0 %v1226
        %2505 = vmatprep.subr.mxu0 %v1219
        %2506 = vmatpush2.msra.mxu0 %v1218
        %2507 = vmatprep.subr.mxu0 %v1211
        %2508 = vmatpush2.msra.mxu0 %v1210
        %2509 = vmatprep.subr.mxu0 %v1203
        %2510 = vmatpush2.msra.mxu0 %v1202
        %2511 = vmatprep.subr.mxu0 %v1195
        %2512 = vmatpush2.msra.mxu0 %v1194
        %2513 = vmatprep.subr.mxu0 %v1187
        %2514 = vmatpush2.msra.mxu0 %v1186
        %2515 = vmatprep.subr.mxu0 %v1179
        %2516 = vmatpush2.msra.mxu0 %v1178
        %2517 = vmatprep.mubr.f32.mxu0 %v639
        %2518 = vmatmul.mubr.f32.gmra.mxu0 %v637
        %v2519 = vpop.f32.mrf.mxu0
        %v2520 = vadd.f32 %v2449, %v2519
        %v2521 = vpop.f32.mrf.mxu0
        %v2522 = vadd.f32 %v2451, %v2521
        %2523 = vdwg.mxu0
        %2524 = vmatprep.subr.mxu0 %v1427
        %2525 = vmatpush1.msra.mxu0 %v1426
        %2526 = vmatprep.subr.mxu0 %v1419
        %2527 = vmatpush1.msra.mxu0 %v1418
        %2528 = vmatprep.subr.mxu0 %v1411
        %2529 = vmatpush1.msra.mxu0 %v1410
        %2530 = vmatprep.subr.mxu0 %v1403
        %2531 = vmatpush1.msra.mxu0 %v1402
        %2532 = vmatprep.subr.mxu0 %v1395
        %2533 = vmatpush1.msra.mxu0 %v1394
        %2534 = vmatprep.subr.mxu0 %v1387
        %2535 = vmatpush1.msra.mxu0 %v1386
        %2536 = vmatprep.subr.mxu0 %v1379
        %2537 = vmatpush1.msra.mxu0 %v1378
        %2538 = vmatprep.subr.mxu0 %v1371
        %2539 = vmatpush1.msra.mxu0 %v1370
        %2540 = vmatprep.subr.mxu0 %v1363
        %2541 = vmatpush1.msra.mxu0 %v1362
        %2542 = vmatprep.subr.mxu0 %v1355
        %2543 = vmatpush1.msra.mxu0 %v1354
        %2544 = vmatprep.subr.mxu0 %v1347
        %2545 = vmatpush1.msra.mxu0 %v1346
        %2546 = vmatprep.subr.mxu0 %v1339
        %2547 = vmatpush1.msra.mxu0 %v1338
        %2548 = vmatprep.subr.mxu0 %v1331
        %2549 = vmatpush1.msra.mxu0 %v1330
        %2550 = vmatprep.subr.mxu0 %v1323
        %2551 = vmatpush1.msra.mxu0 %v1322
        %2552 = vmatprep.subr.mxu0 %v1315
        %2553 = vmatpush1.msra.mxu0 %v1314
        %2554 = vmatprep.subr.mxu0 %v1307
        %2555 = vmatpush1.msra.mxu0 %v1306
        %2556 = vmatprep.subr.mxu0 %v1555
        %2557 = vmatpush2.msra.mxu0 %v1554
        %2558 = vmatprep.subr.mxu0 %v1547
        %2559 = vmatpush2.msra.mxu0 %v1546
        %2560 = vmatprep.subr.mxu0 %v1539
        %2561 = vmatpush2.msra.mxu0 %v1538
        %2562 = vmatprep.subr.mxu0 %v1531
        %2563 = vmatpush2.msra.mxu0 %v1530
        %2564 = vmatprep.subr.mxu0 %v1523
        %2565 = vmatpush2.msra.mxu0 %v1522
        %2566 = vmatprep.subr.mxu0 %v1515
        %2567 = vmatpush2.msra.mxu0 %v1514
        %2568 = vmatprep.subr.mxu0 %v1507
        %2569 = vmatpush2.msra.mxu0 %v1506
        %2570 = vmatprep.subr.mxu0 %v1499
        %2571 = vmatpush2.msra.mxu0 %v1498
        %2572 = vmatprep.subr.mxu0 %v1491
        %2573 = vmatpush2.msra.mxu0 %v1490
        %2574 = vmatprep.subr.mxu0 %v1483
        %2575 = vmatpush2.msra.mxu0 %v1482
        %2576 = vmatprep.subr.mxu0 %v1475
        %2577 = vmatpush2.msra.mxu0 %v1474
        %2578 = vmatprep.subr.mxu0 %v1467
        %2579 = vmatpush2.msra.mxu0 %v1466
        %2580 = vmatprep.subr.mxu0 %v1459
        %2581 = vmatpush2.msra.mxu0 %v1458
        %2582 = vmatprep.subr.mxu0 %v1451
        %2583 = vmatpush2.msra.mxu0 %v1450
        %2584 = vmatprep.subr.mxu0 %v1443
        %2585 = vmatpush2.msra.mxu0 %v1442
        %2586 = vmatprep.subr.mxu0 %v1435
        %2587 = vmatpush2.msra.mxu0 %v1434
        %2588 = vmatprep.mubr.f32.mxu0 %v710
        %2589 = vmatmul.mubr.f32.gmra.mxu0 %v708
        %v2590 = vpop.f32.mrf.mxu0
        %v2591 = vadd.f32 %v2520, %v2590
        %v2592 = vpop.f32.mrf.mxu0
        %v2593 = vadd.f32 %v2522, %v2592
        %2594 = vdwg.mxu0
        %2595 = vmatprep.subr.mxu0 %v1683
        %2596 = vmatpush1.msra.mxu0 %v1682
        %2597 = vmatprep.subr.mxu0 %v1675
        %2598 = vmatpush1.msra.mxu0 %v1674
        %2599 = vmatprep.subr.mxu0 %v1667
        %2600 = vmatpush1.msra.mxu0 %v1666
        %2601 = vmatprep.subr.mxu0 %v1659
        %2602 = vmatpush1.msra.mxu0 %v1658
        %2603 = vmatprep.subr.mxu0 %v1651
        %2604 = vmatpush1.msra.mxu0 %v1650
        %2605 = vmatprep.subr.mxu0 %v1643
        %2606 = vmatpush1.msra.mxu0 %v1642
        %2607 = vmatprep.subr.mxu0 %v1635
        %2608 = vmatpush1.msra.mxu0 %v1634
        %2609 = vmatprep.subr.mxu0 %v1627
        %2610 = vmatpush1.msra.mxu0 %v1626
        %2611 = vmatprep.subr.mxu0 %v1619
        %2612 = vmatpush1.msra.mxu0 %v1618
        %2613 = vmatprep.subr.mxu0 %v1611
        %2614 = vmatpush1.msra.mxu0 %v1610
        %2615 = vmatprep.subr.mxu0 %v1603
        %2616 = vmatpush1.msra.mxu0 %v1602
        %2617 = vmatprep.subr.mxu0 %v1595
        %2618 = vmatpush1.msra.mxu0 %v1594
        %2619 = vmatprep.subr.mxu0 %v1587
        %2620 = vmatpush1.msra.mxu0 %v1586
        %2621 = vmatprep.subr.mxu0 %v1579
        %2622 = vmatpush1.msra.mxu0 %v1578
        %2623 = vmatprep.subr.mxu0 %v1571
        %2624 = vmatpush1.msra.mxu0 %v1570
        %2625 = vmatprep.subr.mxu0 %v1563
        %2626 = vmatpush1.msra.mxu0 %v1562
        %2627 = vmatprep.subr.mxu0 %v1811
        %2628 = vmatpush2.msra.mxu0 %v1810
        %2629 = vmatprep.subr.mxu0 %v1803
        %2630 = vmatpush2.msra.mxu0 %v1802
        %2631 = vmatprep.subr.mxu0 %v1795
        %2632 = vmatpush2.msra.mxu0 %v1794
        %2633 = vmatprep.subr.mxu0 %v1787
        %2634 = vmatpush2.msra.mxu0 %v1786
        %2635 = vmatprep.subr.mxu0 %v1779
        %2636 = vmatpush2.msra.mxu0 %v1778
        %2637 = vmatprep.subr.mxu0 %v1771
        %2638 = vmatpush2.msra.mxu0 %v1770
        %2639 = vmatprep.subr.mxu0 %v1763
        %2640 = vmatpush2.msra.mxu0 %v1762
        %2641 = vmatprep.subr.mxu0 %v1755
        %2642 = vmatpush2.msra.mxu0 %v1754
        %2643 = vmatprep.subr.mxu0 %v1747
        %2644 = vmatpush2.msra.mxu0 %v1746
        %2645 = vmatprep.subr.mxu0 %v1739
        %2646 = vmatpush2.msra.mxu0 %v1738
        %2647 = vmatprep.subr.mxu0 %v1731
        %2648 = vmatpush2.msra.mxu0 %v1730
        %2649 = vmatprep.subr.mxu0 %v1723
        %2650 = vmatpush2.msra.mxu0 %v1722
        %2651 = vmatprep.subr.mxu0 %v1715
        %2652 = vmatpush2.msra.mxu0 %v1714
        %2653 = vmatprep.subr.mxu0 %v1707
        %2654 = vmatpush2.msra.mxu0 %v1706
        %2655 = vmatprep.subr.mxu0 %v1699
        %2656 = vmatpush2.msra.mxu0 %v1698
        %2657 = vmatprep.subr.mxu0 %v1691
        %2658 = vmatpush2.msra.mxu0 %v1690
        %2659 = vmatprep.mubr.f32.mxu0 %v781
        %2660 = vmatmul.mubr.f32.gmra.mxu0 %v779
        %v2661 = vpop.f32.mrf.mxu0
        %v2662 = vadd.f32 %v2591, %v2661
        %v2663 = vpop.f32.mrf.mxu0
        %v2664 = vadd.f32 %v2593, %v2663
        %2665 = vdwg.mxu0
        %2666 = vmatprep.subr.mxu0 %v917
        %2667 = vmatpush1.msra.mxu0 %v916
        %2668 = vmatprep.subr.mxu0 %v909
        %2669 = vmatpush1.msra.mxu0 %v908
        %2670 = vmatprep.subr.mxu0 %v901
        %2671 = vmatpush1.msra.mxu0 %v900
        %2672 = vmatprep.subr.mxu0 %v893
        %2673 = vmatpush1.msra.mxu0 %v892
        %2674 = vmatprep.subr.mxu0 %v885
        %2675 = vmatpush1.msra.mxu0 %v884
        %2676 = vmatprep.subr.mxu0 %v877
        %2677 = vmatpush1.msra.mxu0 %v876
        %2678 = vmatprep.subr.mxu0 %v869
        %2679 = vmatpush1.msra.mxu0 %v868
        %2680 = vmatprep.subr.mxu0 %v861
        %2681 = vmatpush1.msra.mxu0 %v860
        %2682 = vmatprep.subr.mxu0 %v853
        %2683 = vmatpush1.msra.mxu0 %v852
        %2684 = vmatprep.subr.mxu0 %v845
        %2685 = vmatpush1.msra.mxu0 %v844
        %2686 = vmatprep.subr.mxu0 %v837
        %2687 = vmatpush1.msra.mxu0 %v836
        %2688 = vmatprep.subr.mxu0 %v829
        %2689 = vmatpush1.msra.mxu0 %v828
        %2690 = vmatprep.subr.mxu0 %v821
        %2691 = vmatpush1.msra.mxu0 %v820
        %2692 = vmatprep.subr.mxu0 %v813
        %2693 = vmatpush1.msra.mxu0 %v812
        %2694 = vmatprep.subr.mxu0 %v805
        %2695 = vmatpush1.msra.mxu0 %v804
        %2696 = vmatprep.subr.mxu0 %v797
        %2697 = vmatpush1.msra.mxu0 %v796
        %2698 = vmatprep.subr.mxu0 %v1045
        %2699 = vmatpush2.msra.mxu0 %v1044
        %2700 = vmatprep.subr.mxu0 %v1037
        %2701 = vmatpush2.msra.mxu0 %v1036
        %2702 = vmatprep.subr.mxu0 %v1029
        %2703 = vmatpush2.msra.mxu0 %v1028
        %2704 = vmatprep.subr.mxu0 %v1021
        %2705 = vmatpush2.msra.mxu0 %v1020
        %2706 = vmatprep.subr.mxu0 %v1013
        %2707 = vmatpush2.msra.mxu0 %v1012
        %2708 = vmatprep.subr.mxu0 %v1005
        %2709 = vmatpush2.msra.mxu0 %v1004
        %2710 = vmatprep.subr.mxu0 %v997
        %2711 = vmatpush2.msra.mxu0 %v996
        %2712 = vmatprep.subr.mxu0 %v989
        %2713 = vmatpush2.msra.mxu0 %v988
        %2714 = vmatprep.subr.mxu0 %v981
        %2715 = vmatpush2.msra.mxu0 %v980
        %2716 = vmatprep.subr.mxu0 %v973
        %2717 = vmatpush2.msra.mxu0 %v972
        %2718 = vmatprep.subr.mxu0 %v965
        %2719 = vmatpush2.msra.mxu0 %v964
        %2720 = vmatprep.subr.mxu0 %v957
        %2721 = vmatpush2.msra.mxu0 %v956
        %2722 = vmatprep.subr.mxu0 %v949
        %2723 = vmatpush2.msra.mxu0 %v948
        %2724 = vmatprep.subr.mxu0 %v941
        %2725 = vmatpush2.msra.mxu0 %v940
        %2726 = vmatprep.subr.mxu0 %v933
        %2727 = vmatpush2.msra.mxu0 %v932
        %2728 = vmatprep.subr.mxu0 %v925
        %2729 = vmatpush2.msra.mxu0 %v924
        %2730 = vmatprep.mubr.f32.mxu0 %v568
        %2731 = vmatmul.mubr.f32.gmra.mxu0 %v566
        %v2732 = vpop.f32.mrf.mxu0
        %v2733 = vadd.f32 0.0, %v2732
        %v2734 = vpop.f32.mrf.mxu0
        %v2735 = vadd.f32 0.0, %v2734
        %2736 = vdwg.mxu0
        %2737 = vmatprep.subr.mxu0 %v1173
        %2738 = vmatpush1.msra.mxu0 %v1172
        %2739 = vmatprep.subr.mxu0 %v1165
        %2740 = vmatpush1.msra.mxu0 %v1164
        %2741 = vmatprep.subr.mxu0 %v1157
        %2742 = vmatpush1.msra.mxu0 %v1156
        %2743 = vmatprep.subr.mxu0 %v1149
        %2744 = vmatpush1.msra.mxu0 %v1148
        %2745 = vmatprep.subr.mxu0 %v1141
        %2746 = vmatpush1.msra.mxu0 %v1140
        %2747 = vmatprep.subr.mxu0 %v1133
        %2748 = vmatpush1.msra.mxu0 %v1132
        %2749 = vmatprep.subr.mxu0 %v1125
        %2750 = vmatpush1.msra.mxu0 %v1124
        %2751 = vmatprep.subr.mxu0 %v1117
        %2752 = vmatpush1.msra.mxu0 %v1116
        %2753 = vmatprep.subr.mxu0 %v1109
        %2754 = vmatpush1.msra.mxu0 %v1108
        %2755 = vmatprep.subr.mxu0 %v1101
        %2756 = vmatpush1.msra.mxu0 %v1100
        %2757 = vmatprep.subr.mxu0 %v1093
        %2758 = vmatpush1.msra.mxu0 %v1092
        %2759 = vmatprep.subr.mxu0 %v1085
        %2760 = vmatpush1.msra.mxu0 %v1084
        %2761 = vmatprep.subr.mxu0 %v1077
        %2762 = vmatpush1.msra.mxu0 %v1076
        %2763 = vmatprep.subr.mxu0 %v1069
        %2764 = vmatpush1.msra.mxu0 %v1068
        %2765 = vmatprep.subr.mxu0 %v1061
        %2766 = vmatpush1.msra.mxu0 %v1060
        %2767 = vmatprep.subr.mxu0 %v1053
        %2768 = vmatpush1.msra.mxu0 %v1052
        %2769 = vmatprep.subr.mxu0 %v1301
        %2770 = vmatpush2.msra.mxu0 %v1300
        %2771 = vmatprep.subr.mxu0 %v1293
        %2772 = vmatpush2.msra.mxu0 %v1292
        %2773 = vmatprep.subr.mxu0 %v1285
        %2774 = vmatpush2.msra.mxu0 %v1284
        %2775 = vmatprep.subr.mxu0 %v1277
        %2776 = vmatpush2.msra.mxu0 %v1276
        %2777 = vmatprep.subr.mxu0 %v1269
        %2778 = vmatpush2.msra.mxu0 %v1268
        %2779 = vmatprep.subr.mxu0 %v1261
        %2780 = vmatpush2.msra.mxu0 %v1260
        %2781 = vmatprep.subr.mxu0 %v1253
        %2782 = vmatpush2.msra.mxu0 %v1252
        %2783 = vmatprep.subr.mxu0 %v1245
        %2784 = vmatpush2.msra.mxu0 %v1244
        %2785 = vmatprep.subr.mxu0 %v1237
        %2786 = vmatpush2.msra.mxu0 %v1236
        %2787 = vmatprep.subr.mxu0 %v1229
        %2788 = vmatpush2.msra.mxu0 %v1228
        %2789 = vmatprep.subr.mxu0 %v1221
        %2790 = vmatpush2.msra.mxu0 %v1220
        %2791 = vmatprep.subr.mxu0 %v1213
        %2792 = vmatpush2.msra.mxu0 %v1212
        %2793 = vmatprep.subr.mxu0 %v1205
        %2794 = vmatpush2.msra.mxu0 %v1204
        %2795 = vmatprep.subr.mxu0 %v1197
        %2796 = vmatpush2.msra.mxu0 %v1196
        %2797 = vmatprep.subr.mxu0 %v1189
        %2798 = vmatpush2.msra.mxu0 %v1188
        %2799 = vmatprep.subr.mxu0 %v1181
        %2800 = vmatpush2.msra.mxu0 %v1180
        %2801 = vmatprep.mubr.f32.mxu0 %v639
        %2802 = vmatmul.mubr.f32.gmra.mxu0 %v637
        %v2803 = vpop.f32.mrf.mxu0
        %v2804 = vadd.f32 %v2733, %v2803
        %v2805 = vpop.f32.mrf.mxu0
        %v2806 = vadd.f32 %v2735, %v2805
        %2807 = vdwg.mxu0
        %2808 = vmatprep.subr.mxu0 %v1429
        %2809 = vmatpush1.msra.mxu0 %v1428
        %2810 = vmatprep.subr.mxu0 %v1421
        %2811 = vmatpush1.msra.mxu0 %v1420
        %2812 = vmatprep.subr.mxu0 %v1413
        %2813 = vmatpush1.msra.mxu0 %v1412
        %2814 = vmatprep.subr.mxu0 %v1405
        %2815 = vmatpush1.msra.mxu0 %v1404
        %2816 = vmatprep.subr.mxu0 %v1397
        %2817 = vmatpush1.msra.mxu0 %v1396
        %2818 = vmatprep.subr.mxu0 %v1389
        %2819 = vmatpush1.msra.mxu0 %v1388
        %2820 = vmatprep.subr.mxu0 %v1381
        %2821 = vmatpush1.msra.mxu0 %v1380
        %2822 = vmatprep.subr.mxu0 %v1373
        %2823 = vmatpush1.msra.mxu0 %v1372
        %2824 = vmatprep.subr.mxu0 %v1365
        %2825 = vmatpush1.msra.mxu0 %v1364
        %2826 = vmatprep.subr.mxu0 %v1357
        %2827 = vmatpush1.msra.mxu0 %v1356
        %2828 = vmatprep.subr.mxu0 %v1349
        %2829 = vmatpush1.msra.mxu0 %v1348
        %2830 = vmatprep.subr.mxu0 %v1341
        %2831 = vmatpush1.msra.mxu0 %v1340
        %2832 = vmatprep.subr.mxu0 %v1333
        %2833 = vmatpush1.msra.mxu0 %v1332
        %2834 = vmatprep.subr.mxu0 %v1325
        %2835 = vmatpush1.msra.mxu0 %v1324
        %2836 = vmatprep.subr.mxu0 %v1317
        %2837 = vmatpush1.msra.mxu0 %v1316
        %2838 = vmatprep.subr.mxu0 %v1309
        %2839 = vmatpush1.msra.mxu0 %v1308
        %2840 = vmatprep.subr.mxu0 %v1557
        %2841 = vmatpush2.msra.mxu0 %v1556
        %2842 = vmatprep.subr.mxu0 %v1549
        %2843 = vmatpush2.msra.mxu0 %v1548
        %2844 = vmatprep.subr.mxu0 %v1541
        %2845 = vmatpush2.msra.mxu0 %v1540
        %2846 = vmatprep.subr.mxu0 %v1533
        %2847 = vmatpush2.msra.mxu0 %v1532
        %2848 = vmatprep.subr.mxu0 %v1525
        %2849 = vmatpush2.msra.mxu0 %v1524
        %2850 = vmatprep.subr.mxu0 %v1517
        %2851 = vmatpush2.msra.mxu0 %v1516
        %2852 = vmatprep.subr.mxu0 %v1509
        %2853 = vmatpush2.msra.mxu0 %v1508
        %2854 = vmatprep.subr.mxu0 %v1501
        %2855 = vmatpush2.msra.mxu0 %v1500
        %2856 = vmatprep.subr.mxu0 %v1493
        %2857 = vmatpush2.msra.mxu0 %v1492
        %2858 = vmatprep.subr.mxu0 %v1485
        %2859 = vmatpush2.msra.mxu0 %v1484
        %2860 = vmatprep.subr.mxu0 %v1477
        %2861 = vmatpush2.msra.mxu0 %v1476
        %2862 = vmatprep.subr.mxu0 %v1469
        %2863 = vmatpush2.msra.mxu0 %v1468
        %2864 = vmatprep.subr.mxu0 %v1461
        %2865 = vmatpush2.msra.mxu0 %v1460
        %2866 = vmatprep.subr.mxu0 %v1453
        %2867 = vmatpush2.msra.mxu0 %v1452
        %2868 = vmatprep.subr.mxu0 %v1445
        %2869 = vmatpush2.msra.mxu0 %v1444
        %2870 = vmatprep.subr.mxu0 %v1437
        %2871 = vmatpush2.msra.mxu0 %v1436
        %2872 = vmatprep.mubr.f32.mxu0 %v710
        %2873 = vmatmul.mubr.f32.gmra.mxu0 %v708
        %v2874 = vpop.f32.mrf.mxu0
        %v2875 = vadd.f32 %v2804, %v2874
        %v2876 = vpop.f32.mrf.mxu0
        %v2877 = vadd.f32 %v2806, %v2876
        %2878 = vdwg.mxu0
        %2879 = vmatprep.subr.mxu0 %v1685
        %2880 = vmatpush1.msra.mxu0 %v1684
        %2881 = vmatprep.subr.mxu0 %v1677
        %2882 = vmatpush1.msra.mxu0 %v1676
        %2883 = vmatprep.subr.mxu0 %v1669
        %2884 = vmatpush1.msra.mxu0 %v1668
        %2885 = vmatprep.subr.mxu0 %v1661
        %2886 = vmatpush1.msra.mxu0 %v1660
        %2887 = vmatprep.subr.mxu0 %v1653
        %2888 = vmatpush1.msra.mxu0 %v1652
        %2889 = vmatprep.subr.mxu0 %v1645
        %2890 = vmatpush1.msra.mxu0 %v1644
        %2891 = vmatprep.subr.mxu0 %v1637
        %2892 = vmatpush1.msra.mxu0 %v1636
        %2893 = vmatprep.subr.mxu0 %v1629
        %2894 = vmatpush1.msra.mxu0 %v1628
        %2895 = vmatprep.subr.mxu0 %v1621
        %2896 = vmatpush1.msra.mxu0 %v1620
        %2897 = vmatprep.subr.mxu0 %v1613
        %2898 = vmatpush1.msra.mxu0 %v1612
        %2899 = vmatprep.subr.mxu0 %v1605
        %2900 = vmatpush1.msra.mxu0 %v1604
        %2901 = vmatprep.subr.mxu0 %v1597
        %2902 = vmatpush1.msra.mxu0 %v1596
        %2903 = vmatprep.subr.mxu0 %v1589
        %2904 = vmatpush1.msra.mxu0 %v1588
        %2905 = vmatprep.subr.mxu0 %v1581
        %2906 = vmatpush1.msra.mxu0 %v1580
        %2907 = vmatprep.subr.mxu0 %v1573
        %2908 = vmatpush1.msra.mxu0 %v1572
        %2909 = vmatprep.subr.mxu0 %v1565
        %2910 = vmatpush1.msra.mxu0 %v1564
        %2911 = vmatprep.subr.mxu0 %v1813
        %2912 = vmatpush2.msra.mxu0 %v1812
        %2913 = vmatprep.subr.mxu0 %v1805
        %2914 = vmatpush2.msra.mxu0 %v1804
        %2915 = vmatprep.subr.mxu0 %v1797
        %2916 = vmatpush2.msra.mxu0 %v1796
        %2917 = vmatprep.subr.mxu0 %v1789
        %2918 = vmatpush2.msra.mxu0 %v1788
        %2919 = vmatprep.subr.mxu0 %v1781
        %2920 = vmatpush2.msra.mxu0 %v1780
        %2921 = vmatprep.subr.mxu0 %v1773
        %2922 = vmatpush2.msra.mxu0 %v1772
        %2923 = vmatprep.subr.mxu0 %v1765
        %2924 = vmatpush2.msra.mxu0 %v1764
        %2925 = vmatprep.subr.mxu0 %v1757
        %2926 = vmatpush2.msra.mxu0 %v1756
        %2927 = vmatprep.subr.mxu0 %v1749
        %2928 = vmatpush2.msra.mxu0 %v1748
        %2929 = vmatprep.subr.mxu0 %v1741
        %2930 = vmatpush2.msra.mxu0 %v1740
        %2931 = vmatprep.subr.mxu0 %v1733
        %2932 = vmatpush2.msra.mxu0 %v1732
        %2933 = vmatprep.subr.mxu0 %v1725
        %2934 = vmatpush2.msra.mxu0 %v1724
        %2935 = vmatprep.subr.mxu0 %v1717
        %2936 = vmatpush2.msra.mxu0 %v1716
        %2937 = vmatprep.subr.mxu0 %v1709
        %2938 = vmatpush2.msra.mxu0 %v1708
        %2939 = vmatprep.subr.mxu0 %v1701
        %2940 = vmatpush2.msra.mxu0 %v1700
        %2941 = vmatprep.subr.mxu0 %v1693
        %2942 = vmatpush2.msra.mxu0 %v1692
        %2943 = vmatprep.mubr.f32.mxu0 %v781
        %2944 = vmatmul.mubr.f32.gmra.mxu0 %v779
        %v2945 = vpop.f32.mrf.mxu0
        %v2946 = vadd.f32 %v2875, %v2945
        %v2947 = vpop.f32.mrf.mxu0
        %v2948 = vadd.f32 %v2877, %v2947
        %2949 = vdwg.mxu0
        %v2958 = vcombine.low %v2094, %v2096
        %v2959 = vcombine.low %v2378, %v2380
        %v2960 = vcombine.low %v2662, %v2664
        %v2961 = vcombine.low %v2946, %v2948
        %v2963 = vunpack.c.l.s4 1966171168
        %v2964 = vunpack.c.0.s8 %v2963
        %v2965 = vlaneseq
        %v2966 = vshrl.u32 %v2965, 7
        %v2967 = vsub.s32 %v2964, %v2966
        %v2968 = vrot.slane %v2958, %v2967
        %v2970 = vunpack.c.l.s4 1966171168
        %v2971 = vunpack.c.0.s8 %v2970
        %v2972 = vlaneseq
        %v2973 = vshrl.u32 %v2972, 7
        %v2974 = vsub.s32 %v2971, %v2973
        %v2975 = vrot.slane %v2959, %v2974
        %v2977 = vunpack.c.l.s4 1966171168
        %v2978 = vunpack.c.0.s8 %v2977
        %v2979 = vlaneseq
        %v2980 = vshrl.u32 %v2979, 7
        %v2981 = vsub.s32 %v2978, %v2980
        %v2982 = vrot.slane %v2960, %v2981
        %v2984 = vunpack.c.l.s4 1966171168
        %v2985 = vunpack.c.0.s8 %v2984
        %v2986 = vlaneseq
        %v2987 = vshrl.u32 %v2986, 7
        %v2988 = vsub.s32 %v2985, %v2987
        %v2989 = vrot.slane %v2961, %v2988
        %v2990 = vcombine.low %v2968, %v2975
        %v2991 = vcombine.low %v2982, %v2989
        %v2993 = vunpack.c.l.s4 1966171168
        %v2994 = vunpack.c.0.s8 %v2993
        %v2995 = vlaneseq
        %v2996 = vshrl.u32 %v2995, 7
        %v2997 = vsub.s32 %v2994, %v2996
        %v2998 = vrot.slane %v2990, %v2997
        %v3000 = vunpack.c.l.s4 1966171168
        %v3001 = vunpack.c.0.s8 %v3000
        %v3002 = vlaneseq
        %v3003 = vshrl.u32 %v3002, 7
        %v3004 = vsub.s32 %v3001, %v3003
        %v3005 = vrot.slane %v2991, %v3004
        %v3006 = vcombine.low %v2998, %v3005
        %v3008 = vadd.f32 %v789, %v3006
        %3009 = vst [vmem:[#allocation2] sm:$0xff] %v3008
        %p3010 = scmp.eq.s32.totalorder %s27, 3
        // Predicated region
        $region85: #{grad_cam_radio_forward.1} parent=55 // pred_check
          %p3011 = pneg %p3010
        $region86: #{grad_cam_radio_forward.1} parent=55 // pred_check_branch
          %3013 = sbr.rel (%p3011) target = $region88
        $region87: #{grad_cam_radio_forward.1} parent=55 // pred_region
          %v3014 = vld [vmem:[#allocation2] sm:$0xff]
          %v3015 = vld [vmem:[#allocation8] sm:$0xff]
          %v3016 = vld [vmem:[#allocation8 + $0x8] sm:$0xff]
          %v3017 = vld [vmem:[#allocation8 + $0x10] sm:$0xff]
          %v3018 = vld [vmem:[#allocation8 + $0x18] sm:$0xff]
          %v3019 = vld [vmem:[#allocation8 + $0x20] sm:$0xff]
          %v3020 = vld [vmem:[#allocation8 + $0x28] sm:$0xff]
          %v3021 = vld [vmem:[#allocation8 + $0x30] sm:$0xff]
          %v3022 = vld [vmem:[#allocation8 + $0x38] sm:$0xff]
          %v3023 = vld [vmem:[#allocation8 + $0x40] sm:$0xff]
          %v3024 = vld [vmem:[#allocation8 + $0x48] sm:$0xff]
          %v3025 = vld [vmem:[#allocation8 + $0x50] sm:$0xff]
          %v3026 = vld [vmem:[#allocation8 + $0x58] sm:$0xff]
          %v3027 = vld [vmem:[#allocation8 + $0x60] sm:$0xff]
          %v3028 = vld [vmem:[#allocation8 + $0x68] sm:$0xff]
          %v3029 = vld [vmem:[#allocation8 + $0x70] sm:$0xff]
          %v3030 = vld [vmem:[#allocation8 + $0x78] sm:$0xff]
          %v3031 = vld [vmem:[#allocation8 + $0x80] sm:$0xff]
          %v3032 = vld [vmem:[#allocation8 + $0x88] sm:$0xff]
          %v3033 = vld [vmem:[#allocation8 + $0x90] sm:$0xff]
          %v3034 = vld [vmem:[#allocation8 + $0x98] sm:$0xff]
          %v3035 = vld [vmem:[#allocation8 + $0xa0] sm:$0xff]
          %v3036 = vld [vmem:[#allocation8 + $0xa8] sm:$0xff]
          %v3037 = vld [vmem:[#allocation8 + $0xb0] sm:$0xff]
          %v3038 = vld [vmem:[#allocation8 + $0xb8] sm:$0xff]
          %v3039 = vld [vmem:[#allocation8 + $0xc0] sm:$0xff]
          %v3040 = vld [vmem:[#allocation8 + $0xc8] sm:$0xff]
          %v3041 = vld [vmem:[#allocation8 + $0xd0] sm:$0xff]
          %v3042 = vld [vmem:[#allocation8 + $0xd8] sm:$0xff]
          %v3043 = vld [vmem:[#allocation8 + $0xe0] sm:$0xff]
          %v3044 = vld [vmem:[#allocation8 + $0xe8] sm:$0xff]
          %v3045 = vld [vmem:[#allocation8 + $0xf0] sm:$0xff]
          %v3046 = vld [vmem:[#allocation8 + $0xf8] sm:$0xff]
          %v3047 = vld [vmem:[#allocation8 + $0x100] sm:$0xff]
          %v3048 = vld [vmem:[#allocation8 + $0x108] sm:$0xff]
          %v3049 = vld [vmem:[#allocation8 + $0x110] sm:$0xff]
          %v3050 = vld [vmem:[#allocation8 + $0x118] sm:$0xff]
          %v3051 = vld [vmem:[#allocation8 + $0x120] sm:$0xff]
          %v3052 = vld [vmem:[#allocation8 + $0x128] sm:$0xff]
          %v3053 = vld [vmem:[#allocation8 + $0x130] sm:$0xff]
          %v3054 = vld [vmem:[#allocation8 + $0x138] sm:$0xff]
          %v3055 = vld [vmem:[#allocation8 + $0x140] sm:$0xff]
          %v3056 = vld [vmem:[#allocation8 + $0x148] sm:$0xff]
          %v3057 = vld [vmem:[#allocation8 + $0x150] sm:$0xff]
          %v3058 = vld [vmem:[#allocation8 + $0x158] sm:$0xff]
          %v3059 = vld [vmem:[#allocation8 + $0x160] sm:$0xff]
          %v3060 = vld [vmem:[#allocation8 + $0x168] sm:$0xff]
          %v3061 = vld [vmem:[#allocation8 + $0x170] sm:$0xff]
          %v3062 = vld [vmem:[#allocation8 + $0x178] sm:$0xff]
          %v3063 = vld [vmem:[#allocation8 + $0x180] sm:$0xff]
          %v3064 = vld [vmem:[#allocation8 + $0x188] sm:$0xff]
          %v3065 = vld [vmem:[#allocation8 + $0x190] sm:$0xff]
          %v3066 = vld [vmem:[#allocation8 + $0x198] sm:$0xff]
          %v3067 = vld [vmem:[#allocation8 + $0x1a0] sm:$0xff]
          %v3068 = vld [vmem:[#allocation8 + $0x1a8] sm:$0xff]
          %v3069 = vld [vmem:[#allocation8 + $0x1b0] sm:$0xff]
          %v3070 = vld [vmem:[#allocation8 + $0x1b8] sm:$0xff]
          %v3071 = vld [vmem:[#allocation8 + $0x1c0] sm:$0xff]
          %v3072 = vld [vmem:[#allocation8 + $0x1c8] sm:$0xff]
          %v3073 = vld [vmem:[#allocation8 + $0x1d0] sm:$0xff]
          %v3074 = vld [vmem:[#allocation8 + $0x1d8] sm:$0xff]
          %v3075 = vld [vmem:[#allocation8 + $0x1e0] sm:$0xff]
          %v3076 = vld [vmem:[#allocation8 + $0x1e8] sm:$0xff]
          %v3077 = vld [vmem:[#allocation8 + $0x1f0] sm:$0xff]
          %v3078 = vld [vmem:[#allocation8 + $0x1f8] sm:$0xff]
          %v3079 = vld [vmem:[#allocation8 + $0x200] sm:$0xff]
          %v3080 = vld [vmem:[#allocation8 + $0x208] sm:$0xff]
          %v3081 = vld [vmem:[#allocation8 + $0x210] sm:$0xff]
          %v3082 = vld [vmem:[#allocation8 + $0x218] sm:$0xff]
          %v3083 = vld [vmem:[#allocation8 + $0x220] sm:$0xff]
          %v3084 = vld [vmem:[#allocation8 + $0x228] sm:$0xff]
          %v3085 = vld [vmem:[#allocation8 + $0x230] sm:$0xff]
          %v3086 = vld [vmem:[#allocation8 + $0x238] sm:$0xff]
          %v3087 = vld [vmem:[#allocation8 + $0x240] sm:$0xff]
          %v3088 = vld [vmem:[#allocation8 + $0x248] sm:$0xff]
          %v3089 = vld [vmem:[#allocation8 + $0x250] sm:$0xff]
          %v3090 = vld [vmem:[#allocation8 + $0x258] sm:$0xff]
          %v3091 = vld [vmem:[#allocation8 + $0x260] sm:$0xff]
          %v3092 = vld [vmem:[#allocation8 + $0x268] sm:$0xff]
          %v3093 = vld [vmem:[#allocation8 + $0x270] sm:$0xff]
          %v3094 = vld [vmem:[#allocation8 + $0x278] sm:$0xff]
          %v3095 = vld [vmem:[#allocation8 + $0x280] sm:$0xff]
          %v3096 = vld [vmem:[#allocation8 + $0x288] sm:$0xff]
          %v3097 = vld [vmem:[#allocation8 + $0x290] sm:$0xff]
          %v3098 = vld [vmem:[#allocation8 + $0x298] sm:$0xff]
          %v3099 = vld [vmem:[#allocation8 + $0x2a0] sm:$0xff]
          %v3100 = vld [vmem:[#allocation8 + $0x2a8] sm:$0xff]
          %v3101 = vld [vmem:[#allocation8 + $0x2b0] sm:$0xff]
          %v3102 = vld [vmem:[#allocation8 + $0x2b8] sm:$0xff]
          %v3103 = vld [vmem:[#allocation8 + $0x2c0] sm:$0xff]
          %v3104 = vld [vmem:[#allocation8 + $0x2c8] sm:$0xff]
          %v3105 = vld [vmem:[#allocation8 + $0x2d0] sm:$0xff]
          %v3106 = vld [vmem:[#allocation8 + $0x2d8] sm:$0xff]
          %v3107 = vld [vmem:[#allocation8 + $0x2e0] sm:$0xff]
          %v3108 = vld [vmem:[#allocation8 + $0x2e8] sm:$0xff]
          %v3109 = vld [vmem:[#allocation8 + $0x2f0] sm:$0xff]
          %v3110 = vld [vmem:[#allocation8 + $0x2f8] sm:$0xff]
          %v3111 = vld [vmem:[#allocation8 + $0x300] sm:$0xff]
          %v3112 = vld [vmem:[#allocation8 + $0x308] sm:$0xff]
          %v3113 = vld [vmem:[#allocation8 + $0x310] sm:$0xff]
          %v3114 = vld [vmem:[#allocation8 + $0x318] sm:$0xff]
          %v3115 = vld [vmem:[#allocation8 + $0x320] sm:$0xff]
          %v3116 = vld [vmem:[#allocation8 + $0x328] sm:$0xff]
          %v3117 = vld [vmem:[#allocation8 + $0x330] sm:$0xff]
          %v3118 = vld [vmem:[#allocation8 + $0x338] sm:$0xff]
          %v3119 = vld [vmem:[#allocation8 + $0x340] sm:$0xff]
          %v3120 = vld [vmem:[#allocation8 + $0x348] sm:$0xff]
          %v3121 = vld [vmem:[#allocation8 + $0x350] sm:$0xff]
          %v3122 = vld [vmem:[#allocation8 + $0x358] sm:$0xff]
          %v3123 = vld [vmem:[#allocation8 + $0x360] sm:$0xff]
          %v3124 = vld [vmem:[#allocation8 + $0x368] sm:$0xff]
          %v3125 = vld [vmem:[#allocation8 + $0x370] sm:$0xff]
          %v3126 = vld [vmem:[#allocation8 + $0x378] sm:$0xff]
          %v3127 = vld [vmem:[#allocation8 + $0x380] sm:$0xff]
          %v3128 = vld [vmem:[#allocation8 + $0x388] sm:$0xff]
          %v3129 = vld [vmem:[#allocation8 + $0x390] sm:$0xff]
          %v3130 = vld [vmem:[#allocation8 + $0x398] sm:$0xff]
          %v3131 = vld [vmem:[#allocation8 + $0x3a0] sm:$0xff]
          %v3132 = vld [vmem:[#allocation8 + $0x3a8] sm:$0xff]
          %v3133 = vld [vmem:[#allocation8 + $0x3b0] sm:$0xff]
          %v3134 = vld [vmem:[#allocation8 + $0x3b8] sm:$0xff]
          %v3135 = vld [vmem:[#allocation8 + $0x3c0] sm:$0xff]
          %v3136 = vld [vmem:[#allocation8 + $0x3c8] sm:$0xff]
          %v3137 = vld [vmem:[#allocation8 + $0x3d0] sm:$0xff]
          %v3138 = vld [vmem:[#allocation8 + $0x3d8] sm:$0xff]
          %v3139 = vld [vmem:[#allocation8 + $0x3e0] sm:$0xff]
          %v3140 = vld [vmem:[#allocation8 + $0x3e8] sm:$0xff]
          %v3141 = vld [vmem:[#allocation8 + $0x3f0] sm:$0xff]
          %v3142 = vld [vmem:[#allocation8 + $0x3f8] sm:$0xff]
          %v3143 = vld [vmem:[#allocation8 + $0x400] sm:$0xff]
          %v3144 = vld [vmem:[#allocation8 + $0x408] sm:$0xff]
          %v3145 = vld [vmem:[#allocation8 + $0x410] sm:$0xff]
          %v3146 = vld [vmem:[#allocation8 + $0x418] sm:$0xff]
          %v3147 = vld [vmem:[#allocation8 + $0x420] sm:$0xff]
          %v3148 = vld [vmem:[#allocation8 + $0x428] sm:$0xff]
          %v3149 = vld [vmem:[#allocation8 + $0x430] sm:$0xff]
          %v3150 = vld [vmem:[#allocation8 + $0x438] sm:$0xff]
          %v3151 = vld [vmem:[#allocation8 + $0x440] sm:$0xff]
          %v3152 = vld [vmem:[#allocation8 + $0x448] sm:$0xff]
          %v3153 = vld [vmem:[#allocation8 + $0x450] sm:$0xff]
          %v3154 = vld [vmem:[#allocation8 + $0x458] sm:$0xff]
          %v3155 = vld [vmem:[#allocation8 + $0x460] sm:$0xff]
          %v3156 = vld [vmem:[#allocation8 + $0x468] sm:$0xff]
          %v3157 = vld [vmem:[#allocation8 + $0x470] sm:$0xff]
          %v3158 = vld [vmem:[#allocation8 + $0x478] sm:$0xff]
          %v3159 = vld [vmem:[#allocation8 + $0x480] sm:$0xff]
          %v3160 = vld [vmem:[#allocation8 + $0x488] sm:$0xff]
          %v3161 = vld [vmem:[#allocation8 + $0x490] sm:$0xff]
          %v3162 = vld [vmem:[#allocation8 + $0x498] sm:$0xff]
          %v3163 = vld [vmem:[#allocation8 + $0x4a0] sm:$0xff]
          %v3164 = vld [vmem:[#allocation8 + $0x4a8] sm:$0xff]
          %v3165 = vld [vmem:[#allocation8 + $0x4b0] sm:$0xff]
          %v3166 = vld [vmem:[#allocation8 + $0x4b8] sm:$0xff]
          %v3167 = vld [vmem:[#allocation8 + $0x4c0] sm:$0xff]
          %v3168 = vld [vmem:[#allocation8 + $0x4c8] sm:$0xff]
          %v3169 = vld [vmem:[#allocation8 + $0x4d0] sm:$0xff]
          %v3170 = vld [vmem:[#allocation8 + $0x4d8] sm:$0xff]
          %v3171 = vld [vmem:[#allocation8 + $0x4e0] sm:$0xff]
          %v3172 = vld [vmem:[#allocation8 + $0x4e8] sm:$0xff]
          %v3173 = vld [vmem:[#allocation8 + $0x4f0] sm:$0xff]
          %v3174 = vld [vmem:[#allocation8 + $0x4f8] sm:$0xff]
          %v3175 = vld [vmem:[#allocation8 + $0x500] sm:$0xff]
          %v3176 = vld [vmem:[#allocation8 + $0x508] sm:$0xff]
          %v3177 = vld [vmem:[#allocation8 + $0x510] sm:$0xff]
          %v3178 = vld [vmem:[#allocation8 + $0x518] sm:$0xff]
          %v3179 = vld [vmem:[#allocation8 + $0x520] sm:$0xff]
          %v3180 = vld [vmem:[#allocation8 + $0x528] sm:$0xff]
          %v3181 = vld [vmem:[#allocation8 + $0x530] sm:$0xff]
          %v3182 = vld [vmem:[#allocation8 + $0x538] sm:$0xff]
          %v3183 = vld [vmem:[#allocation8 + $0x540] sm:$0xff]
          %v3184 = vld [vmem:[#allocation8 + $0x548] sm:$0xff]
          %v3185 = vld [vmem:[#allocation8 + $0x550] sm:$0xff]
          %v3186 = vld [vmem:[#allocation8 + $0x558] sm:$0xff]
          %v3187 = vld [vmem:[#allocation8 + $0x560] sm:$0xff]
          %v3188 = vld [vmem:[#allocation8 + $0x568] sm:$0xff]
          %v3189 = vld [vmem:[#allocation8 + $0x570] sm:$0xff]
          %v3190 = vld [vmem:[#allocation8 + $0x578] sm:$0xff]
          %v3191 = vld [vmem:[#allocation8 + $0x580] sm:$0xff]
          %v3192 = vld [vmem:[#allocation8 + $0x588] sm:$0xff]
          %v3193 = vld [vmem:[#allocation8 + $0x590] sm:$0xff]
          %v3194 = vld [vmem:[#allocation8 + $0x598] sm:$0xff]
          %v3195 = vld [vmem:[#allocation8 + $0x5a0] sm:$0xff]
          %v3196 = vld [vmem:[#allocation8 + $0x5a8] sm:$0xff]
          %v3197 = vld [vmem:[#allocation8 + $0x5b0] sm:$0xff]
          %v3198 = vld [vmem:[#allocation8 + $0x5b8] sm:$0xff]
          %v3199 = vld [vmem:[#allocation8 + $0x5c0] sm:$0xff]
          %v3200 = vld [vmem:[#allocation8 + $0x5c8] sm:$0xff]
          %v3201 = vld [vmem:[#allocation8 + $0x5d0] sm:$0xff]
          %v3202 = vld [vmem:[#allocation8 + $0x5d8] sm:$0xff]
          %v3203 = vld [vmem:[#allocation8 + $0x5e0] sm:$0xff]
          %v3204 = vld [vmem:[#allocation8 + $0x5e8] sm:$0xff]
          %v3205 = vld [vmem:[#allocation8 + $0x5f0] sm:$0xff]
          %v3206 = vld [vmem:[#allocation8 + $0x5f8] sm:$0xff]
          %v3207 = vld [vmem:[#allocation8 + $0x600] sm:$0xff]
          %v3208 = vld [vmem:[#allocation8 + $0x608] sm:$0xff]
          %v3209 = vld [vmem:[#allocation8 + $0x610] sm:$0xff]
          %v3210 = vld [vmem:[#allocation8 + $0x618] sm:$0xff]
          %v3211 = vld [vmem:[#allocation8 + $0x620] sm:$0xff]
          %v3212 = vld [vmem:[#allocation8 + $0x628] sm:$0xff]
          %v3213 = vld [vmem:[#allocation8 + $0x630] sm:$0xff]
          %v3214 = vld [vmem:[#allocation8 + $0x638] sm:$0xff]
          %v3215 = vld [vmem:[#allocation8 + $0x640] sm:$0xff]
          %v3216 = vld [vmem:[#allocation8 + $0x648] sm:$0xff]
          %v3217 = vld [vmem:[#allocation8 + $0x650] sm:$0xff]
          %v3218 = vld [vmem:[#allocation8 + $0x658] sm:$0xff]
          %v3219 = vld [vmem:[#allocation8 + $0x660] sm:$0xff]
          %v3220 = vld [vmem:[#allocation8 + $0x668] sm:$0xff]
          %v3221 = vld [vmem:[#allocation8 + $0x670] sm:$0xff]
          %v3222 = vld [vmem:[#allocation8 + $0x678] sm:$0xff]
          %v3223 = vld [vmem:[#allocation8 + $0x680] sm:$0xff]
          %v3224 = vld [vmem:[#allocation8 + $0x688] sm:$0xff]
          %v3225 = vld [vmem:[#allocation8 + $0x690] sm:$0xff]
          %v3226 = vld [vmem:[#allocation8 + $0x698] sm:$0xff]
          %v3227 = vld [vmem:[#allocation8 + $0x6a0] sm:$0xff]
          %v3228 = vld [vmem:[#allocation8 + $0x6a8] sm:$0xff]
          %v3229 = vld [vmem:[#allocation8 + $0x6b0] sm:$0xff]
          %v3230 = vld [vmem:[#allocation8 + $0x6b8] sm:$0xff]
          %v3231 = vld [vmem:[#allocation8 + $0x6c0] sm:$0xff]
          %v3232 = vld [vmem:[#allocation8 + $0x6c8] sm:$0xff]
          %v3233 = vld [vmem:[#allocation8 + $0x6d0] sm:$0xff]
          %v3234 = vld [vmem:[#allocation8 + $0x6d8] sm:$0xff]
          %v3235 = vld [vmem:[#allocation8 + $0x6e0] sm:$0xff]
          %v3236 = vld [vmem:[#allocation8 + $0x6e8] sm:$0xff]
          %v3237 = vld [vmem:[#allocation8 + $0x6f0] sm:$0xff]
          %v3238 = vld [vmem:[#allocation8 + $0x6f8] sm:$0xff]
          %v3239 = vld [vmem:[#allocation8 + $0x700] sm:$0xff]
          %v3240 = vld [vmem:[#allocation8 + $0x708] sm:$0xff]
          %v3241 = vld [vmem:[#allocation8 + $0x710] sm:$0xff]
          %v3242 = vld [vmem:[#allocation8 + $0x718] sm:$0xff]
          %v3243 = vld [vmem:[#allocation8 + $0x720] sm:$0xff]
          %v3244 = vld [vmem:[#allocation8 + $0x728] sm:$0xff]
          %v3245 = vld [vmem:[#allocation8 + $0x730] sm:$0xff]
          %v3246 = vld [vmem:[#allocation8 + $0x738] sm:$0xff]
          %v3247 = vld [vmem:[#allocation8 + $0x740] sm:$0xff]
          %v3248 = vld [vmem:[#allocation8 + $0x748] sm:$0xff]
          %v3249 = vld [vmem:[#allocation8 + $0x750] sm:$0xff]
          %v3250 = vld [vmem:[#allocation8 + $0x758] sm:$0xff]
          %v3251 = vld [vmem:[#allocation8 + $0x760] sm:$0xff]
          %v3252 = vld [vmem:[#allocation8 + $0x768] sm:$0xff]
          %v3253 = vld [vmem:[#allocation8 + $0x770] sm:$0xff]
          %v3254 = vld [vmem:[#allocation8 + $0x778] sm:$0xff]
          %v3255 = vld [vmem:[#allocation8 + $0x780] sm:$0xff]
          %v3256 = vld [vmem:[#allocation8 + $0x788] sm:$0xff]
          %v3257 = vld [vmem:[#allocation8 + $0x790] sm:$0xff]
          %v3258 = vld [vmem:[#allocation8 + $0x798] sm:$0xff]
          %v3259 = vld [vmem:[#allocation8 + $0x7a0] sm:$0xff]
          %v3260 = vld [vmem:[#allocation8 + $0x7a8] sm:$0xff]
          %v3261 = vld [vmem:[#allocation8 + $0x7b0] sm:$0xff]
          %v3262 = vld [vmem:[#allocation8 + $0x7b8] sm:$0xff]
          %v3263 = vld [vmem:[#allocation8 + $0x7c0] sm:$0xff]
          %v3264 = vld [vmem:[#allocation8 + $0x7c8] sm:$0xff]
          %v3265 = vld [vmem:[#allocation8 + $0x7d0] sm:$0xff]
          %v3266 = vld [vmem:[#allocation8 + $0x7d8] sm:$0xff]
          %v3267 = vld [vmem:[#allocation8 + $0x7e0] sm:$0xff]
          %v3268 = vld [vmem:[#allocation8 + $0x7e8] sm:$0xff]
          %v3269 = vld [vmem:[#allocation8 + $0x7f0] sm:$0xff]
          %v3270 = vld [vmem:[#allocation8 + $0x7f8] sm:$0xff]
          %v3271 = vld [vmem:[%s8 + $0x10] sm:$0x3]
          %v3273 = vlaneseq
          %v3274 = vshrl.u32 %v3273, 7
          %v3275 = vsub.s32 0, %v3274
          %v3276 = vrot.slane %v3014, %v3275
          %v3277 = vlaneseq
          %v3278 = vshrl.u32 %v3277, 7
          %v3279 = vsub.s32 1, %v3278
          %v3280 = vrot.slane %v3014, %v3279
          %v3281 = vlaneseq
          %v3282 = vshrl.u32 %v3281, 7
          %v3283 = vsub.s32 2, %v3282
          %v3284 = vrot.slane %v3014, %v3283
          %v3285 = vlaneseq
          %v3286 = vshrl.u32 %v3285, 7
          %v3287 = vsub.s32 3, %v3286
          %v3288 = vrot.slane %v3014, %v3287
          %v3289 = vlaneseq
          %v3290 = vshrl.u32 %v3289, 7
          %v3291 = vsub.s32 4, %v3290
          %v3292 = vrot.slane %v3014, %v3291
          %v3293 = vlaneseq
          %v3294 = vshrl.u32 %v3293, 7
          %v3295 = vsub.s32 5, %v3294
          %v3296 = vrot.slane %v3014, %v3295
          %v3297 = vlaneseq
          %v3298 = vshrl.u32 %v3297, 7
          %v3299 = vsub.s32 6, %v3298
          %v3300 = vrot.slane %v3014, %v3299
          %v3301 = vlaneseq
          %v3302 = vshrl.u32 %v3301, 7
          %v3303 = vsub.s32 7, %v3302
          %v3304 = vrot.slane %v3014, %v3303
          %v3314 = vlaneseq
          %v3315 = vshrl.u32 %v3314, 7
          %v3316 = vsub.s32 0, %v3315
          %v3317 = vrot.slane %v3271, %v3316
          %v3318 = vlaneseq
          %v3319 = vshrl.u32 %v3318, 7
          %v3320 = vsub.s32 1, %v3319
          %v3321 = vrot.slane %v3271, %v3320
          %3324 = vmatprep.subr.mxu0 %v3046
          %3325 = vmatpush1.msra.mxu0 %v3045
          %3326 = vmatprep.subr.mxu0 %v3044
          %3327 = vmatpush1.msra.mxu0 %v3043
          %3328 = vmatprep.subr.mxu0 %v3042
          %3329 = vmatpush1.msra.mxu0 %v3041
          %3330 = vmatprep.subr.mxu0 %v3040
          %3331 = vmatpush1.msra.mxu0 %v3039
          %3332 = vmatprep.subr.mxu0 %v3038
          %3333 = vmatpush1.msra.mxu0 %v3037
          %3334 = vmatprep.subr.mxu0 %v3036
          %3335 = vmatpush1.msra.mxu0 %v3035
          %3336 = vmatprep.subr.mxu0 %v3034
          %3337 = vmatpush1.msra.mxu0 %v3033
          %3338 = vmatprep.subr.mxu0 %v3032
          %3339 = vmatpush1.msra.mxu0 %v3031
          %3340 = vmatprep.subr.mxu0 %v3030
          %3341 = vmatpush1.msra.mxu0 %v3029
          %3342 = vmatprep.subr.mxu0 %v3028
          %3343 = vmatpush1.msra.mxu0 %v3027
          %3344 = vmatprep.subr.mxu0 %v3026
          %3345 = vmatpush1.msra.mxu0 %v3025
          %3346 = vmatprep.subr.mxu0 %v3024
          %3347 = vmatpush1.msra.mxu0 %v3023
          %3348 = vmatprep.subr.mxu0 %v3022
          %3349 = vmatpush1.msra.mxu0 %v3021
          %3350 = vmatprep.subr.mxu0 %v3020
          %3351 = vmatpush1.msra.mxu0 %v3019
          %3352 = vmatprep.subr.mxu0 %v3018
          %3353 = vmatpush1.msra.mxu0 %v3017
          %3354 = vmatprep.subr.mxu0 %v3016
          %3355 = vmatpush1.msra.mxu0 %v3015
          %3356 = vmatprep.subr.mxu0 %v3078
          %3357 = vmatpush2.msra.mxu0 %v3077
          %3358 = vmatprep.subr.mxu0 %v3076
          %3359 = vmatpush2.msra.mxu0 %v3075
          %3360 = vmatprep.subr.mxu0 %v3074
          %3361 = vmatpush2.msra.mxu0 %v3073
          %3362 = vmatprep.subr.mxu0 %v3072
          %3363 = vmatpush2.msra.mxu0 %v3071
          %3364 = vmatprep.subr.mxu0 %v3070
          %3365 = vmatpush2.msra.mxu0 %v3069
          %3366 = vmatprep.subr.mxu0 %v3068
          %3367 = vmatpush2.msra.mxu0 %v3067
          %3368 = vmatprep.subr.mxu0 %v3066
          %3369 = vmatpush2.msra.mxu0 %v3065
          %3370 = vmatprep.subr.mxu0 %v3064
          %3371 = vmatpush2.msra.mxu0 %v3063
          %3372 = vmatprep.subr.mxu0 %v3062
          %3373 = vmatpush2.msra.mxu0 %v3061
          %3374 = vmatprep.subr.mxu0 %v3060
          %3375 = vmatpush2.msra.mxu0 %v3059
          %3376 = vmatprep.subr.mxu0 %v3058
          %3377 = vmatpush2.msra.mxu0 %v3057
          %3378 = vmatprep.subr.mxu0 %v3056
          %3379 = vmatpush2.msra.mxu0 %v3055
          %3380 = vmatprep.subr.mxu0 %v3054
          %3381 = vmatpush2.msra.mxu0 %v3053
          %3382 = vmatprep.subr.mxu0 %v3052
          %3383 = vmatpush2.msra.mxu0 %v3051
          %3384 = vmatprep.subr.mxu0 %v3050
          %3385 = vmatpush2.msra.mxu0 %v3049
          %3386 = vmatprep.subr.mxu0 %v3048
          %3387 = vmatpush2.msra.mxu0 %v3047
          %3388 = vmatprep.mubr.f32.mxu0 %v3280
          %3389 = vmatmul.mubr.f32.gmra.mxu0 %v3276
          %v3390 = vpop.f32.mrf.mxu0
          %v3391 = vadd.f32 %v3317, %v3390
          %v3392 = vpop.f32.mrf.mxu0
          %v3393 = vadd.f32 %v3321, %v3392
          %3394 = vdwg.mxu0
          %3395 = vmatprep.subr.mxu0 %v3110
          %3396 = vmatpush1.msra.mxu0 %v3109
          %3397 = vmatprep.subr.mxu0 %v3108
          %3398 = vmatpush1.msra.mxu0 %v3107
          %3399 = vmatprep.subr.mxu0 %v3106
          %3400 = vmatpush1.msra.mxu0 %v3105
          %3401 = vmatprep.subr.mxu0 %v3104
          %3402 = vmatpush1.msra.mxu0 %v3103
          %3403 = vmatprep.subr.mxu0 %v3102
          %3404 = vmatpush1.msra.mxu0 %v3101
          %3405 = vmatprep.subr.mxu0 %v3100
          %3406 = vmatpush1.msra.mxu0 %v3099
          %3407 = vmatprep.subr.mxu0 %v3098
          %3408 = vmatpush1.msra.mxu0 %v3097
          %3409 = vmatprep.subr.mxu0 %v3096
          %3410 = vmatpush1.msra.mxu0 %v3095
          %3411 = vmatprep.subr.mxu0 %v3094
          %3412 = vmatpush1.msra.mxu0 %v3093
          %3413 = vmatprep.subr.mxu0 %v3092
          %3414 = vmatpush1.msra.mxu0 %v3091
          %3415 = vmatprep.subr.mxu0 %v3090
          %3416 = vmatpush1.msra.mxu0 %v3089
          %3417 = vmatprep.subr.mxu0 %v3088
          %3418 = vmatpush1.msra.mxu0 %v3087
          %3419 = vmatprep.subr.mxu0 %v3086
          %3420 = vmatpush1.msra.mxu0 %v3085
          %3421 = vmatprep.subr.mxu0 %v3084
          %3422 = vmatpush1.msra.mxu0 %v3083
          %3423 = vmatprep.subr.mxu0 %v3082
          %3424 = vmatpush1.msra.mxu0 %v3081
          %3425 = vmatprep.subr.mxu0 %v3080
          %3426 = vmatpush1.msra.mxu0 %v3079
          %3427 = vmatprep.subr.mxu0 %v3142
          %3428 = vmatpush2.msra.mxu0 %v3141
          %3429 = vmatprep.subr.mxu0 %v3140
          %3430 = vmatpush2.msra.mxu0 %v3139
          %3431 = vmatprep.subr.mxu0 %v3138
          %3432 = vmatpush2.msra.mxu0 %v3137
          %3433 = vmatprep.subr.mxu0 %v3136
          %3434 = vmatpush2.msra.mxu0 %v3135
          %3435 = vmatprep.subr.mxu0 %v3134
          %3436 = vmatpush2.msra.mxu0 %v3133
          %3437 = vmatprep.subr.mxu0 %v3132
          %3438 = vmatpush2.msra.mxu0 %v3131
          %3439 = vmatprep.subr.mxu0 %v3130
          %3440 = vmatpush2.msra.mxu0 %v3129
          %3441 = vmatprep.subr.mxu0 %v3128
          %3442 = vmatpush2.msra.mxu0 %v3127
          %3443 = vmatprep.subr.mxu0 %v3126
          %3444 = vmatpush2.msra.mxu0 %v3125
          %3445 = vmatprep.subr.mxu0 %v3124
          %3446 = vmatpush2.msra.mxu0 %v3123
          %3447 = vmatprep.subr.mxu0 %v3122
          %3448 = vmatpush2.msra.mxu0 %v3121
          %3449 = vmatprep.subr.mxu0 %v3120
          %3450 = vmatpush2.msra.mxu0 %v3119
          %3451 = vmatprep.subr.mxu0 %v3118
          %3452 = vmatpush2.msra.mxu0 %v3117
          %3453 = vmatprep.subr.mxu0 %v3116
          %3454 = vmatpush2.msra.mxu0 %v3115
          %3455 = vmatprep.subr.mxu0 %v3114
          %3456 = vmatpush2.msra.mxu0 %v3113
          %3457 = vmatprep.subr.mxu0 %v3112
          %3458 = vmatpush2.msra.mxu0 %v3111
          %3459 = vmatprep.mubr.f32.mxu0 %v3288
          %3460 = vmatmul.mubr.f32.gmra.mxu0 %v3284
          %v3461 = vpop.f32.mrf.mxu0
          %v3462 = vadd.f32 %v3391, %v3461
          %v3463 = vpop.f32.mrf.mxu0
          %v3464 = vadd.f32 %v3393, %v3463
          %3465 = vdwg.mxu0
          %3466 = vmatprep.subr.mxu0 %v3174
          %3467 = vmatpush1.msra.mxu0 %v3173
          %3468 = vmatprep.subr.mxu0 %v3172
          %3469 = vmatpush1.msra.mxu0 %v3171
          %3470 = vmatprep.subr.mxu0 %v3170
          %3471 = vmatpush1.msra.mxu0 %v3169
          %3472 = vmatprep.subr.mxu0 %v3168
          %3473 = vmatpush1.msra.mxu0 %v3167
          %3474 = vmatprep.subr.mxu0 %v3166
          %3475 = vmatpush1.msra.mxu0 %v3165
          %3476 = vmatprep.subr.mxu0 %v3164
          %3477 = vmatpush1.msra.mxu0 %v3163
          %3478 = vmatprep.subr.mxu0 %v3162
          %3479 = vmatpush1.msra.mxu0 %v3161
          %3480 = vmatprep.subr.mxu0 %v3160
          %3481 = vmatpush1.msra.mxu0 %v3159
          %3482 = vmatprep.subr.mxu0 %v3158
          %3483 = vmatpush1.msra.mxu0 %v3157
          %3484 = vmatprep.subr.mxu0 %v3156
          %3485 = vmatpush1.msra.mxu0 %v3155
          %3486 = vmatprep.subr.mxu0 %v3154
          %3487 = vmatpush1.msra.mxu0 %v3153
          %3488 = vmatprep.subr.mxu0 %v3152
          %3489 = vmatpush1.msra.mxu0 %v3151
          %3490 = vmatprep.subr.mxu0 %v3150
          %3491 = vmatpush1.msra.mxu0 %v3149
          %3492 = vmatprep.subr.mxu0 %v3148
          %3493 = vmatpush1.msra.mxu0 %v3147
          %3494 = vmatprep.subr.mxu0 %v3146
          %3495 = vmatpush1.msra.mxu0 %v3145
          %3496 = vmatprep.subr.mxu0 %v3144
          %3497 = vmatpush1.msra.mxu0 %v3143
          %3498 = vmatprep.subr.mxu0 %v3206
          %3499 = vmatpush2.msra.mxu0 %v3205
          %3500 = vmatprep.subr.mxu0 %v3204
          %3501 = vmatpush2.msra.mxu0 %v3203
          %3502 = vmatprep.subr.mxu0 %v3202
          %3503 = vmatpush2.msra.mxu0 %v3201
          %3504 = vmatprep.subr.mxu0 %v3200
          %3505 = vmatpush2.msra.mxu0 %v3199
          %3506 = vmatprep.subr.mxu0 %v3198
          %3507 = vmatpush2.msra.mxu0 %v3197
          %3508 = vmatprep.subr.mxu0 %v3196
          %3509 = vmatpush2.msra.mxu0 %v3195
          %3510 = vmatprep.subr.mxu0 %v3194
          %3511 = vmatpush2.msra.mxu0 %v3193
          %3512 = vmatprep.subr.mxu0 %v3192
          %3513 = vmatpush2.msra.mxu0 %v3191
          %3514 = vmatprep.subr.mxu0 %v3190
          %3515 = vmatpush2.msra.mxu0 %v3189
          %3516 = vmatprep.subr.mxu0 %v3188
          %3517 = vmatpush2.msra.mxu0 %v3187
          %3518 = vmatprep.subr.mxu0 %v3186
          %3519 = vmatpush2.msra.mxu0 %v3185
          %3520 = vmatprep.subr.mxu0 %v3184
          %3521 = vmatpush2.msra.mxu0 %v3183
          %3522 = vmatprep.subr.mxu0 %v3182
          %3523 = vmatpush2.msra.mxu0 %v3181
          %3524 = vmatprep.subr.mxu0 %v3180
          %3525 = vmatpush2.msra.mxu0 %v3179
          %3526 = vmatprep.subr.mxu0 %v3178
          %3527 = vmatpush2.msra.mxu0 %v3177
          %3528 = vmatprep.subr.mxu0 %v3176
          %3529 = vmatpush2.msra.mxu0 %v3175
          %3530 = vmatprep.mubr.f32.mxu0 %v3296
          %3531 = vmatmul.mubr.f32.gmra.mxu0 %v3292
          %v3532 = vpop.f32.mrf.mxu0
          %v3533 = vadd.f32 %v3462, %v3532
          %v3534 = vpop.f32.mrf.mxu0
          %v3535 = vadd.f32 %v3464, %v3534
          %3536 = vdwg.mxu0
          %3537 = vmatprep.subr.mxu0 %v3238
          %3538 = vmatpush1.msra.mxu0 %v3237
          %3539 = vmatprep.subr.mxu0 %v3236
          %3540 = vmatpush1.msra.mxu0 %v3235
          %3541 = vmatprep.subr.mxu0 %v3234
          %3542 = vmatpush1.msra.mxu0 %v3233
          %3543 = vmatprep.subr.mxu0 %v3232
          %3544 = vmatpush1.msra.mxu0 %v3231
          %3545 = vmatprep.subr.mxu0 %v3230
          %3546 = vmatpush1.msra.mxu0 %v3229
          %3547 = vmatprep.subr.mxu0 %v3228
          %3548 = vmatpush1.msra.mxu0 %v3227
          %3549 = vmatprep.subr.mxu0 %v3226
          %3550 = vmatpush1.msra.mxu0 %v3225
          %3551 = vmatprep.subr.mxu0 %v3224
          %3552 = vmatpush1.msra.mxu0 %v3223
          %3553 = vmatprep.subr.mxu0 %v3222
          %3554 = vmatpush1.msra.mxu0 %v3221
          %3555 = vmatprep.subr.mxu0 %v3220
          %3556 = vmatpush1.msra.mxu0 %v3219
          %3557 = vmatprep.subr.mxu0 %v3218
          %3558 = vmatpush1.msra.mxu0 %v3217
          %3559 = vmatprep.subr.mxu0 %v3216
          %3560 = vmatpush1.msra.mxu0 %v3215
          %3561 = vmatprep.subr.mxu0 %v3214
          %3562 = vmatpush1.msra.mxu0 %v3213
          %3563 = vmatprep.subr.mxu0 %v3212
          %3564 = vmatpush1.msra.mxu0 %v3211
          %3565 = vmatprep.subr.mxu0 %v3210
          %3566 = vmatpush1.msra.mxu0 %v3209
          %3567 = vmatprep.subr.mxu0 %v3208
          %3568 = vmatpush1.msra.mxu0 %v3207
          %3569 = vmatprep.subr.mxu0 %v3270
          %3570 = vmatpush2.msra.mxu0 %v3269
          %3571 = vmatprep.subr.mxu0 %v3268
          %3572 = vmatpush2.msra.mxu0 %v3267
          %3573 = vmatprep.subr.mxu0 %v3266
          %3574 = vmatpush2.msra.mxu0 %v3265
          %3575 = vmatprep.subr.mxu0 %v3264
          %3576 = vmatpush2.msra.mxu0 %v3263
          %3577 = vmatprep.subr.mxu0 %v3262
          %3578 = vmatpush2.msra.mxu0 %v3261
          %3579 = vmatprep.subr.mxu0 %v3260
          %3580 = vmatpush2.msra.mxu0 %v3259
          %3581 = vmatprep.subr.mxu0 %v3258
          %3582 = vmatpush2.msra.mxu0 %v3257
          %3583 = vmatprep.subr.mxu0 %v3256
          %3584 = vmatpush2.msra.mxu0 %v3255
          %3585 = vmatprep.subr.mxu0 %v3254
          %3586 = vmatpush2.msra.mxu0 %v3253
          %3587 = vmatprep.subr.mxu0 %v3252
          %3588 = vmatpush2.msra.mxu0 %v3251
          %3589 = vmatprep.subr.mxu0 %v3250
          %3590 = vmatpush2.msra.mxu0 %v3249
          %3591 = vmatprep.subr.mxu0 %v3248
          %3592 = vmatpush2.msra.mxu0 %v3247
          %3593 = vmatprep.subr.mxu0 %v3246
          %3594 = vmatpush2.msra.mxu0 %v3245
          %3595 = vmatprep.subr.mxu0 %v3244
          %3596 = vmatpush2.msra.mxu0 %v3243
          %3597 = vmatprep.subr.mxu0 %v3242
          %3598 = vmatpush2.msra.mxu0 %v3241
          %3599 = vmatprep.subr.mxu0 %v3240
          %3600 = vmatpush2.msra.mxu0 %v3239
          %3601 = vmatprep.mubr.f32.mxu0 %v3304
          %3602 = vmatmul.mubr.f32.gmra.mxu0 %v3300
          %v3603 = vpop.f32.mrf.mxu0
          %v3604 = vadd.f32 %v3533, %v3603
          %v3605 = vpop.f32.mrf.mxu0
          %v3606 = vadd.f32 %v3535, %v3605
          %3607 = vdwg.mxu0
          %v3608 = vmax.f32 %v3604, 0.0
          %v3609 = vmax.f32 %v3606, 0.0
          %v3610 = vld [vmem:[%s7] sm:$0xff]
          %v3611 = vld [vmem:[%s7 + $0x8] sm:$0xff]
          %v3612 = vld [vmem:[%s7 + $0x10] sm:$0xff]
          %v3613 = vld [vmem:[%s7 + $0x18] sm:$0xff]
          %v3614 = vld [vmem:[%s7 + $0x20] sm:$0xff]
          %v3615 = vld [vmem:[%s7 + $0x28] sm:$0xff]
          %v3616 = vld [vmem:[%s7 + $0x30] sm:$0xff]
          %v3617 = vld [vmem:[%s7 + $0x38] sm:$0xff]
          %v3618 = vld [vmem:[%s7 + $0x40] sm:$0xff]
          %v3619 = vld [vmem:[%s7 + $0x48] sm:$0xff]
          %v3620 = vld [vmem:[%s7 + $0x50] sm:$0xff]
          %v3621 = vld [vmem:[%s7 + $0x58] sm:$0xff]
          %v3622 = vld [vmem:[%s7 + $0x60] sm:$0xff]
          %v3623 = vld [vmem:[%s7 + $0x68] sm:$0xff]
          %v3624 = vld [vmem:[%s7 + $0x70] sm:$0xff]
          %v3625 = vld [vmem:[%s7 + $0x78] sm:$0xff]
          %v3626 = vld [vmem:[%s7 + $0x80] sm:$0xff]
          %v3627 = vld [vmem:[%s7 + $0x88] sm:$0xff]
          %v3628 = vld [vmem:[%s7 + $0x90] sm:$0xff]
          %v3629 = vld [vmem:[%s7 + $0x98] sm:$0xff]
          %v3630 = vld [vmem:[%s7 + $0xa0] sm:$0xff]
          %v3631 = vld [vmem:[%s7 + $0xa8] sm:$0xff]
          %v3632 = vld [vmem:[%s7 + $0xb0] sm:$0xff]
          %v3633 = vld [vmem:[%s7 + $0xb8] sm:$0xff]
          %v3634 = vld [vmem:[%s7 + $0xc0] sm:$0xff]
          %v3635 = vld [vmem:[%s7 + $0xc8] sm:$0xff]
          %v3636 = vld [vmem:[%s7 + $0xd0] sm:$0xff]
          %v3637 = vld [vmem:[%s7 + $0xd8] sm:$0xff]
          %v3638 = vld [vmem:[%s7 + $0xe0] sm:$0xff]
          %v3639 = vld [vmem:[%s7 + $0xe8] sm:$0xff]
          %v3640 = vld [vmem:[%s7 + $0xf0] sm:$0xff]
          %v3641 = vld [vmem:[%s7 + $0xf8] sm:$0xff]
          %v3642 = vld [vmem:[%s8 + $0x17] sm:$0x1]
          %3643 = vmatprep.subr.mxu0 0.0
          %3644 = vmatpush1.msra.mxu0 %v3625
          %3645 = vmatprep.subr.mxu0 0.0
          %3646 = vmatpush1.msra.mxu0 %v3624
          %3647 = vmatprep.subr.mxu0 0.0
          %3648 = vmatpush1.msra.mxu0 %v3623
          %3649 = vmatprep.subr.mxu0 0.0
          %3650 = vmatpush1.msra.mxu0 %v3622
          %3651 = vmatprep.subr.mxu0 0.0
          %3652 = vmatpush1.msra.mxu0 %v3621
          %3653 = vmatprep.subr.mxu0 0.0
          %3654 = vmatpush1.msra.mxu0 %v3620
          %3655 = vmatprep.subr.mxu0 0.0
          %3656 = vmatpush1.msra.mxu0 %v3619
          %3657 = vmatprep.subr.mxu0 0.0
          %3658 = vmatpush1.msra.mxu0 %v3618
          %3659 = vmatprep.subr.mxu0 0.0
          %3660 = vmatpush1.msra.mxu0 %v3617
          %3661 = vmatprep.subr.mxu0 0.0
          %3662 = vmatpush1.msra.mxu0 %v3616
          %3663 = vmatprep.subr.mxu0 0.0
          %3664 = vmatpush1.msra.mxu0 %v3615
          %3665 = vmatprep.subr.mxu0 0.0
          %3666 = vmatpush1.msra.mxu0 %v3614
          %3667 = vmatprep.subr.mxu0 0.0
          %3668 = vmatpush1.msra.mxu0 %v3613
          %3669 = vmatprep.subr.mxu0 0.0
          %3670 = vmatpush1.msra.mxu0 %v3612
          %3671 = vmatprep.subr.mxu0 0.0
          %3672 = vmatpush1.msra.mxu0 %v3611
          %3673 = vmatprep.subr.mxu0 0.0
          %3674 = vmatpush1.msra.mxu0 %v3610
          %3675 = vmatprep.subr.mxu0 0.0
          %3676 = vmatpush2.msra.mxu0 %v3641
          %3677 = vmatprep.subr.mxu0 0.0
          %3678 = vmatpush2.msra.mxu0 %v3640
          %3679 = vmatprep.subr.mxu0 0.0
          %3680 = vmatpush2.msra.mxu0 %v3639
          %3681 = vmatprep.subr.mxu0 0.0
          %3682 = vmatpush2.msra.mxu0 %v3638
          %3683 = vmatprep.subr.mxu0 0.0
          %3684 = vmatpush2.msra.mxu0 %v3637
          %3685 = vmatprep.subr.mxu0 0.0
          %3686 = vmatpush2.msra.mxu0 %v3636
          %3687 = vmatprep.subr.mxu0 0.0
          %3688 = vmatpush2.msra.mxu0 %v3635
          %3689 = vmatprep.subr.mxu0 0.0
          %3690 = vmatpush2.msra.mxu0 %v3634
          %3691 = vmatprep.subr.mxu0 0.0
          %3692 = vmatpush2.msra.mxu0 %v3633
          %3693 = vmatprep.subr.mxu0 0.0
          %3694 = vmatpush2.msra.mxu0 %v3632
          %3695 = vmatprep.subr.mxu0 0.0
          %3696 = vmatpush2.msra.mxu0 %v3631
          %3697 = vmatprep.subr.mxu0 0.0
          %3698 = vmatpush2.msra.mxu0 %v3630
          %3699 = vmatprep.subr.mxu0 0.0
          %3700 = vmatpush2.msra.mxu0 %v3629
          %3701 = vmatprep.subr.mxu0 0.0
          %3702 = vmatpush2.msra.mxu0 %v3628
          %3703 = vmatprep.subr.mxu0 0.0
          %3704 = vmatpush2.msra.mxu0 %v3627
          %3705 = vmatprep.subr.mxu0 0.0
          %3706 = vmatpush2.msra.mxu0 %v3626
          %3707 = vmatprep.mubr.f32.mxu0 %v3609
          %3708 = vmatmul.mubr.f32.gmra.mxu0 %v3608
          %v3709 = vpop.f32.mrf.mxu0
          %v3710 = vadd.f32 %v3642, %v3709
          %v3711 = vpop.f32.mrf.mxu0
          %3712 = vdwg.mxu0
          %v3713 = vxor.u32 %v3710, 2147483648
          %v3714 = vmul.f32 %v3713, 1.442695
          %v3715 = vpow.pop %v3714
          %v3716 = vadd.f32 %v3715, 1.0
          %v3717 = vrcp.pop %v3716
          %v3718 = vmul.f32 1.0, %v3717
          %v3719 = vsub.f32 1.0, %v3718
          %v3720 = vadd.f32 %v3719, 1.0
          %3722 = vrot.lane.b32.xlu0 %v3720, 127
          %v3723 = vpop.permute.xlu0 %3722
          %v3725 = vmul.f32 %v3719, %v3723
          %v3726 = vadd.f32 %v3725, 1.0
          %3728 = vrot.lane.b32.xlu0 %v3726, 127
          %v3729 = vpop.permute.xlu0 %3728
          %v3731 = vmul.f32 %v3719, %v3729
          %v3732 = vadd.f32 %v3731, 1.0
          %3734 = vrot.lane.b32.xlu0 %v3732, 127
          %v3735 = vpop.permute.xlu0 %3734
          %v3737 = vmul.f32 %v3719, %v3735
          %v3738 = vsub.f32 0.0, %v3737
          %vm3739 = vcmask 0
          %3740 = vst.msk [vmem:[#allocation14] sm:$0x1] %vm3739, %v3738
        $region88: #{grad_cam_radio_forward.1} parent=55 // pred_fallthru
          _
        // Predicated region
        $region89: #{grad_cam_radio_forward.1} parent=55 // pred_check
          %p3741 = pneg %p234
        $region90: #{grad_cam_radio_forward.1} parent=55 // pred_check_branch
          %3743 = sbr.rel (%p3741) target = $region92
        $region91: #{grad_cam_radio_forward.1} parent=55 // pred_region
          %s3745 = ssub.s32 16, 16
          %3746 = vsyncadd [#allocation5], %s3745
          %s3748 = sshll.u32 [#allocation14], 4
          %s3749 = int_to_ptr.vmem [resolvable:$true] %s3748
          %3751 = dma.vmem_to_hbm [thread:$0]  %s3749, 16, %s9, [#allocation5]
        $region92: #{grad_cam_radio_forward.1} parent=55 // pred_fallthru
          _
        // Predicated region
        $region93: #{grad_cam_radio_forward.1} parent=55 // pred_check
          %p3752 = pneg %p234
        $region94: #{grad_cam_radio_forward.1} parent=55 // pred_check_branch
          %3754 = sbr.rel (%p3752) target = $region96
        $region95: #{grad_cam_radio_forward.1} parent=55 // pred_region
          %3755 = dma.done [#allocation5], 16
        $region96: #{grad_cam_radio_forward.1} parent=55 // pred_fallthru
          _
      $region56: #{grad_cam_radio_forward.1} parent=5 // pred_fallthru
        _
      %p3756 = scmp.le.s32.totalorder 2, %s22
      // Predicated region
      $region97: #{grad_cam_radio_forward.1} parent=5 // pred_check
        %p3757 = pneg %p3756
      $region98: #{grad_cam_radio_forward.1} parent=5 // pred_check_branch
        %3759 = sbr.rel (%p3757) target = $region100
      $region99: #{grad_cam_radio_forward.1} parent=5 // pred_region
        %s3760 = ssub.s32 %s22, 2
      $region100: #{grad_cam_radio_forward.1} parent=5 // pred_fallthru
        _
    $region6: #{grad_cam_radio_forward.1} parent=1 // loop_footer
      %s26 = sadd.s32 1, %s22
    $region7: #{grad_cam_radio_forward.1} parent=1 // loop_footer_branch
      %21 = sbr.rel target = $region3
    $region8: #{grad_cam_radio_forward.1} parent=1 // loop_exit
      _
    %3761 = vsyncpa [#allocation4], 1
    %s3762 = scalar_lea.sflag [#allocation4], 1
    %3763 = vsyncpa %s3762, 1
    %3764 = vsyncpa [#allocation7], 1
    %s3765 = scalar_lea.sflag [#allocation7], 1
    %3766 = vsyncpa %s3765, 1
    %3767 = vsyncpa [#allocation10], 1
    %3768 = vsyncpa [#allocation13], 1
    %3769 = vsyncpa [#allocation5], 1
    %s3770 = scalar_lea.sflag [#allocation5], 1
    %3771 = vsyncpa %s3770, 1

</llo_original>
